<compile_context>
chip_gen: v5e
topology: v5e:2x2
jax: 0.10.0
libtpu: 0.0.40
codegen_flags: <defaults>
</compile_context>

<pallas_src>
import jax
import jax.numpy as jnp
from jax import lax
from jax.experimental import pallas as pl
from jax.experimental.pallas import tpu as pltpu

EPS = 1e-6


def _rmsnorm(x, w):
    return x * lax.rsqrt(jnp.mean(x * x, axis=-1, keepdims=True) + EPS) * w


def _ted_kernel(xq_ref, xk_ref,
                wdn_ref, wl_ref, wq_ref, wg_ref, wo_ref,
                wfn_ref, whg_ref, wd_ref,
                o_ref, acc_ref):
    qi = pl.program_id(1)
    ki = pl.program_id(2)
    nk = pl.num_programs(2)
    tq = acc_ref.shape[0]
    tk = xk_ref.shape[0]
    mxu = wq_ref.dtype                    # matmul-operand dtype (bf16 by default)

    @pl.when(ki == 0)
    def _init():
        acc_ref[...] = jnp.zeros_like(acc_ref)

    # ---- streaming key pass:  acc += decay(q_tile, k_tile) @ h1(k_tile) -----
    # decay is lower triangular => key tiles strictly above the diagonal are all
    # zero; skip them entirely (halves MXU pushes / exp()s at production N).
    @pl.when(ki <= qi)
    def _accumulate():
        xk = xk_ref[...]                                          # (Tk, D) f32
        h1k = _rmsnorm(xk, wdn_ref[...])

        # negative_lambdas for the key tile: VPU multiply + lane reduction (a
        # (Tk,D)@(D,1) matvec is a worst-case 1-lane MXU op).  Numerically stable
        # log-sigmoid (finite) so the diagonal (delta == 0) never sees -inf * 0.
        z = jnp.sum(h1k * wl_ref[...], axis=-1, keepdims=True)    # (Tk, 1)
        neglam = jnp.where(z >= 0.0,
                           -jnp.log(1.0 + jnp.exp(-z)),
                           z - jnp.log(1.0 + jnp.exp(z)))         # (Tk, 1), finite
        neglam_row = neglam.reshape(1, tk)   # one small sublane->lane relayout per tile

        # Folded time/mask: decay[i, j] = exp(neglam_j * (i - j)) for i >= j else 0.
        delta = (lax.broadcasted_iota(jnp.int32, (tq, tk), 0) + qi * tq
                 - lax.broadcasted_iota(jnp.int32, (tq, tk), 1) - ki * tk)
        decay = jnp.where(delta >= 0,
                          jnp.exp(neglam_row * delta.astype(jnp.float32)),
                          0.0)
        # NOTE: tiles strictly below the diagonal (ki < qi) are full; the where()
        # there is a single VPU select per vreg -- kept for simplicity.

        # Associativity: decay @ (h1 @ Wq) == (decay @ h1) @ Wq.  Accumulate
        # decay @ h1_k here; Wq is applied once per query tile at finalize.
        acc_ref[...] += jnp.dot(decay.astype(mxu), h1k.astype(mxu),
                                preferred_element_type=jnp.float32)

    # ---- finalize: projections, gate, residual, RMSNorm, gated FFN, residual --
    @pl.when(ki == nk - 1)
    def _finalize():
        xq = xq_ref[...]                                          # (Tq, D) f32
        h1q = _rmsnorm(xq, wdn_ref[...])

        # quantity projection applied once per query tile (see associativity note)
        out = jnp.dot(acc_ref[...].astype(mxu), wq_ref[...],
                      preferred_element_type=jnp.float32)         # (Tq, D)
        gate = jnp.dot(h1q.astype(mxu), wg_ref[...],
                       preferred_element_type=jnp.float32)        # (Tq, D)
        decay_out = jnp.dot(jax.nn.silu(out).astype(mxu), wo_ref[...],
                            preferred_element_type=jnp.float32) * gate

        x2 = xq + decay_out                                       # first residual

        h2 = _rmsnorm(x2, wfn_ref[...])
        hg = jnp.dot(h2.astype(mxu), whg_ref[...],
                     preferred_element_type=jnp.float32)          # (Tq, 2H)
        hh = hg.shape[1] // 2
        hidden = hg[:, :hh] * jax.nn.silu(hg[:, hh:])             # f32 elementwise
        ffn = jnp.dot(hidden.astype(mxu), wd_ref[...],
                      preferred_element_type=jnp.float32)         # (Tq, D)

        o_ref[...] = x2 + ffn                                     # second residual


def _weight_spec(shape, buffered):
    """Constant-index weight block; single-buffered when the JAX build allows it."""
    nd = len(shape)
    index_map = lambda b, q, k, _nd=nd: (0,) * _nd
    if buffered and hasattr(pl, "Buffered"):
        try:
            return pl.BlockSpec(shape, index_map, pipeline_mode=pl.Buffered(1))
        except TypeError:
            pass
    return pl.BlockSpec(shape, index_map)


def _vmem_limit_bytes(weights, tq, d, h2):
    """Derive the scoped-VMEM request from the actual tile/weight footprint."""
    wbytes = sum(int(w.size) * w.dtype.itemsize for w in weights)  # single-buffered
    act = 3 * 2 * tq * d * 4          # x_q, x_k, out blocks, double-buffered, f32
    scratch = tq * d * 4              # f32 accumulator
    tmp = 3 * tq * max(d, h2) * 4     # rough headroom for in-kernel temporaries (hg, ...)
    need = int(1.25 * (wbytes + act + scratch + tmp)) + (4 << 20)
    try:
        phys = int(pltpu.get_tpu_info().vmem_capacity_bytes)
    except Exception:
        phys = 128 * 1024 * 1024
    # leave headroom under physical VMEM (v7x: 64 MiB -> ~56 MiB cap; v5e/v6e: 128 MiB)
    cap = min(phys * 7 // 8, 100 * 1024 * 1024)
    return int(max(min(need, cap), 32 * 1024 * 1024))


def ted_layer(x, params, *, mxu_dtype=jnp.bfloat16, q_tile=None):
    """x: (B, N, D) float32.  params: dict of pre-transposed (in, out) weights.

    mxu_dtype: dtype for matmul *operands* only (f32 accumulation everywhere).
    q_tile:    query/key tile size along N.  Size per generation: <=512 on v7x
               (64 MiB VMEM), up to 1024 on v5e/v6e; must divide N and be a
               multiple of 8 (or equal N).
    """
    B, N, D = x.shape
    f32 = jnp.float32

    if q_tile is None:
        q_tile = min(N, 256)
    if N % q_tile != 0:
        q_tile = N            # TODO(synk): pad N instead of falling back to one tile
    assert q_tile == N or q_tile % 8 == 0, "q_tile must be a multiple of 8 or equal N"
    nq = N // q_tile
    Tq = q_tile

    w_dn = params["w_decay_norm"].reshape(1, D).astype(f32)
    w_fn = params["w_ffn_norm"].reshape(1, D).astype(f32)
    wl   = params["wl_t"].reshape(1, D).astype(f32)               # lambda row (VPU path)
    wq   = params["wq_t"].astype(mxu_dtype)                       # (D, D)
    wg   = params["wg_t"].astype(mxu_dtype)                       # (D, D)
    wo   = params["wo_t"].astype(mxu_dtype)                       # (D, D)
    whg  = jnp.concatenate([params["wh_t"], params["whg_t"]], axis=1).astype(mxu_dtype)  # (D, 2H)
    wd   = params["wd_t"].astype(mxu_dtype)                       # (H, D)
    weights = [w_dn, wl, wq, wg, wo, w_fn, whg, wd]
    H2 = whg.shape[1]

    vmem_limit = _vmem_limit_bytes(weights, Tq, D, H2)

    xq_spec = pl.BlockSpec((None, Tq, D), lambda b, q, k: (b, q, 0))
    xk_spec = pl.BlockSpec((None, Tq, D), lambda b, q, k: (b, k, 0))
    o_spec  = pl.BlockSpec((None, Tq, D), lambda b, q, k: (b, q, 0))

    def _run(buffered_weights):
        grid_spec = pltpu.PrefetchScalarGridSpec(
            num_scalar_prefetch=0,
            grid=(B, nq, nq),                       # (batch, q_tiles, k_tiles)
            in_specs=[xq_spec, xk_spec]
                     + [_weight_spec(w.shape, buffered_weights) for w in weights],
            out_specs=o_spec,
            scratch_shapes=[pltpu.VMEM((Tq, D), jnp.float32)],
        )
        fn = pl.pallas_call(
            _ted_kernel,
            out_shape=jax.ShapeDtypeStruct((B, N, D), jnp.float32),
            grid_spec=grid_spec,
            compiler_params=pltpu.CompilerParams(
                dimension_semantics=("parallel", "parallel", "arbitrary"),
                vmem_limit_bytes=vmem_limit,
            ),
        )
        return fn(x, x, *weights)

    try:
        return _run(True)
    except Exception:
        # pl.Buffered(1) pipeline_mode not supported by this JAX/Mosaic build:
        # retry with default (double-buffered) weight blocks.
        return _run(False)


# ----------------------- pure-JAX reference (for checking) ------------------
def _ref_rmsnorm(x, w):
    return x * lax.rsqrt(jnp.mean(x * x, axis=-1, keepdims=True) + EPS) * w


def ted_layer_ref(x, p):
    B, N, D = x.shape
    h1 = _ref_rmsnorm(x, p["w_decay_norm"])
    neglam = jnp.log(jax.nn.sigmoid(h1 @ p["wl_t"]))              # (B, N, 1)
    neglam_row = jnp.swapaxes(neglam, -1, -2)                     # (B, 1, N)
    i = jnp.arange(N)[:, None]
    j = jnp.arange(N)[None, :]
    time = jnp.maximum(i - j, 0).astype(jnp.float32)
    df = jnp.where(i >= j, jnp.exp(neglam_row * time), 0.0)       # (B, N, N)
    q = h1 @ p["wq_t"]
    out = df @ q
    decay_out = (jax.nn.silu(out) @ p["wo_t"]) * (h1 @ p["wg_t"])
    x2 = x + decay_out
    h2 = _ref_rmsnorm(x2, p["w_ffn_norm"])
    ffn = ((h2 @ p["wh_t"]) * jax.nn.silu(h2 @ p["whg_t"])) @ p["wd_t"]
    return x2 + ffn


# --------------------------------- main --------------------------------------
if __name__ == "__main__":
    # Small but lane-aligned dims (D, H multiples of 128) so the qg/hg splits and
    # the output stores are lane-dense, per the perf review.
    B, N, D, H = 2, 16, 128, 256

    key = jax.random.PRNGKey(0)
    keys = jax.random.split(key, 8)
    scale = 0.05

    # Parameters (deterministic; nn.Linear weights stored pre-transposed as (in, out)).
    params = {
        "w_decay_norm": jnp.ones((1, D), jnp.float32),                        # RMSNorm weight
        "wl_t":  scale * jax.random.normal(keys[0], (D, 1), jnp.float32),     # lambda_matrix
        "wq_t":  scale * jax.random.normal(keys[1], (D, D), jnp.float32),     # quantity_matrix
        "wg_t":  scale * jax.random.normal(keys[2], (D, D), jnp.float32),     # gate_matrix
        "wo_t":  scale * jax.random.normal(keys[3], (D, D), jnp.float32),     # output_matrix
        "w_ffn_norm": jnp.ones((1, D), jnp.float32),                          # RMSNorm weight
        "wh_t":  scale * jax.random.normal(keys[4], (D, H), jnp.float32),     # to_hidden
        "whg_t": scale * jax.random.normal(keys[5], (D, H), jnp.float32),     # to_hidden_gate
        "wd_t":  scale * jax.random.normal(keys[6], (H, D), jnp.float32),     # to_dim
    }
    x = jax.random.normal(keys[7], (B, N, D), jnp.float32)

    with jax.default_matmul_precision("float32"):
        y_ref = jax.block_until_ready(ted_layer_ref(x, params))

    # f32 MXU operands, 2x2 causal tiling: checks tiling / masking / fusion logic.
    y_f32 = jax.block_until_ready(ted_layer(x, params, mxu_dtype=jnp.float32, q_tile=8))
    assert y_f32.shape == (B, N, D)
    assert bool(jnp.all(jnp.isfinite(y_f32)))
    assert jnp.allclose(y_f32, y_ref, atol=2e-2, rtol=2e-2), "f32 kernel mismatch vs reference"

    # Single-tile path (q_tile == N) as a regression check on the grid edge case.
    y_f32_full = jax.block_until_ready(ted_layer(x, params, mxu_dtype=jnp.float32, q_tile=N))
    assert jnp.allclose(y_f32_full, y_ref, atol=2e-2, rtol=2e-2), "single-tile kernel mismatch"

    # Default path: bf16 MXU operands (all generations), f32 accumulation/elementwise.
    y_bf16 = jax.block_until_ready(ted_layer(x, params, q_tile=8))
    assert jnp.allclose(y_bf16, y_ref, atol=1.5e-1, rtol=1.5e-1), "bf16 kernel mismatch vs reference"

    # TODO(synk): ExponentialDecayContext / use_context (streaming KV-style cache with
    # top-k / threshold pruning) is only active when context_config is set; it is not
    # part of the default forward pass and is not implemented here.
    print("KERNEL_OK")
</pallas_src>

<mosaic_0001>
module attributes {stable_mosaic.version = 11 : i64} {
  func.func @_ted_kernel(%arg0: i32, %arg1: i32, %arg2: i32, %arg3: memref<1x8x128xf32, #tpu.memory_space<vmem>>, %arg4: memref<1x8x128xf32, #tpu.memory_space<vmem>>, %arg5: memref<1x128xf32, #tpu.memory_space<vmem>>, %arg6: memref<1x128xf32, #tpu.memory_space<vmem>>, %arg7: memref<128x128xf32, #tpu.memory_space<vmem>>, %arg8: memref<128x128xf32, #tpu.memory_space<vmem>>, %arg9: memref<128x128xf32, #tpu.memory_space<vmem>>, %arg10: memref<1x128xf32, #tpu.memory_space<vmem>>, %arg11: memref<128x512xf32, #tpu.memory_space<vmem>>, %arg12: memref<256x128xf32, #tpu.memory_space<vmem>>, %arg13: memref<1x8x128xf32, #tpu.memory_space<vmem>>, %arg14: memref<8x128xf32, #tpu.memory_space<vmem>>) attributes {dimension_semantics = [#tpu.dimension_semantics<parallel>, #tpu.dimension_semantics<parallel>, #tpu.dimension_semantics<arbitrary>], iteration_bounds = array<i64: 2, 2, 2>, scalar_prefetch = 0 : i64, scratch_operands = 1 : i64, tpu.core_type = #tpu.core_type<tc>, window_params = [{transform_indices = @transform_0, window_bounds = array<i64: 1, 8, 128>}, {transform_indices = @transform_1, window_bounds = array<i64: 1, 8, 128>}, {pipeline_mode = #tpu.pipeline_mode<synchronous>, transform_indices = @transform_2, window_bounds = array<i64: 1, 128>}, {pipeline_mode = #tpu.pipeline_mode<synchronous>, transform_indices = @transform_3, window_bounds = array<i64: 1, 128>}, {pipeline_mode = #tpu.pipeline_mode<synchronous>, transform_indices = @transform_4, window_bounds = array<i64: 128, 128>}, {pipeline_mode = #tpu.pipeline_mode<synchronous>, transform_indices = @transform_5, window_bounds = array<i64: 128, 128>}, {pipeline_mode = #tpu.pipeline_mode<synchronous>, transform_indices = @transform_6, window_bounds = array<i64: 128, 128>}, {pipeline_mode = #tpu.pipeline_mode<synchronous>, transform_indices = @transform_7, window_bounds = array<i64: 1, 128>}, {pipeline_mode = #tpu.pipeline_mode<synchronous>, transform_indices = @transform_8, window_bounds = array<i64: 128, 512>}, {pipeline_mode = #tpu.pipeline_mode<synchronous>, transform_indices = @transform_9, window_bounds = array<i64: 256, 128>}, {transform_indices = @transform_10, window_bounds = array<i64: 1, 8, 128>}]} {
    %c0_i32 = arith.constant 0 : i32
    %0 = arith.cmpi eq, %arg2, %c0_i32 : i32
    %1 = arith.extui %0 : i1 to i32
    %c0_i32_0 = arith.constant 0 : i32
    %2 = arith.cmpi ne, %1, %c0_i32_0 : i32
    scf.if %2 {
      %cst = arith.constant 0.000000e+00 : f32
      %9 = vector.broadcast %cst : f32 to vector<8x128xf32>
      %c0 = arith.constant 0 : index
      %c0_3 = arith.constant 0 : index
      %10 = vector.load %arg14[%c0, %c0_3] : memref<8x128xf32, #tpu.memory_space<vmem>>, vector<8x128xf32>
      tpu.vector_store %arg14[%c0, %c0_3], %9 {strides = array<i32>} : memref<8x128xf32, #tpu.memory_space<vmem>>, vector<8x128xf32>,
    } else {
    }
    %3 = arith.cmpi sle, %arg2, %arg1 : i32
    %4 = arith.extui %3 : i1 to i32
    %c0_i32_1 = arith.constant 0 : i32
    %5 = arith.cmpi ne, %4, %c0_i32_1 : i32
    scf.if %5 {
      %c0 = arith.constant 0 : index
      %c0_3 = arith.constant 0 : index
      %c0_4 = arith.constant 0 : index
      %9 = vector.load %arg4[%c0, %c0_3, %c0_4] : memref<1x8x128xf32, #tpu.memory_space<vmem>>, vector<1x8x128xf32>
      %10 = vector.shape_cast %9 : vector<1x8x128xf32> to vector<8x128xf32>
      %c0_5 = arith.constant 0 : index
      %c0_6 = arith.constant 0 : index
      %11 = vector.load %arg5[%c0_5, %c0_6] : memref<1x128xf32, #tpu.memory_space<vmem>>, vector<1x128xf32>
      %12 = arith.mulf %10, %10 : vector<8x128xf32>
      %cst = arith.constant dense<0.000000e+00> : vector<8xf32>
      %13 = vector.multi_reduction <add>, %12, %cst [1] : vector<8x128xf32> to vector<8xf32>
      %14 = vector.shape_cast %13 : vector<8xf32> to vector<8x1xf32>
      %cst_7 = arith.constant 1.280000e+02 : f32
      %15 = vector.broadcast %cst_7 : f32 to vector<8x1xf32>
      %16 = arith.divf %14, %15 : vector<8x1xf32>
      %cst_8 = arith.constant 9.99999997E-7 : f32
      %17 = vector.broadcast %cst_8 : f32 to vector<8x1xf32>
      %18 = arith.addf %16, %17 : vector<8x1xf32>
      %19 = math.rsqrt %18 : vector<8x1xf32>
      %20 = vector.broadcast %19 : vector<8x1xf32> to vector<8x128xf32>
      %21 = arith.mulf %10, %20 : vector<8x128xf32>
      %22 = vector.broadcast %11 : vector<1x128xf32> to vector<8x128xf32>
      %23 = arith.mulf %21, %22 : vector<8x128xf32>
      %c0_9 = arith.constant 0 : index
      %c0_10 = arith.constant 0 : index
      %24 = vector.load %arg6[%c0_9, %c0_10] : memref<1x128xf32, #tpu.memory_space<vmem>>, vector<1x128xf32>
      %25 = vector.broadcast %24 : vector<1x128xf32> to vector<8x128xf32>
      %26 = arith.mulf %23, %25 : vector<8x128xf32>
      %cst_11 = arith.constant dense<0.000000e+00> : vector<8xf32>
      %27 = vector.multi_reduction <add>, %26, %cst_11 [1] : vector<8x128xf32> to vector<8xf32>
      %28 = vector.shape_cast %27 : vector<8xf32> to vector<8x1xf32>
      %cst_12 = arith.constant 0.000000e+00 : f32
      %29 = vector.broadcast %cst_12 : f32 to vector<8x1xf32>
      %30 = arith.cmpf oge, %28, %29 : vector<8x1xf32>
      %cst_13 = arith.constant 0.000000e+00 : f32
      %31 = vector.broadcast %cst_13 : f32 to vector<8x1xf32>
      %32 = arith.subf %31, %28 : vector<8x1xf32>
      %33 = math.exp %32 : vector<8x1xf32>
      %cst_14 = arith.constant 1.000000e+00 : f32
      %34 = vector.broadcast %cst_14 : f32 to vector<8x1xf32>
      %35 = arith.addf %34, %33 : vector<8x1xf32>
      %36 = math.log %35 : vector<8x1xf32>
      %cst_15 = arith.constant 0.000000e+00 : f32
      %37 = vector.broadcast %cst_15 : f32 to vector<8x1xf32>
      %38 = arith.subf %37, %36 : vector<8x1xf32>
      %39 = math.exp %28 : vector<8x1xf32>
      %cst_16 = arith.constant 1.000000e+00 : f32
      %40 = vector.broadcast %cst_16 : f32 to vector<8x1xf32>
      %41 = arith.addf %40, %39 : vector<8x1xf32>
      %42 = math.log %41 : vector<8x1xf32>
      %43 = arith.subf %28, %42 : vector<8x1xf32>
      %44 = arith.select %30, %38, %43 : vector<8x1xi1>, vector<8x1xf32>
      %45 = vector.shape_cast %44 : vector<8x1xf32> to vector<1x8xf32>
      %46 = tpu.iota {dimensions = array<i32: 0>} : vector<8x8xi32>
      %c8_i32 = arith.constant 8 : i32
      %47 = arith.muli %arg1, %c8_i32 : i32
      %48 = vector.broadcast %47 : i32 to vector<8x8xi32>
      %49 = arith.addi %46, %48 : vector<8x8xi32>
      %50 = tpu.iota {dimensions = array<i32: 1>} : vector<8x8xi32>
      %51 = arith.subi %49, %50 : vector<8x8xi32>
      %c8_i32_17 = arith.constant 8 : i32
      %52 = arith.muli %arg2, %c8_i32_17 : i32
      %53 = vector.broadcast %52 : i32 to vector<8x8xi32>
      %54 = arith.subi %51, %53 : vector<8x8xi32>
      %c0_i32_18 = arith.constant 0 : i32
      %55 = vector.broadcast %c0_i32_18 : i32 to vector<8x8xi32>
      %56 = arith.cmpi sge, %54, %55 : vector<8x8xi32>
      %57 = arith.sitofp %54 : vector<8x8xi32> to vector<8x8xf32>
      %58 = vector.broadcast %45 : vector<1x8xf32> to vector<8x8xf32>
      %59 = arith.mulf %58, %57 : vector<8x8xf32>
      %60 = math.exp %59 : vector<8x8xf32>
      %cst_19 = arith.constant 0.000000e+00 : f32
      %61 = vector.broadcast %cst_19 : f32 to vector<8x8xf32>
      %62 = arith.select %56, %60, %61 : vector<8x8xi1>, vector<8x8xf32>
      %c0_20 = arith.constant 0 : index
      %c0_21 = arith.constant 0 : index
      %63 = vector.load %arg14[%c0_20, %c0_21] : memref<8x128xf32, #tpu.memory_space<vmem>>, vector<8x128xf32>
      %cst_22 = arith.constant dense<0.000000e+00> : vector<8x128xf32>
      %64 = tpu.matmul %62, %23, %cst_22 {dimension_numbers = #tpu.dot_dimension_numbers<[1], [0], [0], [1], [0, 0, 1, 1], [], []>} : vector<8x8xf32>, vector<8x128xf32>, vector<8x128xf32> -> vector<8x128xf32>
      %65 = arith.addf %63, %64 : vector<8x128xf32>
      %c0_23 = arith.constant 0 : index
      %c0_24 = arith.constant 0 : index
      %66 = vector.load %arg14[%c0_23, %c0_24] : memref<8x128xf32, #tpu.memory_space<vmem>>, vector<8x128xf32>
      tpu.vector_store %arg14[%c0_23, %c0_24], %65 {strides = array<i32>} : memref<8x128xf32, #tpu.memory_space<vmem>>, vector<8x128xf32>,
    } else {
    }
    %c1_i32 = arith.constant 1 : i32
    %6 = arith.cmpi eq, %arg2, %c1_i32 : i32
    %7 = arith.extui %6 : i1 to i32
    %c0_i32_2 = arith.constant 0 : i32
    %8 = arith.cmpi ne, %7, %c0_i32_2 : i32
    scf.if %8 {
      %c0 = arith.constant 0 : index
      %c0_3 = arith.constant 0 : index
      %c0_4 = arith.constant 0 : index
      %9 = vector.load %arg3[%c0, %c0_3, %c0_4] : memref<1x8x128xf32, #tpu.memory_space<vmem>>, vector<1x8x128xf32>
      %10 = vector.shape_cast %9 : vector<1x8x128xf32> to vector<8x128xf32>
      %c0_5 = arith.constant 0 : index
      %c0_6 = arith.constant 0 : index
      %11 = vector.load %arg5[%c0_5, %c0_6] : memref<1x128xf32, #tpu.memory_space<vmem>>, vector<1x128xf32>
      %12 = arith.mulf %10, %10 : vector<8x128xf32>
      %cst = arith.constant dense<0.000000e+00> : vector<8xf32>
      %13 = vector.multi_reduction <add>, %12, %cst [1] : vector<8x128xf32> to vector<8xf32>
      %14 = vector.shape_cast %13 : vector<8xf32> to vector<8x1xf32>
      %cst_7 = arith.constant 1.280000e+02 : f32
      %15 = vector.broadcast %cst_7 : f32 to vector<8x1xf32>
      %16 = arith.divf %14, %15 : vector<8x1xf32>
      %cst_8 = arith.constant 9.99999997E-7 : f32
      %17 = vector.broadcast %cst_8 : f32 to vector<8x1xf32>
      %18 = arith.addf %16, %17 : vector<8x1xf32>
      %19 = math.rsqrt %18 : vector<8x1xf32>
      %20 = vector.broadcast %19 : vector<8x1xf32> to vector<8x128xf32>
      %21 = arith.mulf %10, %20 : vector<8x128xf32>
      %22 = vector.broadcast %11 : vector<1x128xf32> to vector<8x128xf32>
      %23 = arith.mulf %21, %22 : vector<8x128xf32>
      %c0_9 = arith.constant 0 : index
      %c0_10 = arith.constant 0 : index
      %24 = vector.load %arg14[%c0_9, %c0_10] : memref<8x128xf32, #tpu.memory_space<vmem>>, vector<8x128xf32>
      %c0_11 = arith.constant 0 : index
      %c0_12 = arith.constant 0 : index
      %25 = vector.load %arg7[%c0_11, %c0_12] : memref<128x128xf32, #tpu.memory_space<vmem>>, vector<128x128xf32>
      %cst_13 = arith.constant dense<0.000000e+00> : vector<8x128xf32>
      %26 = tpu.matmul %24, %25, %cst_13 {dimension_numbers = #tpu.dot_dimension_numbers<[1], [0], [0], [1], [0, 0, 1, 1], [], []>} : vector<8x128xf32>, vector<128x128xf32>, vector<8x128xf32> -> vector<8x128xf32>
      %c0_14 = arith.constant 0 : index
      %c0_15 = arith.constant 0 : index
      %27 = vector.load %arg8[%c0_14, %c0_15] : memref<128x128xf32, #tpu.memory_space<vmem>>, vector<128x128xf32>
      %cst_16 = arith.constant dense<0.000000e+00> : vector<8x128xf32>
      %28 = tpu.matmul %23, %27, %cst_16 {dimension_numbers = #tpu.dot_dimension_numbers<[1], [0], [0], [1], [0, 0, 1, 1], [], []>} : vector<8x128xf32>, vector<128x128xf32>, vector<8x128xf32> -> vector<8x128xf32>
      %29 = arith.negf %26 : vector<8x128xf32>
      %30 = math.exp %29 : vector<8x128xf32>
      %cst_17 = arith.constant 1.000000e+00 : f32
      %31 = vector.broadcast %cst_17 : f32 to vector<8x128xf32>
      %32 = arith.addf %31, %30 : vector<8x128xf32>
      %33 = arith.divf %31, %32 : vector<8x128xf32>
      %34 = arith.mulf %26, %33 : vector<8x128xf32>
      %c0_18 = arith.constant 0 : index
      %c0_19 = arith.constant 0 : index
      %35 = vector.load %arg9[%c0_18, %c0_19] : memref<128x128xf32, #tpu.memory_space<vmem>>, vector<128x128xf32>
      %cst_20 = arith.constant dense<0.000000e+00> : vector<8x128xf32>
      %36 = tpu.matmul %34, %35, %cst_20 {dimension_numbers = #tpu.dot_dimension_numbers<[1], [0], [0], [1], [0, 0, 1, 1], [], []>} : vector<8x128xf32>, vector<128x128xf32>, vector<8x128xf32> -> vector<8x128xf32>
      %37 = arith.mulf %36, %28 : vector<8x128xf32>
      %38 = arith.addf %10, %37 : vector<8x128xf32>
      %c0_21 = arith.constant 0 : index
      %c0_22 = arith.constant 0 : index
      %39 = vector.load %arg10[%c0_21, %c0_22] : memref<1x128xf32, #tpu.memory_space<vmem>>, vector<1x128xf32>
      %40 = arith.mulf %38, %38 : vector<8x128xf32>
      %cst_23 = arith.constant dense<0.000000e+00> : vector<8xf32>
      %41 = vector.multi_reduction <add>, %40, %cst_23 [1] : vector<8x128xf32> to vector<8xf32>
      %42 = vector.shape_cast %41 : vector<8xf32> to vector<8x1xf32>
      %cst_24 = arith.constant 1.280000e+02 : f32
      %43 = vector.broadcast %cst_24 : f32 to vector<8x1xf32>
      %44 = arith.divf %42, %43 : vector<8x1xf32>
      %cst_25 = arith.constant 9.99999997E-7 : f32
      %45 = vector.broadcast %cst_25 : f32 to vector<8x1xf32>
      %46 = arith.addf %44, %45 : vector<8x1xf32>
      %47 = math.rsqrt %46 : vector<8x1xf32>
      %48 = vector.broadcast %47 : vector<8x1xf32> to vector<8x128xf32>
      %49 = arith.mulf %38, %48 : vector<8x128xf32>
      %50 = vector.broadcast %39 : vector<1x128xf32> to vector<8x128xf32>
      %51 = arith.mulf %49, %50 : vector<8x128xf32>
      %c0_26 = arith.constant 0 : index
      %c0_27 = arith.constant 0 : index
      %52 = vector.load %arg11[%c0_26, %c0_27] : memref<128x512xf32, #tpu.memory_space<vmem>>, vector<128x512xf32>
      %cst_28 = arith.constant dense<0.000000e+00> : vector<8x512xf32>
      %53 = tpu.matmul %51, %52, %cst_28 {dimension_numbers = #tpu.dot_dimension_numbers<[1], [0], [0], [1], [0, 0, 1, 1], [], []>} : vector<8x128xf32>, vector<128x512xf32>, vector<8x512xf32> -> vector<8x512xf32>
      %54 = vector.extract_strided_slice %53 {offsets = [0, 0], sizes = [8, 256], strides = [1, 1]} : vector<8x512xf32> to vector<8x256xf32>
      %55 = vector.extract_strided_slice %53 {offsets = [0, 256], sizes = [8, 256], strides = [1, 1]} : vector<8x512xf32> to vector<8x256xf32>
      %56 = arith.negf %55 : vector<8x256xf32>
      %57 = math.exp %56 : vector<8x256xf32>
      %cst_29 = arith.constant 1.000000e+00 : f32
      %58 = vector.broadcast %cst_29 : f32 to vector<8x256xf32>
      %59 = arith.addf %58, %57 : vector<8x256xf32>
      %60 = arith.divf %58, %59 : vector<8x256xf32>
      %61 = arith.mulf %55, %60 : vector<8x256xf32>
      %62 = arith.mulf %54, %61 : vector<8x256xf32>
      %c0_30 = arith.constant 0 : index
      %c0_31 = arith.constant 0 : index
      %63 = vector.load %arg12[%c0_30, %c0_31] : memref<256x128xf32, #tpu.memory_space<vmem>>, vector<256x128xf32>
      %cst_32 = arith.constant dense<0.000000e+00> : vector<8x128xf32>
      %64 = tpu.matmul %62, %63, %cst_32 {dimension_numbers = #tpu.dot_dimension_numbers<[1], [0], [0], [1], [0, 0, 1, 1], [], []>} : vector<8x256xf32>, vector<256x128xf32>, vector<8x128xf32> -> vector<8x128xf32>
      %65 = arith.addf %38, %64 : vector<8x128xf32>
      %c0_33 = arith.constant 0 : index
      %c0_34 = arith.constant 0 : index
      %c0_35 = arith.constant 0 : index
      %66 = vector.load %arg13[%c0_33, %c0_34, %c0_35] : memref<1x8x128xf32, #tpu.memory_space<vmem>>, vector<1x8x128xf32>
      %67 = vector.shape_cast %66 : vector<1x8x128xf32> to vector<8x128xf32>
      %68 = vector.shape_cast %65 : vector<8x128xf32> to vector<1x8x128xf32>
      tpu.vector_store %arg13[%c0_33, %c0_34, %c0_35], %68 {strides = array<i32>} : memref<1x8x128xf32, #tpu.memory_space<vmem>>, vector<1x8x128xf32>,
    } else {
    }
    return
  }
  func.func @transform_0(%arg0: i32, %arg1: i32, %arg2: i32) -> (i32, i32, i32) {
    %c0_i32 = arith.constant 0 : i32
    %c0_i32_0 = arith.constant 0 : i32
    return %arg0, %arg1, %c0_i32 : i32, i32, i32
  }
  func.func @transform_1(%arg0: i32, %arg1: i32, %arg2: i32) -> (i32, i32, i32) {
    %c0_i32 = arith.constant 0 : i32
    %c0_i32_0 = arith.constant 0 : i32
    return %arg0, %arg2, %c0_i32 : i32, i32, i32
  }
  func.func @transform_2(%arg0: i32, %arg1: i32, %arg2: i32) -> (i32, i32) {
    %c0_i32 = arith.constant 0 : i32
    %c0_i32_0 = arith.constant 0 : i32
    %c0_i32_1 = arith.constant 0 : i32
    return %c0_i32, %c0_i32_0 : i32, i32
  }
  func.func @transform_3(%arg0: i32, %arg1: i32, %arg2: i32) -> (i32, i32) {
    %c0_i32 = arith.constant 0 : i32
    %c0_i32_0 = arith.constant 0 : i32
    %c0_i32_1 = arith.constant 0 : i32
    return %c0_i32, %c0_i32_0 : i32, i32
  }
  func.func @transform_4(%arg0: i32, %arg1: i32, %arg2: i32) -> (i32, i32) {
    %c0_i32 = arith.constant 0 : i32
    %c0_i32_0 = arith.constant 0 : i32
    %c0_i32_1 = arith.constant 0 : i32
    return %c0_i32, %c0_i32_0 : i32, i32
  }
  func.func @transform_5(%arg0: i32, %arg1: i32, %arg2: i32) -> (i32, i32) {
    %c0_i32 = arith.constant 0 : i32
    %c0_i32_0 = arith.constant 0 : i32
    %c0_i32_1 = arith.constant 0 : i32
    return %c0_i32, %c0_i32_0 : i32, i32
  }
  func.func @transform_6(%arg0: i32, %arg1: i32, %arg2: i32) -> (i32, i32) {
    %c0_i32 = arith.constant 0 : i32
    %c0_i32_0 = arith.constant 0 : i32
    %c0_i32_1 = arith.constant 0 : i32
    return %c0_i32, %c0_i32_0 : i32, i32
  }
  func.func @transform_7(%arg0: i32, %arg1: i32, %arg2: i32) -> (i32, i32) {
    %c0_i32 = arith.constant 0 : i32
    %c0_i32_0 = arith.constant 0 : i32
    %c0_i32_1 = arith.constant 0 : i32
    return %c0_i32, %c0_i32_0 : i32, i32
  }
  func.func @transform_8(%arg0: i32, %arg1: i32, %arg2: i32) -> (i32, i32) {
    %c0_i32 = arith.constant 0 : i32
    %c0_i32_0 = arith.constant 0 : i32
    %c0_i32_1 = arith.constant 0 : i32
    return %c0_i32, %c0_i32_0 : i32, i32
  }
  func.func @transform_9(%arg0: i32, %arg1: i32, %arg2: i32) -> (i32, i32) {
    %c0_i32 = arith.constant 0 : i32
    %c0_i32_0 = arith.constant 0 : i32
    %c0_i32_1 = arith.constant 0 : i32
    return %c0_i32, %c0_i32_0 : i32, i32
  }
  func.func @transform_10(%arg0: i32, %arg1: i32, %arg2: i32) -> (i32, i32, i32) {
    %c0_i32 = arith.constant 0 : i32
    %c0_i32_0 = arith.constant 0 : i32
    return %arg0, %arg1, %c0_i32 : i32, i32, i32
  }
}

module attributes {stable_mosaic.version = 11 : i64} {
  func.func @_ted_kernel(%arg0: i32, %arg1: i32, %arg2: i32, %arg3: memref<1x8x128xf32, #tpu.memory_space<vmem>>, %arg4: memref<1x8x128xf32, #tpu.memory_space<vmem>>, %arg5: memref<1x128xf32, #tpu.memory_space<vmem>>, %arg6: memref<1x128xf32, #tpu.memory_space<vmem>>, %arg7: memref<128x128xf32, #tpu.memory_space<vmem>>, %arg8: memref<128x128xf32, #tpu.memory_space<vmem>>, %arg9: memref<128x128xf32, #tpu.memory_space<vmem>>, %arg10: memref<1x128xf32, #tpu.memory_space<vmem>>, %arg11: memref<128x512xf32, #tpu.memory_space<vmem>>, %arg12: memref<256x128xf32, #tpu.memory_space<vmem>>, %arg13: memref<1x8x128xf32, #tpu.memory_space<vmem>>, %arg14: memref<8x128xf32, #tpu.memory_space<vmem>>) attributes {dimension_semantics = [#tpu.dimension_semantics<parallel>, #tpu.dimension_semantics<parallel>, #tpu.dimension_semantics<arbitrary>], iteration_bounds = array<i64: 2, 2, 2>, scalar_prefetch = 0 : i64, scratch_operands = 1 : i64, tpu.core_type = #tpu.core_type<tc>, window_params = [{transform_indices = @transform_0, window_bounds = array<i64: 1, 8, 128>}, {transform_indices = @transform_1, window_bounds = array<i64: 1, 8, 128>}, {pipeline_mode = #tpu.pipeline_mode<synchronous>, transform_indices = @transform_2, window_bounds = array<i64: 1, 128>}, {pipeline_mode = #tpu.pipeline_mode<synchronous>, transform_indices = @transform_3, window_bounds = array<i64: 1, 128>}, {pipeline_mode = #tpu.pipeline_mode<synchronous>, transform_indices = @transform_4, window_bounds = array<i64: 128, 128>}, {pipeline_mode = #tpu.pipeline_mode<synchronous>, transform_indices = @transform_5, window_bounds = array<i64: 128, 128>}, {pipeline_mode = #tpu.pipeline_mode<synchronous>, transform_indices = @transform_6, window_bounds = array<i64: 128, 128>}, {pipeline_mode = #tpu.pipeline_mode<synchronous>, transform_indices = @transform_7, window_bounds = array<i64: 1, 128>}, {pipeline_mode = #tpu.pipeline_mode<synchronous>, transform_indices = @transform_8, window_bounds = array<i64: 128, 512>}, {pipeline_mode = #tpu.pipeline_mode<synchronous>, transform_indices = @transform_9, window_bounds = array<i64: 256, 128>}, {transform_indices = @transform_10, window_bounds = array<i64: 1, 8, 128>}]} {
    %c0_i32 = arith.constant 0 : i32
    %0 = arith.cmpi eq, %arg2, %c0_i32 : i32
    %1 = arith.extui %0 : i1 to i32
    %c0_i32_0 = arith.constant 0 : i32
    %2 = arith.cmpi ne, %1, %c0_i32_0 : i32
    scf.if %2 {
      %cst = arith.constant 0.000000e+00 : f32
      %9 = vector.broadcast %cst : f32 to vector<8x128xf32>
      %c0 = arith.constant 0 : index
      %c0_3 = arith.constant 0 : index
      %10 = vector.load %arg14[%c0, %c0_3] : memref<8x128xf32, #tpu.memory_space<vmem>>, vector<8x128xf32>
      tpu.vector_store %arg14[%c0, %c0_3], %9 {strides = array<i32>} : memref<8x128xf32, #tpu.memory_space<vmem>>, vector<8x128xf32>,
    } else {
    }
    %3 = arith.cmpi sle, %arg2, %arg1 : i32
    %4 = arith.extui %3 : i1 to i32
    %c0_i32_1 = arith.constant 0 : i32
    %5 = arith.cmpi ne, %4, %c0_i32_1 : i32
    scf.if %5 {
      %c0 = arith.constant 0 : index
      %c0_3 = arith.constant 0 : index
      %c0_4 = arith.constant 0 : index
      %9 = vector.load %arg4[%c0, %c0_3, %c0_4] : memref<1x8x128xf32, #tpu.memory_space<vmem>>, vector<1x8x128xf32>
      %10 = vector.shape_cast %9 : vector<1x8x128xf32> to vector<8x128xf32>
      %c0_5 = arith.constant 0 : index
      %c0_6 = arith.constant 0 : index
      %11 = vector.load %arg5[%c0_5, %c0_6] : memref<1x128xf32, #tpu.memory_space<vmem>>, vector<1x128xf32>
      %12 = arith.mulf %10, %10 : vector<8x128xf32>
      %cst = arith.constant dense<0.000000e+00> : vector<8xf32>
      %13 = vector.multi_reduction <add>, %12, %cst [1] : vector<8x128xf32> to vector<8xf32>
      %14 = vector.shape_cast %13 : vector<8xf32> to vector<8x1xf32>
      %cst_7 = arith.constant 1.280000e+02 : f32
      %15 = vector.broadcast %cst_7 : f32 to vector<8x1xf32>
      %16 = arith.divf %14, %15 : vector<8x1xf32>
      %cst_8 = arith.constant 9.99999997E-7 : f32
      %17 = vector.broadcast %cst_8 : f32 to vector<8x1xf32>
      %18 = arith.addf %16, %17 : vector<8x1xf32>
      %19 = math.rsqrt %18 : vector<8x1xf32>
      %20 = vector.broadcast %19 : vector<8x1xf32> to vector<8x128xf32>
      %21 = arith.mulf %10, %20 : vector<8x128xf32>
      %22 = vector.broadcast %11 : vector<1x128xf32> to vector<8x128xf32>
      %23 = arith.mulf %21, %22 : vector<8x128xf32>
      %c0_9 = arith.constant 0 : index
      %c0_10 = arith.constant 0 : index
      %24 = vector.load %arg6[%c0_9, %c0_10] : memref<1x128xf32, #tpu.memory_space<vmem>>, vector<1x128xf32>
      %25 = vector.broadcast %24 : vector<1x128xf32> to vector<8x128xf32>
      %26 = arith.mulf %23, %25 : vector<8x128xf32>
      %cst_11 = arith.constant dense<0.000000e+00> : vector<8xf32>
      %27 = vector.multi_reduction <add>, %26, %cst_11 [1] : vector<8x128xf32> to vector<8xf32>
      %28 = vector.shape_cast %27 : vector<8xf32> to vector<8x1xf32>
      %cst_12 = arith.constant 0.000000e+00 : f32
      %29 = vector.broadcast %cst_12 : f32 to vector<8x1xf32>
      %30 = arith.cmpf oge, %28, %29 : vector<8x1xf32>
      %cst_13 = arith.constant 0.000000e+00 : f32
      %31 = vector.broadcast %cst_13 : f32 to vector<8x1xf32>
      %32 = arith.subf %31, %28 : vector<8x1xf32>
      %33 = math.exp %32 : vector<8x1xf32>
      %cst_14 = arith.constant 1.000000e+00 : f32
      %34 = vector.broadcast %cst_14 : f32 to vector<8x1xf32>
      %35 = arith.addf %34, %33 : vector<8x1xf32>
      %36 = math.log %35 : vector<8x1xf32>
      %cst_15 = arith.constant 0.000000e+00 : f32
      %37 = vector.broadcast %cst_15 : f32 to vector<8x1xf32>
      %38 = arith.subf %37, %36 : vector<8x1xf32>
      %39 = math.exp %28 : vector<8x1xf32>
      %cst_16 = arith.constant 1.000000e+00 : f32
      %40 = vector.broadcast %cst_16 : f32 to vector<8x1xf32>
      %41 = arith.addf %40, %39 : vector<8x1xf32>
      %42 = math.log %41 : vector<8x1xf32>
      %43 = arith.subf %28, %42 : vector<8x1xf32>
      %44 = arith.select %30, %38, %43 : vector<8x1xi1>, vector<8x1xf32>
      %45 = vector.shape_cast %44 : vector<8x1xf32> to vector<1x8xf32>
      %46 = tpu.iota {dimensions = array<i32: 0>} : vector<8x8xi32>
      %c8_i32 = arith.constant 8 : i32
      %47 = arith.muli %arg1, %c8_i32 : i32
      %48 = vector.broadcast %47 : i32 to vector<8x8xi32>
      %49 = arith.addi %46, %48 : vector<8x8xi32>
      %50 = tpu.iota {dimensions = array<i32: 1>} : vector<8x8xi32>
      %51 = arith.subi %49, %50 : vector<8x8xi32>
      %c8_i32_17 = arith.constant 8 : i32
      %52 = arith.muli %arg2, %c8_i32_17 : i32
      %53 = vector.broadcast %52 : i32 to vector<8x8xi32>
      %54 = arith.subi %51, %53 : vector<8x8xi32>
      %c0_i32_18 = arith.constant 0 : i32
      %55 = vector.broadcast %c0_i32_18 : i32 to vector<8x8xi32>
      %56 = arith.cmpi sge, %54, %55 : vector<8x8xi32>
      %57 = arith.sitofp %54 : vector<8x8xi32> to vector<8x8xf32>
      %58 = vector.broadcast %45 : vector<1x8xf32> to vector<8x8xf32>
      %59 = arith.mulf %58, %57 : vector<8x8xf32>
      %60 = math.exp %59 : vector<8x8xf32>
      %cst_19 = arith.constant 0.000000e+00 : f32
      %61 = vector.broadcast %cst_19 : f32 to vector<8x8xf32>
      %62 = arith.select %56, %60, %61 : vector<8x8xi1>, vector<8x8xf32>
      %c0_20 = arith.constant 0 : index
      %c0_21 = arith.constant 0 : index
      %63 = vector.load %arg14[%c0_20, %c0_21] : memref<8x128xf32, #tpu.memory_space<vmem>>, vector<8x128xf32>
      %cst_22 = arith.constant dense<0.000000e+00> : vector<8x128xf32>
      %64 = tpu.matmul %62, %23, %cst_22 {dimension_numbers = #tpu.dot_dimension_numbers<[1], [0], [0], [1], [0, 0, 1, 1], [], []>} : vector<8x8xf32>, vector<8x128xf32>, vector<8x128xf32> -> vector<8x128xf32>
      %65 = arith.addf %63, %64 : vector<8x128xf32>
      %c0_23 = arith.constant 0 : index
      %c0_24 = arith.constant 0 : index
      %66 = vector.load %arg14[%c0_23, %c0_24] : memref<8x128xf32, #tpu.memory_space<vmem>>, vector<8x128xf32>
      tpu.vector_store %arg14[%c0_23, %c0_24], %65 {strides = array<i32>} : memref<8x128xf32, #tpu.memory_space<vmem>>, vector<8x128xf32>,
    } else {
    }
    %c1_i32 = arith.constant 1 : i32
    %6 = arith.cmpi eq, %arg2, %c1_i32 : i32
    %7 = arith.extui %6 : i1 to i32
    %c0_i32_2 = arith.constant 0 : i32
    %8 = arith.cmpi ne, %7, %c0_i32_2 : i32
    scf.if %8 {
      %c0 = arith.constant 0 : index
      %c0_3 = arith.constant 0 : index
      %c0_4 = arith.constant 0 : index
      %9 = vector.load %arg3[%c0, %c0_3, %c0_4] : memref<1x8x128xf32, #tpu.memory_space<vmem>>, vector<1x8x128xf32>
      %10 = vector.shape_cast %9 : vector<1x8x128xf32> to vector<8x128xf32>
      %c0_5 = arith.constant 0 : index
      %c0_6 = arith.constant 0 : index
      %11 = vector.load %arg5[%c0_5, %c0_6] : memref<1x128xf32, #tpu.memory_space<vmem>>, vector<1x128xf32>
      %12 = arith.mulf %10, %10 : vector<8x128xf32>
      %cst = arith.constant dense<0.000000e+00> : vector<8xf32>
      %13 = vector.multi_reduction <add>, %12, %cst [1] : vector<8x128xf32> to vector<8xf32>
      %14 = vector.shape_cast %13 : vector<8xf32> to vector<8x1xf32>
      %cst_7 = arith.constant 1.280000e+02 : f32
      %15 = vector.broadcast %cst_7 : f32 to vector<8x1xf32>
      %16 = arith.divf %14, %15 : vector<8x1xf32>
      %cst_8 = arith.constant 9.99999997E-7 : f32
      %17 = vector.broadcast %cst_8 : f32 to vector<8x1xf32>
      %18 = arith.addf %16, %17 : vector<8x1xf32>
      %19 = math.rsqrt %18 : vector<8x1xf32>
      %20 = vector.broadcast %19 : vector<8x1xf32> to vector<8x128xf32>
      %21 = arith.mulf %10, %20 : vector<8x128xf32>
      %22 = vector.broadcast %11 : vector<1x128xf32> to vector<8x128xf32>
      %23 = arith.mulf %21, %22 : vector<8x128xf32>
      %c0_9 = arith.constant 0 : index
      %c0_10 = arith.constant 0 : index
      %24 = vector.load %arg14[%c0_9, %c0_10] : memref<8x128xf32, #tpu.memory_space<vmem>>, vector<8x128xf32>
      %c0_11 = arith.constant 0 : index
      %c0_12 = arith.constant 0 : index
      %25 = vector.load %arg7[%c0_11, %c0_12] : memref<128x128xf32, #tpu.memory_space<vmem>>, vector<128x128xf32>
      %cst_13 = arith.constant dense<0.000000e+00> : vector<8x128xf32>
      %26 = tpu.matmul %24, %25, %cst_13 {dimension_numbers = #tpu.dot_dimension_numbers<[1], [0], [0], [1], [0, 0, 1, 1], [], []>} : vector<8x128xf32>, vector<128x128xf32>, vector<8x128xf32> -> vector<8x128xf32>
      %c0_14 = arith.constant 0 : index
      %c0_15 = arith.constant 0 : index
      %27 = vector.load %arg8[%c0_14, %c0_15] : memref<128x128xf32, #tpu.memory_space<vmem>>, vector<128x128xf32>
      %cst_16 = arith.constant dense<0.000000e+00> : vector<8x128xf32>
      %28 = tpu.matmul %23, %27, %cst_16 {dimension_numbers = #tpu.dot_dimension_numbers<[1], [0], [0], [1], [0, 0, 1, 1], [], []>} : vector<8x128xf32>, vector<128x128xf32>, vector<8x128xf32> -> vector<8x128xf32>
      %29 = arith.negf %26 : vector<8x128xf32>
      %30 = math.exp %29 : vector<8x128xf32>
      %cst_17 = arith.constant 1.000000e+00 : f32
      %31 = vector.broadcast %cst_17 : f32 to vector<8x128xf32>
      %32 = arith.addf %31, %30 : vector<8x128xf32>
      %33 = arith.divf %31, %32 : vector<8x128xf32>
      %34 = arith.mulf %26, %33 : vector<8x128xf32>
      %c0_18 = arith.constant 0 : index
      %c0_19 = arith.constant 0 : index
      %35 = vector.load %arg9[%c0_18, %c0_19] : memref<128x128xf32, #tpu.memory_space<vmem>>, vector<128x128xf32>
      %cst_20 = arith.constant dense<0.000000e+00> : vector<8x128xf32>
      %36 = tpu.matmul %34, %35, %cst_20 {dimension_numbers = #tpu.dot_dimension_numbers<[1], [0], [0], [1], [0, 0, 1, 1], [], []>} : vector<8x128xf32>, vector<128x128xf32>, vector<8x128xf32> -> vector<8x128xf32>
      %37 = arith.mulf %36, %28 : vector<8x128xf32>
      %38 = arith.addf %10, %37 : vector<8x128xf32>
      %c0_21 = arith.constant 0 : index
      %c0_22 = arith.constant 0 : index
      %39 = vector.load %arg10[%c0_21, %c0_22] : memref<1x128xf32, #tpu.memory_space<vmem>>, vector<1x128xf32>
      %40 = arith.mulf %38, %38 : vector<8x128xf32>
      %cst_23 = arith.constant dense<0.000000e+00> : vector<8xf32>
      %41 = vector.multi_reduction <add>, %40, %cst_23 [1] : vector<8x128xf32> to vector<8xf32>
      %42 = vector.shape_cast %41 : vector<8xf32> to vector<8x1xf32>
      %cst_24 = arith.constant 1.280000e+02 : f32
      %43 = vector.broadcast %cst_24 : f32 to vector<8x1xf32>
      %44 = arith.divf %42, %43 : vector<8x1xf32>
      %cst_25 = arith.constant 9.99999997E-7 : f32
      %45 = vector.broadcast %cst_25 : f32 to vector<8x1xf32>
      %46 = arith.addf %44, %45 : vector<8x1xf32>
      %47 = math.rsqrt %46 : vector<8x1xf32>
      %48 = vector.broadcast %47 : vector<8x1xf32> to vector<8x128xf32>
      %49 = arith.mulf %38, %48 : vector<8x128xf32>
      %50 = vector.broadcast %39 : vector<1x128xf32> to vector<8x128xf32>
      %51 = arith.mulf %49, %50 : vector<8x128xf32>
      %c0_26 = arith.constant 0 : index
      %c0_27 = arith.constant 0 : index
      %52 = vector.load %arg11[%c0_26, %c0_27] : memref<128x512xf32, #tpu.memory_space<vmem>>, vector<128x512xf32>
      %cst_28 = arith.constant dense<0.000000e+00> : vector<8x512xf32>
      %53 = tpu.matmul %51, %52, %cst_28 {dimension_numbers = #tpu.dot_dimension_numbers<[1], [0], [0], [1], [0, 0, 1, 1], [], []>} : vector<8x128xf32>, vector<128x512xf32>, vector<8x512xf32> -> vector<8x512xf32>
      %54 = vector.extract_strided_slice %53 {offsets = [0, 0], sizes = [8, 256], strides = [1, 1]} : vector<8x512xf32> to vector<8x256xf32>
      %55 = vector.extract_strided_slice %53 {offsets = [0, 256], sizes = [8, 256], strides = [1, 1]} : vector<8x512xf32> to vector<8x256xf32>
      %56 = arith.negf %55 : vector<8x256xf32>
      %57 = math.exp %56 : vector<8x256xf32>
      %cst_29 = arith.constant 1.000000e+00 : f32
      %58 = vector.broadcast %cst_29 : f32 to vector<8x256xf32>
      %59 = arith.addf %58, %57 : vector<8x256xf32>
      %60 = arith.divf %58, %59 : vector<8x256xf32>
      %61 = arith.mulf %55, %60 : vector<8x256xf32>
      %62 = arith.mulf %54, %61 : vector<8x256xf32>
      %c0_30 = arith.constant 0 : index
      %c0_31 = arith.constant 0 : index
      %63 = vector.load %arg12[%c0_30, %c0_31] : memref<256x128xf32, #tpu.memory_space<vmem>>, vector<256x128xf32>
      %cst_32 = arith.constant dense<0.000000e+00> : vector<8x128xf32>
      %64 = tpu.matmul %62, %63, %cst_32 {dimension_numbers = #tpu.dot_dimension_numbers<[1], [0], [0], [1], [0, 0, 1, 1], [], []>} : vector<8x256xf32>, vector<256x128xf32>, vector<8x128xf32> -> vector<8x128xf32>
      %65 = arith.addf %38, %64 : vector<8x128xf32>
      %c0_33 = arith.constant 0 : index
      %c0_34 = arith.constant 0 : index
      %c0_35 = arith.constant 0 : index
      %66 = vector.load %arg13[%c0_33, %c0_34, %c0_35] : memref<1x8x128xf32, #tpu.memory_space<vmem>>, vector<1x8x128xf32>
      %67 = vector.shape_cast %66 : vector<1x8x128xf32> to vector<8x128xf32>
      %68 = vector.shape_cast %65 : vector<8x128xf32> to vector<1x8x128xf32>
      tpu.vector_store %arg13[%c0_33, %c0_34, %c0_35], %68 {strides = array<i32>} : memref<1x8x128xf32, #tpu.memory_space<vmem>>, vector<1x8x128xf32>,
    } else {
    }
    return
  }
  func.func @transform_0(%arg0: i32, %arg1: i32, %arg2: i32) -> (i32, i32, i32) {
    %c0_i32 = arith.constant 0 : i32
    %c0_i32_0 = arith.constant 0 : i32
    return %arg0, %arg1, %c0_i32 : i32, i32, i32
  }
  func.func @transform_1(%arg0: i32, %arg1: i32, %arg2: i32) -> (i32, i32, i32) {
    %c0_i32 = arith.constant 0 : i32
    %c0_i32_0 = arith.constant 0 : i32
    return %arg0, %arg2, %c0_i32 : i32, i32, i32
  }
  func.func @transform_2(%arg0: i32, %arg1: i32, %arg2: i32) -> (i32, i32) {
    %c0_i32 = arith.constant 0 : i32
    %c0_i32_0 = arith.constant 0 : i32
    %c0_i32_1 = arith.constant 0 : i32
    return %c0_i32, %c0_i32_0 : i32, i32
  }
  func.func @transform_3(%arg0: i32, %arg1: i32, %arg2: i32) -> (i32, i32) {
    %c0_i32 = arith.constant 0 : i32
    %c0_i32_0 = arith.constant 0 : i32
    %c0_i32_1 = arith.constant 0 : i32
    return %c0_i32, %c0_i32_0 : i32, i32
  }
  func.func @transform_4(%arg0: i32, %arg1: i32, %arg2: i32) -> (i32, i32) {
    %c0_i32 = arith.constant 0 : i32
    %c0_i32_0 = arith.constant 0 : i32
    %c0_i32_1 = arith.constant 0 : i32
    return %c0_i32, %c0_i32_0 : i32, i32
  }
  func.func @transform_5(%arg0: i32, %arg1: i32, %arg2: i32) -> (i32, i32) {
    %c0_i32 = arith.constant 0 : i32
    %c0_i32_0 = arith.constant 0 : i32
    %c0_i32_1 = arith.constant 0 : i32
    return %c0_i32, %c0_i32_0 : i32, i32
  }
  func.func @transform_6(%arg0: i32, %arg1: i32, %arg2: i32) -> (i32, i32) {
    %c0_i32 = arith.constant 0 : i32
    %c0_i32_0 = arith.constant 0 : i32
    %c0_i32_1 = arith.constant 0 : i32
    return %c0_i32, %c0_i32_0 : i32, i32
  }
  func.func @transform_7(%arg0: i32, %arg1: i32, %arg2: i32) -> (i32, i32) {
    %c0_i32 = arith.constant 0 : i32
    %c0_i32_0 = arith.constant 0 : i32
    %c0_i32_1 = arith.constant 0 : i32
    return %c0_i32, %c0_i32_0 : i32, i32
  }
  func.func @transform_8(%arg0: i32, %arg1: i32, %arg2: i32) -> (i32, i32) {
    %c0_i32 = arith.constant 0 : i32
    %c0_i32_0 = arith.constant 0 : i32
    %c0_i32_1 = arith.constant 0 : i32
    return %c0_i32, %c0_i32_0 : i32, i32
  }
  func.func @transform_9(%arg0: i32, %arg1: i32, %arg2: i32) -> (i32, i32) {
    %c0_i32 = arith.constant 0 : i32
    %c0_i32_0 = arith.constant 0 : i32
    %c0_i32_1 = arith.constant 0 : i32
    return %c0_i32, %c0_i32_0 : i32, i32
  }
  func.func @transform_10(%arg0: i32, %arg1: i32, %arg2: i32) -> (i32, i32, i32) {
    %c0_i32 = arith.constant 0 : i32
    %c0_i32_0 = arith.constant 0 : i32
    return %arg0, %arg1, %c0_i32 : i32, i32, i32
  }
}

</mosaic_0001>

<llo_original>
// kernel: tpu_custom_call.1
$region0: #{tpu_custom_call.1}
  #allocation0 [shape = 'u32[]', space=smem, size = 0x4, offset = 0x4, fixed_abs, tag = 'smem constant byte address 0x4 - core index']
  #allocation1 [shape = 'u32[72,128]{1,0:T(1,128)}', space=vmem, size = 0x9000, scoped, tag = 'internal scratch']
  #allocation2 [shape = 'f32[8,128]{1,0:T(8,128)}', space=vmem, size = 0x1000, scoped, tag = 'scratch operand']
  %s0 = inlined_call_operand.hbm [shape: f32[2,16,128], index: 0, kind: input, shape index: {}]
  %s1 = inlined_call_operand.hbm [shape: f32[2,16,128], index: 1, kind: input, shape index: {}]
  %s2 = inlined_call_operand.vmem [shape: f32[1,128], index: 2, kind: input, shape index: {}]
  %s3 = inlined_call_operand.vmem [shape: f32[1,128], index: 3, kind: input, shape index: {}]
  %s4 = inlined_call_operand.hbm [shape: f32[128,128], index: 4, kind: input, shape index: {}]
  %s5 = inlined_call_operand.hbm [shape: f32[128,128], index: 5, kind: input, shape index: {}]
  %s6 = inlined_call_operand.hbm [shape: f32[128,128], index: 6, kind: input, shape index: {}]
  %s7 = inlined_call_operand.vmem [shape: f32[1,128], index: 7, kind: input, shape index: {}]
  %s8 = inlined_call_operand.hbm [shape: f32[128,512], index: 8, kind: input, shape index: {}]
  %s9 = inlined_call_operand.hbm [shape: f32[256,128], index: 9, kind: input, shape index: {}]
  %s10 = inlined_call_operand.hbm [shape: f32[2,16,128], index: 10, kind: output, shape index: {}]
  %s11 = sld [smem:[#allocation0]]
  $region113: #{tpu_custom_call.1} parent=0
    _
  %s13 = ssub.s32 1, %s11
  %s14 = scalar_select 0, %s13, %s11
  $region1: #{tpu_custom_call.1} parent=0
    #allocation3 [shape = 'u8[8192]{0}', space=vmem, size = 0x2000, scoped, tag = 'input window, operand 0']
    #allocation4 [shape = 's32[2]{0}', space=sflag, size = 0x8, scoped, tag = 'scoped memory for tpu_custom_call.1']
    #allocation5 [shape = 's32[2]{0}', space=sflag, size = 0x8, scoped, tag = 'scoped memory for tpu_custom_call.1']
    #allocation6 [shape = 'u8[8192]{0}', space=vmem, size = 0x2000, scoped, tag = 'input window, operand 1']
    #allocation7 [shape = 's32[2]{0}', space=sflag, size = 0x8, scoped, tag = 'scoped memory for tpu_custom_call.1']
    #allocation8 [shape = 'u8[65536]{0}', space=vmem, size = 0x10000, scoped, tag = 'input window, operand 4, single buffered']
    #allocation9 [shape = 'u8[65536]{0}', space=vmem, size = 0x10000, scoped, tag = 'input window, operand 5, single buffered']
    #allocation10 [shape = 's32[1]{0}', space=sflag, size = 0x4, scoped, tag = 'scoped memory for tpu_custom_call.1']
    #allocation11 [shape = 'u8[65536]{0}', space=vmem, size = 0x10000, scoped, tag = 'input window, operand 6, single buffered']
    #allocation12 [shape = 'u8[262144]{0}', space=vmem, size = 0x40000, scoped, tag = 'input window, operand 8, single buffered']
    #allocation13 [shape = 's32[1]{0}', space=sflag, size = 0x4, scoped, tag = 'scoped memory for tpu_custom_call.1']
    #allocation14 [shape = 'u8[131072]{0}', space=vmem, size = 0x20000, scoped, tag = 'input window, operand 9, single buffered']
    #allocation15 [shape = 'u8[8192]{0}', space=vmem, size = 0x2000, scoped, tag = 'output window, operand 0']
    %15 = vsyncpa [#allocation4], 0
    %s16 = scalar_lea.sflag [#allocation4], 1
    %17 = vsyncpa %s16, 0
    %18 = vsyncpa [#allocation7], 0
    %s19 = scalar_lea.sflag [#allocation7], 1
    %20 = vsyncpa %s19, 0
    %21 = vsyncpa [#allocation10], 0
    %22 = vsyncpa [#allocation13], 0
    %23 = vsyncpa [#allocation5], 0
    %s24 = scalar_lea.sflag [#allocation5], 1
    %25 = vsyncpa %s24, 0
    loop: start=0, step=1, limit=10
    $region2: #{tpu_custom_call.1} parent=1 // loop_pre_header
      _
    $region3: #{tpu_custom_call.1} parent=1 // loop_header
      %s27 = sphi 0, %s31
      %p28 = scmp.ge.s32.totalorder %s27, 10
      %s34 = sphi 0, %s53
      %s35 = sphi 0, %s49
      %s36 = sphi 0, %s45
      %s37 = sphi 0, %s34
      %s38 = sphi 0, %s35
      %s39 = sphi 0, %s36
      %s40 = sphi 0, %s37
      %s41 = sphi 0, %s38
      %s42 = sphi 0, %s39
      %s58 = sphi 0, %s60
      %s61 = sphi 0, %s58
      %s62 = sphi 0, %s61
      %s78 = sphi 0, %s62
      %s86 = sphi 0, %s88
      %s89 = sphi 0, %s86
      %s90 = sphi 0, %s89
      %s106 = sphi 0, %s90
      %s110 = sphi 0, %s110
      %s112 = sphi 0, %s110
      %s113 = sphi 0, %s112
      %s127 = sphi 0, %s113
      %s131 = sphi 0, %s131
      %s133 = sphi 0, %s131
      %s134 = sphi 0, %s133
      %s148 = sphi 0, %s134
      %s152 = sphi 0, %s152
      %s154 = sphi 0, %s152
      %s155 = sphi 0, %s154
      %s169 = sphi 0, %s155
      %s173 = sphi 0, %s173
      %s175 = sphi 0, %s173
      %s176 = sphi 0, %s175
      %s190 = sphi 0, %s176
      %s194 = sphi 0, %s194
      %s196 = sphi 0, %s194
      %s197 = sphi 0, %s196
      %s211 = sphi 0, %s197
      %s215 = sphi 0, %s215
      %s217 = sphi 0, %s215
      %s218 = sphi 0, %s217
      %s232 = sphi 0, %s218
      %s236 = sphi 0, %s236
      %s238 = sphi 0, %s236
      %s239 = sphi 0, %s238
      %s253 = sphi 0, %s239
      %s257 = sphi 0, %s257
      %s259 = sphi 0, %s257
      %s260 = sphi 0, %s259
      %s274 = sphi 0, %s260
      %s282 = sphi 0, %s284
      %s285 = sphi 0, %s282
      %s286 = sphi 0, %s285
      %s302 = sphi 0, %s286
    $region4: #{tpu_custom_call.1} parent=1 // loop_header_branch
      %30 = sbr.rel (%p28) target = $region8
    $region5: #{tpu_custom_call.1} parent=1 // loop_body
      %s32 = ssub.s32 %s27, 1
      %s33 = ssub.s32 %s27, 2
      %s43 = sadd.s32 1, %s36
      %p44 = scmp.ge.s32.totalorder %s43, 2
      %s45 = scalar_select %p44, 0, %s43
      %s46 = sadd.s32 1, %s35
      %s47 = scalar_select %p44, %s46, %s35
      %p48 = scmp.ge.s32.totalorder %s47, 2
      %s49 = scalar_select %p48, 0, %s47
      %s50 = sadd.s32 1, %s34
      %s51 = scalar_select %p48, %s50, %s34
      %p52 = scmp.ge.s32.totalorder %s51, 2
      %s53 = scalar_select %p52, 0, %s51
      %s54 = ssub.s32 %s34, %s53
      %s55 = ssub.s32 %s35, %s49
      %s56 = sor.u32 %s54, %s55
      %p57 = scmp.eq.s32.totalorder %s56, 0
      %s59 = sadd.s32 %s58, 1
      %s60 = scalar_select %p57, %s58, %s59
      %p63 = pneg %p57
      %p64 = scmp.eq.s32.totalorder %s27, 7
      %p65 = por %p63, %p64
      %p66 = scmp.ne.s32.totalorder %s58, %s61
      %p67 = scmp.eq.s32.totalorder %s27, 0
      %p68 = por %p66, %p67
      %p69 = scmp.ne.s32.totalorder %s58, %s61
      %p70 = scmp.eq.s32.totalorder %s32, 7
      %p71 = por %p69, %p70
      %p72 = scmp.ne.s32.totalorder %s61, %s62
      %p73 = scmp.eq.s32.totalorder %s32, 0
      %p74 = por %p72, %p73
      %p75 = scmp.ne.s32.totalorder %s61, %s62
      %p76 = scmp.eq.s32.totalorder %s33, 7
      %p77 = por %p75, %p76
      %p79 = scmp.ne.s32.totalorder %s62, %s78
      %p80 = scmp.eq.s32.totalorder %s33, 0
      %p81 = por %p79, %p80
      %s82 = ssub.s32 %s34, %s53
      %s83 = ssub.s32 %s36, %s45
      %s84 = sor.u32 %s82, %s83
      %p85 = scmp.eq.s32.totalorder %s84, 0
      %s87 = sadd.s32 %s86, 1
      %s88 = scalar_select %p85, %s86, %s87
      %p91 = pneg %p85
      %p92 = scmp.eq.s32.totalorder %s27, 7
      %p93 = por %p91, %p92
      %p94 = scmp.ne.s32.totalorder %s86, %s89
      %p95 = scmp.eq.s32.totalorder %s27, 0
      %p96 = por %p94, %p95
      %p97 = scmp.ne.s32.totalorder %s86, %s89
      %p98 = scmp.eq.s32.totalorder %s32, 7
      %p99 = por %p97, %p98
      %p100 = scmp.ne.s32.totalorder %s89, %s90
      %p101 = scmp.eq.s32.totalorder %s32, 0
      %p102 = por %p100, %p101
      %p103 = scmp.ne.s32.totalorder %s89, %s90
      %p104 = scmp.eq.s32.totalorder %s33, 7
      %p105 = por %p103, %p104
      %p107 = scmp.ne.s32.totalorder %s90, %s106
      %p108 = scmp.eq.s32.totalorder %s33, 0
      %p109 = por %p107, %p108
      %s111 = sadd.s32 %s110, 1
      %p114 = scmp.eq.s32.totalorder %s27, 7
      %p115 = scmp.ne.s32.totalorder %s110, %s112
      %p116 = scmp.eq.s32.totalorder %s27, 0
      %p117 = por %p115, %p116
      %p118 = scmp.ne.s32.totalorder %s110, %s112
      %p119 = scmp.eq.s32.totalorder %s32, 7
      %p120 = por %p118, %p119
      %p121 = scmp.ne.s32.totalorder %s112, %s113
      %p122 = scmp.eq.s32.totalorder %s32, 0
      %p123 = por %p121, %p122
      %p124 = scmp.ne.s32.totalorder %s112, %s113
      %p125 = scmp.eq.s32.totalorder %s33, 7
      %p126 = por %p124, %p125
      %p128 = scmp.ne.s32.totalorder %s113, %s127
      %p129 = scmp.eq.s32.totalorder %s33, 0
      %p130 = por %p128, %p129
      %s132 = sadd.s32 %s131, 1
      %p135 = scmp.eq.s32.totalorder %s27, 7
      %p136 = scmp.ne.s32.totalorder %s131, %s133
      %p137 = scmp.eq.s32.totalorder %s27, 0
      %p138 = por %p136, %p137
      %p139 = scmp.ne.s32.totalorder %s131, %s133
      %p140 = scmp.eq.s32.totalorder %s32, 7
      %p141 = por %p139, %p140
      %p142 = scmp.ne.s32.totalorder %s133, %s134
      %p143 = scmp.eq.s32.totalorder %s32, 0
      %p144 = por %p142, %p143
      %p145 = scmp.ne.s32.totalorder %s133, %s134
      %p146 = scmp.eq.s32.totalorder %s33, 7
      %p147 = por %p145, %p146
      %p149 = scmp.ne.s32.totalorder %s134, %s148
      %p150 = scmp.eq.s32.totalorder %s33, 0
      %p151 = por %p149, %p150
      %s153 = sadd.s32 %s152, 1
      %p156 = scmp.eq.s32.totalorder %s27, 7
      %p157 = scmp.ne.s32.totalorder %s152, %s154
      %p158 = scmp.eq.s32.totalorder %s27, 0
      %p159 = por %p157, %p158
      %p160 = scmp.ne.s32.totalorder %s152, %s154
      %p161 = scmp.eq.s32.totalorder %s32, 7
      %p162 = por %p160, %p161
      %p163 = scmp.ne.s32.totalorder %s154, %s155
      %p164 = scmp.eq.s32.totalorder %s32, 0
      %p165 = por %p163, %p164
      %p166 = scmp.ne.s32.totalorder %s154, %s155
      %p167 = scmp.eq.s32.totalorder %s33, 7
      %p168 = por %p166, %p167
      %p170 = scmp.ne.s32.totalorder %s155, %s169
      %p171 = scmp.eq.s32.totalorder %s33, 0
      %p172 = por %p170, %p171
      %s174 = sadd.s32 %s173, 1
      %p177 = scmp.eq.s32.totalorder %s27, 7
      %p178 = scmp.ne.s32.totalorder %s173, %s175
      %p179 = scmp.eq.s32.totalorder %s27, 0
      %p180 = por %p178, %p179
      %p181 = scmp.ne.s32.totalorder %s173, %s175
      %p182 = scmp.eq.s32.totalorder %s32, 7
      %p183 = por %p181, %p182
      %p184 = scmp.ne.s32.totalorder %s175, %s176
      %p185 = scmp.eq.s32.totalorder %s32, 0
      %p186 = por %p184, %p185
      %p187 = scmp.ne.s32.totalorder %s175, %s176
      %p188 = scmp.eq.s32.totalorder %s33, 7
      %p189 = por %p187, %p188
      %p191 = scmp.ne.s32.totalorder %s176, %s190
      %p192 = scmp.eq.s32.totalorder %s33, 0
      %p193 = por %p191, %p192
      %s195 = sadd.s32 %s194, 1
      %p198 = scmp.eq.s32.totalorder %s27, 7
      %p199 = scmp.ne.s32.totalorder %s194, %s196
      %p200 = scmp.eq.s32.totalorder %s27, 0
      %p201 = por %p199, %p200
      %p202 = scmp.ne.s32.totalorder %s194, %s196
      %p203 = scmp.eq.s32.totalorder %s32, 7
      %p204 = por %p202, %p203
      %p205 = scmp.ne.s32.totalorder %s196, %s197
      %p206 = scmp.eq.s32.totalorder %s32, 0
      %p207 = por %p205, %p206
      %p208 = scmp.ne.s32.totalorder %s196, %s197
      %p209 = scmp.eq.s32.totalorder %s33, 7
      %p210 = por %p208, %p209
      %p212 = scmp.ne.s32.totalorder %s197, %s211
      %p213 = scmp.eq.s32.totalorder %s33, 0
      %p214 = por %p212, %p213
      %s216 = sadd.s32 %s215, 1
      %p219 = scmp.eq.s32.totalorder %s27, 7
      %p220 = scmp.ne.s32.totalorder %s215, %s217
      %p221 = scmp.eq.s32.totalorder %s27, 0
      %p222 = por %p220, %p221
      %p223 = scmp.ne.s32.totalorder %s215, %s217
      %p224 = scmp.eq.s32.totalorder %s32, 7
      %p225 = por %p223, %p224
      %p226 = scmp.ne.s32.totalorder %s217, %s218
      %p227 = scmp.eq.s32.totalorder %s32, 0
      %p228 = por %p226, %p227
      %p229 = scmp.ne.s32.totalorder %s217, %s218
      %p230 = scmp.eq.s32.totalorder %s33, 7
      %p231 = por %p229, %p230
      %p233 = scmp.ne.s32.totalorder %s218, %s232
      %p234 = scmp.eq.s32.totalorder %s33, 0
      %p235 = por %p233, %p234
      %s237 = sadd.s32 %s236, 1
      %p240 = scmp.eq.s32.totalorder %s27, 7
      %p241 = scmp.ne.s32.totalorder %s236, %s238
      %p242 = scmp.eq.s32.totalorder %s27, 0
      %p243 = por %p241, %p242
      %p244 = scmp.ne.s32.totalorder %s236, %s238
      %p245 = scmp.eq.s32.totalorder %s32, 7
      %p246 = por %p244, %p245
      %p247 = scmp.ne.s32.totalorder %s238, %s239
      %p248 = scmp.eq.s32.totalorder %s32, 0
      %p249 = por %p247, %p248
      %p250 = scmp.ne.s32.totalorder %s238, %s239
      %p251 = scmp.eq.s32.totalorder %s33, 7
      %p252 = por %p250, %p251
      %p254 = scmp.ne.s32.totalorder %s239, %s253
      %p255 = scmp.eq.s32.totalorder %s33, 0
      %p256 = por %p254, %p255
      %s258 = sadd.s32 %s257, 1
      %p261 = scmp.eq.s32.totalorder %s27, 7
      %p262 = scmp.ne.s32.totalorder %s257, %s259
      %p263 = scmp.eq.s32.totalorder %s27, 0
      %p264 = por %p262, %p263
      %p265 = scmp.ne.s32.totalorder %s257, %s259
      %p266 = scmp.eq.s32.totalorder %s32, 7
      %p267 = por %p265, %p266
      %p268 = scmp.ne.s32.totalorder %s259, %s260
      %p269 = scmp.eq.s32.totalorder %s32, 0
      %p270 = por %p268, %p269
      %p271 = scmp.ne.s32.totalorder %s259, %s260
      %p272 = scmp.eq.s32.totalorder %s33, 7
      %p273 = por %p271, %p272
      %p275 = scmp.ne.s32.totalorder %s260, %s274
      %p276 = scmp.eq.s32.totalorder %s33, 0
      %p277 = por %p275, %p276
      %s278 = ssub.s32 %s34, %s53
      %s279 = ssub.s32 %s35, %s49
      %s280 = sor.u32 %s278, %s279
      %p281 = scmp.eq.s32.totalorder %s280, 0
      %s283 = sadd.s32 %s282, 1
      %s284 = scalar_select %p281, %s282, %s283
      %p287 = pneg %p281
      %p288 = scmp.eq.s32.totalorder %s27, 7
      %p289 = por %p287, %p288
      %p290 = scmp.ne.s32.totalorder %s282, %s285
      %p291 = scmp.eq.s32.totalorder %s27, 0
      %p292 = por %p290, %p291
      %p293 = scmp.ne.s32.totalorder %s282, %s285
      %p294 = scmp.eq.s32.totalorder %s32, 7
      %p295 = por %p293, %p294
      %p296 = scmp.ne.s32.totalorder %s285, %s286
      %p297 = scmp.eq.s32.totalorder %s32, 0
      %p298 = por %p296, %p297
      %p299 = scmp.ne.s32.totalorder %s285, %s286
      %p300 = scmp.eq.s32.totalorder %s33, 7
      %p301 = por %p299, %p300
      %p303 = scmp.ne.s32.totalorder %s286, %s302
      %p304 = scmp.eq.s32.totalorder %s33, 0
      %p305 = por %p303, %p304
      %p306 = scmp.le.s32.totalorder 1, %s27
      %p307 = scmp.lt.s32.totalorder %s27, 9
      %p308 = pnand %p306, %p307
      %p309 = pneg %p308
      // Predicated region
      $region9: #{tpu_custom_call.1} parent=5 // pred_check
        _
      $region10: #{tpu_custom_call.1} parent=5 // pred_check_branch
        %311 = sbr.rel (%p308) target = $region12
      $region11: #{tpu_custom_call.1} parent=5 // pred_region
        %s312 = ssub.s32 %s27, 1
        // Predicated region
        $region13: #{tpu_custom_call.1} parent=11 // pred_check
          %p313 = pneg %p123
        $region14: #{tpu_custom_call.1} parent=11 // pred_check_branch
          %315 = sbr.rel (%p313) target = $region16
        $region15: #{tpu_custom_call.1} parent=11 // pred_region
          _
        $region16: #{tpu_custom_call.1} parent=11 // pred_fallthru
          _
        // Predicated region
        $region17: #{tpu_custom_call.1} parent=11 // pred_check
          %p316 = pneg %p144
        $region18: #{tpu_custom_call.1} parent=11 // pred_check_branch
          %318 = sbr.rel (%p316) target = $region20
        $region19: #{tpu_custom_call.1} parent=11 // pred_region
          _
        $region20: #{tpu_custom_call.1} parent=11 // pred_fallthru
          _
        // Predicated region
        $region21: #{tpu_custom_call.1} parent=11 // pred_check
          %p319 = pneg %p165
        $region22: #{tpu_custom_call.1} parent=11 // pred_check_branch
          %321 = sbr.rel (%p319) target = $region24
        $region23: #{tpu_custom_call.1} parent=11 // pred_region
          %323 = vsyncadd [#allocation7], 0
          %s324 = sshll.u32 %s4, 4
          %s325 = int_to_ptr.hbm [resolvable:$true] %s324
          %s326 = sshll.u32 [#allocation8], 4
          %s327 = int_to_ptr.vmem [resolvable:$true] %s326
          %332 = dma.hbm_to_vmem [thread:$0]  %s325, 2048, %s327, [#allocation7], 128, 128, 8
        $region24: #{tpu_custom_call.1} parent=11 // pred_fallthru
          _
        // Predicated region
        $region25: #{tpu_custom_call.1} parent=11 // pred_check
          %p333 = pneg %p186
        $region26: #{tpu_custom_call.1} parent=11 // pred_check_branch
          %335 = sbr.rel (%p333) target = $region28
        $region27: #{tpu_custom_call.1} parent=11 // pred_region
          %337 = vsyncadd [#allocation10], 0
          %s338 = sshll.u32 %s5, 4
          %s339 = int_to_ptr.hbm [resolvable:$true] %s338
          %s340 = sshll.u32 [#allocation9], 4
          %s341 = int_to_ptr.vmem [resolvable:$true] %s340
          %346 = dma.hbm_to_vmem [thread:$0]  %s339, 2048, %s341, [#allocation10], 128, 128, 8
        $region28: #{tpu_custom_call.1} parent=11 // pred_fallthru
          _
        // Predicated region
        $region29: #{tpu_custom_call.1} parent=11 // pred_check
          %p347 = pneg %p207
        $region30: #{tpu_custom_call.1} parent=11 // pred_check_branch
          %349 = sbr.rel (%p347) target = $region32
        $region31: #{tpu_custom_call.1} parent=11 // pred_region
          %351 = vsyncadd [#allocation10], 0
          %s352 = sshll.u32 %s6, 4
          %s353 = int_to_ptr.hbm [resolvable:$true] %s352
          %s354 = sshll.u32 [#allocation11], 4
          %s355 = int_to_ptr.vmem [resolvable:$true] %s354
          %360 = dma.hbm_to_vmem [thread:$0]  %s353, 2048, %s355, [#allocation10], 128, 128, 8
        $region32: #{tpu_custom_call.1} parent=11 // pred_fallthru
          _
        // Predicated region
        $region33: #{tpu_custom_call.1} parent=11 // pred_check
          %p361 = pneg %p228
        $region34: #{tpu_custom_call.1} parent=11 // pred_check_branch
          %363 = sbr.rel (%p361) target = $region36
        $region35: #{tpu_custom_call.1} parent=11 // pred_region
          _
        $region36: #{tpu_custom_call.1} parent=11 // pred_fallthru
          _
        // Predicated region
        $region37: #{tpu_custom_call.1} parent=11 // pred_check
          %p364 = pneg %p249
        $region38: #{tpu_custom_call.1} parent=11 // pred_check_branch
          %366 = sbr.rel (%p364) target = $region40
        $region39: #{tpu_custom_call.1} parent=11 // pred_region
          %368 = vsyncadd [#allocation13], 0
          %s369 = sshll.u32 %s8, 4
          %s370 = int_to_ptr.hbm [resolvable:$true] %s369
          %s371 = sshll.u32 [#allocation12], 4
          %s372 = int_to_ptr.vmem [resolvable:$true] %s371
          %377 = dma.hbm_to_vmem [thread:$0]  %s370, 8192, %s372, [#allocation13], 512, 512, 32
        $region40: #{tpu_custom_call.1} parent=11 // pred_fallthru
          _
        // Predicated region
        $region41: #{tpu_custom_call.1} parent=11 // pred_check
          %p378 = pneg %p270
        $region42: #{tpu_custom_call.1} parent=11 // pred_check_branch
          %380 = sbr.rel (%p378) target = $region44
        $region43: #{tpu_custom_call.1} parent=11 // pred_region
          %382 = vsyncadd [#allocation13], 0
          %s383 = sshll.u32 %s9, 4
          %s384 = int_to_ptr.hbm [resolvable:$true] %s383
          %s385 = sshll.u32 [#allocation14], 4
          %s386 = int_to_ptr.vmem [resolvable:$true] %s385
          %391 = dma.hbm_to_vmem [thread:$0]  %s384, 4096, %s386, [#allocation13], 128, 128, 8
        $region44: #{tpu_custom_call.1} parent=11 // pred_fallthru
          _
      $region12: #{tpu_custom_call.1} parent=5 // pred_fallthru
        _
      %p392 = scmp.lt.s32.totalorder %s27, 8
      // Predicated region
      $region45: #{tpu_custom_call.1} parent=5 // pred_check
        %p393 = pneg %p392
      $region46: #{tpu_custom_call.1} parent=5 // pred_check_branch
        %395 = sbr.rel (%p393) target = $region48
      $region47: #{tpu_custom_call.1} parent=5 // pred_region
        // Predicated region
        $region49: #{tpu_custom_call.1} parent=47 // pred_check
          %p396 = pneg %p68
        $region50: #{tpu_custom_call.1} parent=47 // pred_check_branch
          %398 = sbr.rel (%p396) target = $region52
        $region51: #{tpu_custom_call.1} parent=47 // pred_region
          %s399 = sand.u32 %s58, 1
          %s400 = scalar_lea.sflag [#allocation4], %s399
          %s401 = sand.u32 %s58, 1
          %s402 = smul.addr %s401, 8
          %s403 = scalar_lea.vmem [#allocation3], %s402
          %405 = vsyncadd %s400, 0
          %s406 = smul.addr %s34, 2
          %s407 = sadd.s32 %s35, %s406
          %s408 = smul.addr %s407, 8
          %s409 = scalar_lea.hbm %s0, %s408
          %s411 = sshll.u32 %s409, 4
          %s412 = int_to_ptr.hbm [resolvable:$true] %s411
          %s413 = sshll.u32 %s403, 4
          %s414 = int_to_ptr.vmem [resolvable:$true] %s413
          %416 = dma.hbm_to_vmem [thread:$0]  %s412, 128, %s414, %s400
        $region52: #{tpu_custom_call.1} parent=47 // pred_fallthru
          _
        // Predicated region
        $region53: #{tpu_custom_call.1} parent=47 // pred_check
          %p417 = pneg %p96
        $region54: #{tpu_custom_call.1} parent=47 // pred_check_branch
          %419 = sbr.rel (%p417) target = $region56
        $region55: #{tpu_custom_call.1} parent=47 // pred_region
          %s420 = sand.u32 %s27, 1
          %s421 = scalar_lea.sflag [#allocation7], %s420
          %s422 = sand.u32 %s86, 1
          %s423 = smul.addr %s422, 8
          %s424 = scalar_lea.vmem [#allocation6], %s423
          %426 = vsyncadd %s421, 0
          %s427 = smul.addr %s34, 2
          %s428 = sadd.s32 %s36, %s427
          %s429 = smul.addr %s428, 8
          %s430 = scalar_lea.hbm %s1, %s429
          %s432 = sshll.u32 %s430, 4
          %s433 = int_to_ptr.hbm [resolvable:$true] %s432
          %s434 = sshll.u32 %s424, 4
          %s435 = int_to_ptr.vmem [resolvable:$true] %s434
          %437 = dma.hbm_to_vmem [thread:$0]  %s433, 128, %s435, %s421
        $region56: #{tpu_custom_call.1} parent=47 // pred_fallthru
          _
      $region48: #{tpu_custom_call.1} parent=5 // pred_fallthru
        _
      %p438 = scmp.le.s32.totalorder 1, %s27
      %p439 = scmp.lt.s32.totalorder %s27, 9
      %p440 = pnand %p438, %p439
      %p441 = pneg %p440
      // Predicated region
      $region57: #{tpu_custom_call.1} parent=5 // pred_check
        _
      $region58: #{tpu_custom_call.1} parent=5 // pred_check_branch
        %443 = sbr.rel (%p440) target = $region60
      $region59: #{tpu_custom_call.1} parent=5 // pred_region
        %s444 = ssub.s32 %s27, 1
        %s445 = sand.u32 %s61, 1
        %s446 = scalar_lea.sflag [#allocation4], %s445
        %s447 = sand.u32 %s61, 1
        %s448 = smul.addr %s447, 8
        %s449 = scalar_lea.vmem [#allocation3], %s448
        // Predicated region
        $region61: #{tpu_custom_call.1} parent=59 // pred_check
          %p450 = pneg %p74
        $region62: #{tpu_custom_call.1} parent=59 // pred_check_branch
          %452 = sbr.rel (%p450) target = $region64
        $region63: #{tpu_custom_call.1} parent=59 // pred_region
          %454 = dma.done %s446, 128
        $region64: #{tpu_custom_call.1} parent=59 // pred_fallthru
          _
        %s455 = sand.u32 %s32, 1
        %s456 = scalar_lea.sflag [#allocation7], %s455
        %s457 = sand.u32 %s89, 1
        %s458 = smul.addr %s457, 8
        %s459 = scalar_lea.vmem [#allocation6], %s458
        // Predicated region
        $region65: #{tpu_custom_call.1} parent=59 // pred_check
          %p460 = pneg %p102
        $region66: #{tpu_custom_call.1} parent=59 // pred_check_branch
          %462 = sbr.rel (%p460) target = $region68
        $region67: #{tpu_custom_call.1} parent=59 // pred_region
          %464 = dma.done %s456, 128
        $region68: #{tpu_custom_call.1} parent=59 // pred_fallthru
          _
        // Predicated region
        $region69: #{tpu_custom_call.1} parent=59 // pred_check
          %p465 = pneg %p165
        $region70: #{tpu_custom_call.1} parent=59 // pred_check_branch
          %467 = sbr.rel (%p465) target = $region72
        $region71: #{tpu_custom_call.1} parent=59 // pred_region
          %469 = dma.done [#allocation7], 2048
        $region72: #{tpu_custom_call.1} parent=59 // pred_fallthru
          _
        // Predicated region
        $region73: #{tpu_custom_call.1} parent=59 // pred_check
          %p470 = pneg %p186
        $region74: #{tpu_custom_call.1} parent=59 // pred_check_branch
          %472 = sbr.rel (%p470) target = $region76
        $region75: #{tpu_custom_call.1} parent=59 // pred_region
          %474 = dma.done [#allocation10], 2048
        $region76: #{tpu_custom_call.1} parent=59 // pred_fallthru
          _
        // Predicated region
        $region77: #{tpu_custom_call.1} parent=59 // pred_check
          %p475 = pneg %p207
        $region78: #{tpu_custom_call.1} parent=59 // pred_check_branch
          %477 = sbr.rel (%p475) target = $region80
        $region79: #{tpu_custom_call.1} parent=59 // pred_region
          %479 = dma.done [#allocation10], 2048
        $region80: #{tpu_custom_call.1} parent=59 // pred_fallthru
          _
        // Predicated region
        $region81: #{tpu_custom_call.1} parent=59 // pred_check
          %p480 = pneg %p249
        $region82: #{tpu_custom_call.1} parent=59 // pred_check_branch
          %482 = sbr.rel (%p480) target = $region84
        $region83: #{tpu_custom_call.1} parent=59 // pred_region
          %484 = dma.done [#allocation13], 8192
        $region84: #{tpu_custom_call.1} parent=59 // pred_fallthru
          _
        // Predicated region
        $region85: #{tpu_custom_call.1} parent=59 // pred_check
          %p485 = pneg %p270
        $region86: #{tpu_custom_call.1} parent=59 // pred_check_branch
          %487 = sbr.rel (%p485) target = $region88
        $region87: #{tpu_custom_call.1} parent=59 // pred_region
          %489 = dma.done [#allocation13], 4096
        $region88: #{tpu_custom_call.1} parent=59 // pred_fallthru
          _
        %s490 = sand.u32 %s61, 1
        %s491 = scalar_lea.sflag [#allocation4], %s490
        %s492 = sand.u32 %s61, 1
        %s493 = smul.addr %s492, 8
        %s494 = scalar_lea.vmem [#allocation3], %s493
        %p495 = pneg %p74
        %p496 = pneg %p71
        %s497 = sand.u32 %s32, 1
        %s498 = scalar_lea.sflag [#allocation7], %s497
        %s499 = sand.u32 %s89, 1
        %s500 = smul.addr %s499, 8
        %s501 = scalar_lea.vmem [#allocation6], %s500
        %p502 = pneg %p102
        %p503 = pneg %p99
        %p504 = pneg %p123
        %p505 = pneg %p120
        %p506 = pneg %p144
        %p507 = pneg %p141
        %p508 = pneg %p165
        %p509 = pneg %p162
        %p510 = pneg %p186
        %p511 = pneg %p183
        %p512 = pneg %p207
        %p513 = pneg %p204
        %p514 = pneg %p228
        %p515 = pneg %p225
        %p516 = pneg %p249
        %p517 = pneg %p246
        %p518 = pneg %p270
        %p519 = pneg %p267
        %p520 = pneg %p298
        %p521 = pneg %p295
        %s522 = sand.u32 %s285, 1
        %s523 = scalar_lea.sflag [#allocation5], %s522
        %s524 = sand.u32 %s285, 1
        %s525 = smul.addr %s524, 8
        %s526 = scalar_lea.vmem [#allocation15], %s525
        %p527 = scmp.eq.s32.totalorder %s39, 0
        // Predicated region
        $region89: #{tpu_custom_call.1} parent=59 // pred_check
          %p528 = pneg %p527
        $region90: #{tpu_custom_call.1} parent=59 // pred_check_branch
          %530 = sbr.rel (%p528) target = $region92
        $region91: #{tpu_custom_call.1} parent=59 // pred_region
          %531 = vst [vmem:[#allocation2] sm:$0xff] 0.0
        $region92: #{tpu_custom_call.1} parent=59 // pred_fallthru
          _
        %p532 = scmp.le.s32.totalorder %s39, %s38
        // Predicated region
        $region93: #{tpu_custom_call.1} parent=59 // pred_check
          %p533 = pneg %p532
        $region94: #{tpu_custom_call.1} parent=59 // pred_check_branch
          %535 = sbr.rel (%p533) target = $region96
        $region95: #{tpu_custom_call.1} parent=59 // pred_region
          %v536 = vld [vmem:[%s459] sm:$0xff]
          %v537 = vld [vmem:[%s2] sm:$0x1]
          %v538 = vmul.f32 %v536, %v536
          %539 = vadd.xlane.f32.xlu0 %v538
          %v540 = vpop.xlane.xlu0 %539
          %v541 = vrcp.pop 128.0
          %v542 = vmul.f32 128.0, %v541
          %v543 = vsub.f32 1.0, %v542
          %v544 = vmul.f32 %v541, %v543
          %v545 = vadd.f32 %v541, %v544
          %vm546 = vweird.f32 %v541
          %v547 = vsel %vm546, %v541, %v545
          %v548 = vmul.f32 %v540, %v547
          %v549 = vadd.f32 %v548, 1e-06
          %v550 = vrsqrt.pop %v549
          %v551 = vmul.f32 %v550, %v549
          %v552 = vmul.f32 %v551, %v550
          %v553 = vmul.f32 0.5, %v552
          %v554 = vsub.f32 1.5, %v553
          %v555 = vmul.f32 %v550, %v554
          %vm556 = vweird.f32 %v549
          %vm557 = vweird.f32 %v550
          %vm558 = vmor %vm556, %vm557
          %v559 = vsel %vm558, %v550, %v555
          %v560 = vmul.f32 %v536, %v559
          %v562 = vperm.slane %v537, 0
          %v564 = vmul.f32 %v560, %v562
          %v565 = vld [vmem:[%s3] sm:$0x1]
          %v567 = vperm.slane %v565, 0
          %v569 = vmul.f32 %v564, %v567
          %570 = vadd.xlane.f32.xlu0 %v569
          %v571 = vpop.xlane.xlu0 %570
          %vm572 = vcmp.ge.f32.partialorder %v571, 0.0
          %v573 = vsub.f32 0.0, %v571
          %v574 = vmul.f32 %v573, 1.442695
          %v575 = vpow.pop %v574
          %v576 = vadd.f32 %v575, 1.0
          %v577 = vlog2.pop %v576
          %v578 = vmul.f32 %v577, 0.6931472
          %v579 = vsub.f32 0.0, %v578
          %v580 = vmul.f32 %v571, 1.442695
          %v581 = vpow.pop %v580
          %v582 = vadd.f32 %v581, 1.0
          %v583 = vlog2.pop %v582
          %v584 = vmul.f32 %v583, 0.6931472
          %v585 = vsub.f32 %v571, %v584
          %v586 = vsel %vm572, %v579, %v585
          %v587 = vlaneseq
          %v588 = vshrl.u32 %v587, 7
          %s589 = smul.u32 %s38, 8
          %v590 = vstv %s589
          %v591 = vadd.s32 %v588, %v590
          %v592 = vlaneseq
          %v593 = vand.u32 %v592, 127
          %v594 = vsub.s32 %v591, %v593
          %s595 = smul.u32 %s39, 8
          %v596 = vstv %s595
          %v597 = vsub.s32 %v594, %v596
          %vm598 = vcmp.ge.s32.totalorder %v597, 0
          %v599 = vcvt.s32.f32 %v597
          %v601 = vperm.slane %v599, 0
          %v602 = vlaneseq
          %v603 = vshrl.u32 %v602, 7
          %605 = vset.pattern.permute.xlu0 %v603
          %606 = vperm.xlu0 %605, %v601
          %v607 = vpop.permute.xlu0 %606
          %v608 = vperm.slane %v599, 1
          %v609 = vlaneseq
          %v610 = vshrl.u32 %v609, 7
          %612 = vset.pattern.permute.xlu0 %v610
          %613 = vperm.xlu0 %612, %v608
          %v614 = vpop.permute.xlu0 %613
          %v615 = vperm.slane %v599, 2
          %v616 = vlaneseq
          %v617 = vshrl.u32 %v616, 7
          %619 = vset.pattern.permute.xlu0 %v617
          %620 = vperm.xlu0 %619, %v615
          %v621 = vpop.permute.xlu0 %620
          %v622 = vperm.slane %v599, 3
          %v623 = vlaneseq
          %v624 = vshrl.u32 %v623, 7
          %626 = vset.pattern.permute.xlu0 %v624
          %627 = vperm.xlu0 %626, %v622
          %v628 = vpop.permute.xlu0 %627
          %v629 = vperm.slane %v599, 4
          %v630 = vlaneseq
          %v631 = vshrl.u32 %v630, 7
          %633 = vset.pattern.permute.xlu0 %v631
          %634 = vperm.xlu0 %633, %v629
          %v635 = vpop.permute.xlu0 %634
          %v636 = vperm.slane %v599, 5
          %v637 = vlaneseq
          %v638 = vshrl.u32 %v637, 7
          %640 = vset.pattern.permute.xlu0 %v638
          %641 = vperm.xlu0 %640, %v636
          %v642 = vpop.permute.xlu0 %641
          %v643 = vperm.slane %v599, 6
          %v644 = vlaneseq
          %v645 = vshrl.u32 %v644, 7
          %647 = vset.pattern.permute.xlu0 %v645
          %648 = vperm.xlu0 %647, %v643
          %v649 = vpop.permute.xlu0 %648
          %v650 = vperm.slane %v599, 7
          %v651 = vlaneseq
          %v652 = vshrl.u32 %v651, 7
          %654 = vset.pattern.permute.xlu0 %v652
          %655 = vperm.xlu0 %654, %v650
          %v656 = vpop.permute.xlu0 %655
          %v665 = vmul.f32 %v586, %v607
          %v666 = vmul.f32 %v586, %v614
          %v667 = vmul.f32 %v586, %v621
          %v668 = vmul.f32 %v586, %v628
          %v669 = vmul.f32 %v586, %v635
          %v670 = vmul.f32 %v586, %v642
          %v671 = vmul.f32 %v586, %v649
          %v672 = vmul.f32 %v586, %v656
          %v673 = vmul.f32 %v665, 1.442695
          %v674 = vpow.pop %v673
          %v675 = vmul.f32 %v666, 1.442695
          %v676 = vpow.pop %v675
          %v677 = vmul.f32 %v667, 1.442695
          %v678 = vpow.pop %v677
          %v679 = vmul.f32 %v668, 1.442695
          %v680 = vpow.pop %v679
          %v681 = vmul.f32 %v669, 1.442695
          %v682 = vpow.pop %v681
          %v683 = vmul.f32 %v670, 1.442695
          %v684 = vpow.pop %v683
          %v685 = vmul.f32 %v671, 1.442695
          %v686 = vpow.pop %v685
          %v687 = vmul.f32 %v672, 1.442695
          %v688 = vpow.pop %v687
          %697 = vset.pattern.permute.xlu0 0
          %698 = vperm.xlu0 %697, %v674
          %v699 = vpop.permute.xlu0 %698
          %700 = vset.pattern.permute.xlu0 0
          %701 = vperm.xlu0 %700, %v676
          %v702 = vpop.permute.xlu0 %701
          %703 = vset.pattern.permute.xlu0 0
          %704 = vperm.xlu0 %703, %v678
          %v705 = vpop.permute.xlu0 %704
          %706 = vset.pattern.permute.xlu0 0
          %707 = vperm.xlu0 %706, %v680
          %v708 = vpop.permute.xlu0 %707
          %709 = vset.pattern.permute.xlu0 0
          %710 = vperm.xlu0 %709, %v682
          %v711 = vpop.permute.xlu0 %710
          %712 = vset.pattern.permute.xlu0 0
          %713 = vperm.xlu0 %712, %v684
          %v714 = vpop.permute.xlu0 %713
          %715 = vset.pattern.permute.xlu0 0
          %716 = vperm.xlu0 %715, %v686
          %v717 = vpop.permute.xlu0 %716
          %718 = vset.pattern.permute.xlu0 0
          %719 = vperm.xlu0 %718, %v688
          %v720 = vpop.permute.xlu0 %719
          %v721 = vperm.slane %v699, %v593
          %v722 = vperm.slane %v702, %v593
          %v723 = vperm.slane %v705, %v593
          %v724 = vperm.slane %v708, %v593
          %v725 = vperm.slane %v711, %v593
          %v726 = vperm.slane %v714, %v593
          %v727 = vperm.slane %v717, %v593
          %v728 = vperm.slane %v720, %v593
          %vm729 = vcmask 1041409
          %v730 = vsel %vm729, %v722, %v721
          %vm731 = vcmask 1042434
          %v732 = vsel %vm731, %v723, %v730
          %vm733 = vcmask 1043459
          %v734 = vsel %vm733, %v724, %v732
          %vm735 = vcmask 1044484
          %v736 = vsel %vm735, %v725, %v734
          %vm737 = vcmask 1045509
          %v738 = vsel %vm737, %v726, %v736
          %vm739 = vcmask 1046534
          %v740 = vsel %vm739, %v727, %v738
          %vm741 = vcmask 1047559
          %v742 = vsel %vm741, %v728, %v740
          %v744 = vsel %vm598, %v742, 0.0
          %v745 = vld [vmem:[#allocation2] sm:$0xff]
          %vm746 = vcmask 64512
          %v748 = vsel %vm746, %v744, 0
          %750 = vmatpush.msra.mxu0 0.0
          %751 = vmatpush.msra.mxu0 0.0
          %752 = vmatpush.msra.mxu0 0.0
          %753 = vmatpush.msra.mxu0 0.0
          %754 = vmatpush.msra.mxu0 0.0
          %755 = vmatpush.msra.mxu0 0.0
          %756 = vmatpush.msra.mxu0 0.0
          %757 = vmatpush.msra.mxu0 0.0
          %758 = vmatpush.msra.mxu0 0.0
          %759 = vmatpush.msra.mxu0 0.0
          %760 = vmatpush.msra.mxu0 0.0
          %761 = vmatpush.msra.mxu0 0.0
          %762 = vmatpush.msra.mxu0 0.0
          %763 = vmatpush.msra.mxu0 0.0
          %764 = vmatpush.msra.mxu0 0.0
          %765 = vmatpush.msra.mxu0 %v564
          %766 = vmatmul.f32.gmra.mxu0 %v748
          %v767 = vpop.f32.mrf.mxu0
          %v768 = vadd.f32 0.0, %v767
          %769 = vdwg.mxu0
          %v770 = vadd.f32 %v745, %v768
          %771 = vst [vmem:[#allocation2] sm:$0xff] %v770
        $region96: #{tpu_custom_call.1} parent=59 // pred_fallthru
          _
        %p772 = scmp.eq.s32.totalorder %s39, 1
        // Predicated region
        $region97: #{tpu_custom_call.1} parent=59 // pred_check
          %p773 = pneg %p772
        $region98: #{tpu_custom_call.1} parent=59 // pred_check_branch
          %775 = sbr.rel (%p773) target = $region100
        $region99: #{tpu_custom_call.1} parent=59 // pred_region
          %v776 = vld [vmem:[%s449] sm:$0xff]
          %v777 = vld [vmem:[%s2] sm:$0x1]
          %v778 = vmul.f32 %v776, %v776
          %779 = vadd.xlane.f32.xlu0 %v778
          %v780 = vpop.xlane.xlu0 %779
          %v781 = vrcp.pop 128.0
          %v782 = vmul.f32 128.0, %v781
          %v783 = vsub.f32 1.0, %v782
          %v784 = vmul.f32 %v781, %v783
          %v785 = vadd.f32 %v781, %v784
          %vm786 = vweird.f32 %v781
          %v787 = vsel %vm786, %v781, %v785
          %v788 = vmul.f32 %v780, %v787
          %v789 = vadd.f32 %v788, 1e-06
          %v790 = vrsqrt.pop %v789
          %v791 = vmul.f32 %v790, %v789
          %v792 = vmul.f32 %v791, %v790
          %v793 = vmul.f32 0.5, %v792
          %v794 = vsub.f32 1.5, %v793
          %v795 = vmul.f32 %v790, %v794
          %vm796 = vweird.f32 %v789
          %vm797 = vweird.f32 %v790
          %vm798 = vmor %vm796, %vm797
          %v799 = vsel %vm798, %v790, %v795
          %v800 = vmul.f32 %v776, %v799
          %v802 = vperm.slane %v777, 0
          %v804 = vmul.f32 %v800, %v802
          %v805 = vld [vmem:[#allocation2] sm:$0xff]
          %v806 = vld [vmem:[#allocation8] sm:$0xff]
          %v807 = vld [vmem:[#allocation8 + $0x8] sm:$0xff]
          %v808 = vld [vmem:[#allocation8 + $0x10] sm:$0xff]
          %v809 = vld [vmem:[#allocation8 + $0x18] sm:$0xff]
          %v810 = vld [vmem:[#allocation8 + $0x20] sm:$0xff]
          %v811 = vld [vmem:[#allocation8 + $0x28] sm:$0xff]
          %v812 = vld [vmem:[#allocation8 + $0x30] sm:$0xff]
          %v813 = vld [vmem:[#allocation8 + $0x38] sm:$0xff]
          %v814 = vld [vmem:[#allocation8 + $0x40] sm:$0xff]
          %v815 = vld [vmem:[#allocation8 + $0x48] sm:$0xff]
          %v816 = vld [vmem:[#allocation8 + $0x50] sm:$0xff]
          %v817 = vld [vmem:[#allocation8 + $0x58] sm:$0xff]
          %v818 = vld [vmem:[#allocation8 + $0x60] sm:$0xff]
          %v819 = vld [vmem:[#allocation8 + $0x68] sm:$0xff]
          %v820 = vld [vmem:[#allocation8 + $0x70] sm:$0xff]
          %v821 = vld [vmem:[#allocation8 + $0x78] sm:$0xff]
          %822 = vmatpush.msra.mxu0 %v821
          %823 = vmatpush.msra.mxu0 %v820
          %824 = vmatpush.msra.mxu0 %v819
          %825 = vmatpush.msra.mxu0 %v818
          %826 = vmatpush.msra.mxu0 %v817
          %827 = vmatpush.msra.mxu0 %v816
          %828 = vmatpush.msra.mxu0 %v815
          %829 = vmatpush.msra.mxu0 %v814
          %830 = vmatpush.msra.mxu0 %v813
          %831 = vmatpush.msra.mxu0 %v812
          %832 = vmatpush.msra.mxu0 %v811
          %833 = vmatpush.msra.mxu0 %v810
          %834 = vmatpush.msra.mxu0 %v809
          %835 = vmatpush.msra.mxu0 %v808
          %836 = vmatpush.msra.mxu0 %v807
          %837 = vmatpush.msra.mxu0 %v806
          %838 = vmatmul.f32.gmra.mxu0 %v805
          %v839 = vpop.f32.mrf.mxu0
          %v840 = vadd.f32 0.0, %v839
          %841 = vdwg.mxu0
          %v842 = vld [vmem:[#allocation9] sm:$0xff]
          %v843 = vld [vmem:[#allocation9 + $0x8] sm:$0xff]
          %v844 = vld [vmem:[#allocation9 + $0x10] sm:$0xff]
          %v845 = vld [vmem:[#allocation9 + $0x18] sm:$0xff]
          %v846 = vld [vmem:[#allocation9 + $0x20] sm:$0xff]
          %v847 = vld [vmem:[#allocation9 + $0x28] sm:$0xff]
          %v848 = vld [vmem:[#allocation9 + $0x30] sm:$0xff]
          %v849 = vld [vmem:[#allocation9 + $0x38] sm:$0xff]
          %v850 = vld [vmem:[#allocation9 + $0x40] sm:$0xff]
          %v851 = vld [vmem:[#allocation9 + $0x48] sm:$0xff]
          %v852 = vld [vmem:[#allocation9 + $0x50] sm:$0xff]
          %v853 = vld [vmem:[#allocation9 + $0x58] sm:$0xff]
          %v854 = vld [vmem:[#allocation9 + $0x60] sm:$0xff]
          %v855 = vld [vmem:[#allocation9 + $0x68] sm:$0xff]
          %v856 = vld [vmem:[#allocation9 + $0x70] sm:$0xff]
          %v857 = vld [vmem:[#allocation9 + $0x78] sm:$0xff]
          %858 = vmatpush.msra.mxu0 %v857
          %859 = vmatpush.msra.mxu0 %v856
          %860 = vmatpush.msra.mxu0 %v855
          %861 = vmatpush.msra.mxu0 %v854
          %862 = vmatpush.msra.mxu0 %v853
          %863 = vmatpush.msra.mxu0 %v852
          %864 = vmatpush.msra.mxu0 %v851
          %865 = vmatpush.msra.mxu0 %v850
          %866 = vmatpush.msra.mxu0 %v849
          %867 = vmatpush.msra.mxu0 %v848
          %868 = vmatpush.msra.mxu0 %v847
          %869 = vmatpush.msra.mxu0 %v846
          %870 = vmatpush.msra.mxu0 %v845
          %871 = vmatpush.msra.mxu0 %v844
          %872 = vmatpush.msra.mxu0 %v843
          %873 = vmatpush.msra.mxu0 %v842
          %874 = vmatmul.f32.gmra.mxu0 %v804
          %v875 = vpop.f32.mrf.mxu0
          %v876 = vadd.f32 0.0, %v875
          %877 = vdwg.mxu0
          %v878 = vxor.u32 %v840, 2147483648
          %v879 = vmul.f32 %v878, 1.442695
          %v880 = vpow.pop %v879
          %v881 = vadd.f32 %v880, 1.0
          %v882 = vrcp.pop %v881
          %v883 = vmul.f32 %v881, %v882
          %v884 = vsub.f32 1.0, %v883
          %v885 = vmul.f32 %v882, %v884
          %v886 = vadd.f32 %v882, %v885
          %vm887 = vweird.f32 %v881
          %vm888 = vweird.f32 %v882
          %vm889 = vmor %vm887, %vm888
          %v890 = vsel %vm889, %v882, %v886
          %v891 = vand.u32 2147483647, %v881
          %vm892 = vcmp.eq.f32.partialorder %v891, 8.507059e+37
          %v893 = vand.u32 %v881, 2147483648
          %v894 = vor.u32 1.1754944e-38, %v893
          %v895 = vsel %vm892, %v894, %v890
          %v896 = vmul.f32 1.0, %v895
          %v897 = vmul.f32 %v840, %v896
          %v898 = vld [vmem:[#allocation11] sm:$0xff]
          %v899 = vld [vmem:[#allocation11 + $0x8] sm:$0xff]
          %v900 = vld [vmem:[#allocation11 + $0x10] sm:$0xff]
          %v901 = vld [vmem:[#allocation11 + $0x18] sm:$0xff]
          %v902 = vld [vmem:[#allocation11 + $0x20] sm:$0xff]
          %v903 = vld [vmem:[#allocation11 + $0x28] sm:$0xff]
          %v904 = vld [vmem:[#allocation11 + $0x30] sm:$0xff]
          %v905 = vld [vmem:[#allocation11 + $0x38] sm:$0xff]
          %v906 = vld [vmem:[#allocation11 + $0x40] sm:$0xff]
          %v907 = vld [vmem:[#allocation11 + $0x48] sm:$0xff]
          %v908 = vld [vmem:[#allocation11 + $0x50] sm:$0xff]
          %v909 = vld [vmem:[#allocation11 + $0x58] sm:$0xff]
          %v910 = vld [vmem:[#allocation11 + $0x60] sm:$0xff]
          %v911 = vld [vmem:[#allocation11 + $0x68] sm:$0xff]
          %v912 = vld [vmem:[#allocation11 + $0x70] sm:$0xff]
          %v913 = vld [vmem:[#allocation11 + $0x78] sm:$0xff]
          %914 = vmatpush.msra.mxu0 %v913
          %915 = vmatpush.msra.mxu0 %v912
          %916 = vmatpush.msra.mxu0 %v911
          %917 = vmatpush.msra.mxu0 %v910
          %918 = vmatpush.msra.mxu0 %v909
          %919 = vmatpush.msra.mxu0 %v908
          %920 = vmatpush.msra.mxu0 %v907
          %921 = vmatpush.msra.mxu0 %v906
          %922 = vmatpush.msra.mxu0 %v905
          %923 = vmatpush.msra.mxu0 %v904
          %924 = vmatpush.msra.mxu0 %v903
          %925 = vmatpush.msra.mxu0 %v902
          %926 = vmatpush.msra.mxu0 %v901
          %927 = vmatpush.msra.mxu0 %v900
          %928 = vmatpush.msra.mxu0 %v899
          %929 = vmatpush.msra.mxu0 %v898
          %930 = vmatmul.f32.gmra.mxu0 %v897
          %v931 = vpop.f32.mrf.mxu0
          %v932 = vadd.f32 0.0, %v931
          %933 = vdwg.mxu0
          %v934 = vmul.f32 %v932, %v876
          %v935 = vadd.f32 %v776, %v934
          %v936 = vld [vmem:[%s7] sm:$0x1]
          %v937 = vmul.f32 %v935, %v935
          %938 = vadd.xlane.f32.xlu0 %v937
          %v939 = vpop.xlane.xlu0 %938
          %v940 = vmul.f32 %v939, %v787
          %v941 = vadd.f32 %v940, 1e-06
          %v942 = vrsqrt.pop %v941
          %v943 = vmul.f32 %v942, %v941
          %v944 = vmul.f32 %v943, %v942
          %v945 = vmul.f32 0.5, %v944
          %v946 = vsub.f32 1.5, %v945
          %v947 = vmul.f32 %v942, %v946
          %vm948 = vweird.f32 %v941
          %vm949 = vweird.f32 %v942
          %vm950 = vmor %vm948, %vm949
          %v951 = vsel %vm950, %v942, %v947
          %v952 = vmul.f32 %v935, %v951
          %v954 = vperm.slane %v936, 0
          %v956 = vmul.f32 %v952, %v954
          %v957 = vld [vmem:[#allocation12] sm:$0xff]
          %v958 = vld [vmem:[#allocation12 + $0x8] sm:$0xff]
          %v959 = vld [vmem:[#allocation12 + $0x10] sm:$0xff]
          %v960 = vld [vmem:[#allocation12 + $0x18] sm:$0xff]
          %v961 = vld [vmem:[#allocation12 + $0x20] sm:$0xff]
          %v962 = vld [vmem:[#allocation12 + $0x28] sm:$0xff]
          %v963 = vld [vmem:[#allocation12 + $0x30] sm:$0xff]
          %v964 = vld [vmem:[#allocation12 + $0x38] sm:$0xff]
          %v965 = vld [vmem:[#allocation12 + $0x40] sm:$0xff]
          %v966 = vld [vmem:[#allocation12 + $0x48] sm:$0xff]
          %v967 = vld [vmem:[#allocation12 + $0x50] sm:$0xff]
          %v968 = vld [vmem:[#allocation12 + $0x58] sm:$0xff]
          %v969 = vld [vmem:[#allocation12 + $0x60] sm:$0xff]
          %v970 = vld [vmem:[#allocation12 + $0x68] sm:$0xff]
          %v971 = vld [vmem:[#allocation12 + $0x70] sm:$0xff]
          %v972 = vld [vmem:[#allocation12 + $0x78] sm:$0xff]
          %v973 = vld [vmem:[#allocation12 + $0x80] sm:$0xff]
          %v974 = vld [vmem:[#allocation12 + $0x88] sm:$0xff]
          %v975 = vld [vmem:[#allocation12 + $0x90] sm:$0xff]
          %v976 = vld [vmem:[#allocation12 + $0x98] sm:$0xff]
          %v977 = vld [vmem:[#allocation12 + $0xa0] sm:$0xff]
          %v978 = vld [vmem:[#allocation12 + $0xa8] sm:$0xff]
          %v979 = vld [vmem:[#allocation12 + $0xb0] sm:$0xff]
          %v980 = vld [vmem:[#allocation12 + $0xb8] sm:$0xff]
          %v981 = vld [vmem:[#allocation12 + $0xc0] sm:$0xff]
          %v982 = vld [vmem:[#allocation12 + $0xc8] sm:$0xff]
          %v983 = vld [vmem:[#allocation12 + $0xd0] sm:$0xff]
          %v984 = vld [vmem:[#allocation12 + $0xd8] sm:$0xff]
          %v985 = vld [vmem:[#allocation12 + $0xe0] sm:$0xff]
          %v986 = vld [vmem:[#allocation12 + $0xe8] sm:$0xff]
          %v987 = vld [vmem:[#allocation12 + $0xf0] sm:$0xff]
          %v988 = vld [vmem:[#allocation12 + $0xf8] sm:$0xff]
          %v989 = vld [vmem:[#allocation12 + $0x100] sm:$0xff]
          %v990 = vld [vmem:[#allocation12 + $0x108] sm:$0xff]
          %v991 = vld [vmem:[#allocation12 + $0x110] sm:$0xff]
          %v992 = vld [vmem:[#allocation12 + $0x118] sm:$0xff]
          %v993 = vld [vmem:[#allocation12 + $0x120] sm:$0xff]
          %v994 = vld [vmem:[#allocation12 + $0x128] sm:$0xff]
          %v995 = vld [vmem:[#allocation12 + $0x130] sm:$0xff]
          %v996 = vld [vmem:[#allocation12 + $0x138] sm:$0xff]
          %v997 = vld [vmem:[#allocation12 + $0x140] sm:$0xff]
          %v998 = vld [vmem:[#allocation12 + $0x148] sm:$0xff]
          %v999 = vld [vmem:[#allocation12 + $0x150] sm:$0xff]
          %v1000 = vld [vmem:[#allocation12 + $0x158] sm:$0xff]
          %v1001 = vld [vmem:[#allocation12 + $0x160] sm:$0xff]
          %v1002 = vld [vmem:[#allocation12 + $0x168] sm:$0xff]
          %v1003 = vld [vmem:[#allocation12 + $0x170] sm:$0xff]
          %v1004 = vld [vmem:[#allocation12 + $0x178] sm:$0xff]
          %v1005 = vld [vmem:[#allocation12 + $0x180] sm:$0xff]
          %v1006 = vld [vmem:[#allocation12 + $0x188] sm:$0xff]
          %v1007 = vld [vmem:[#allocation12 + $0x190] sm:$0xff]
          %v1008 = vld [vmem:[#allocation12 + $0x198] sm:$0xff]
          %v1009 = vld [vmem:[#allocation12 + $0x1a0] sm:$0xff]
          %v1010 = vld [vmem:[#allocation12 + $0x1a8] sm:$0xff]
          %v1011 = vld [vmem:[#allocation12 + $0x1b0] sm:$0xff]
          %v1012 = vld [vmem:[#allocation12 + $0x1b8] sm:$0xff]
          %v1013 = vld [vmem:[#allocation12 + $0x1c0] sm:$0xff]
          %v1014 = vld [vmem:[#allocation12 + $0x1c8] sm:$0xff]
          %v1015 = vld [vmem:[#allocation12 + $0x1d0] sm:$0xff]
          %v1016 = vld [vmem:[#allocation12 + $0x1d8] sm:$0xff]
          %v1017 = vld [vmem:[#allocation12 + $0x1e0] sm:$0xff]
          %v1018 = vld [vmem:[#allocation12 + $0x1e8] sm:$0xff]
          %v1019 = vld [vmem:[#allocation12 + $0x1f0] sm:$0xff]
          %v1020 = vld [vmem:[#allocation12 + $0x1f8] sm:$0xff]
          %1021 = vmatpush.msra.mxu0 %v1017
          %1022 = vmatpush.msra.mxu0 %v1013
          %1023 = vmatpush.msra.mxu0 %v1009
          %1024 = vmatpush.msra.mxu0 %v1005
          %1025 = vmatpush.msra.mxu0 %v1001
          %1026 = vmatpush.msra.mxu0 %v997
          %1027 = vmatpush.msra.mxu0 %v993
          %1028 = vmatpush.msra.mxu0 %v989
          %1029 = vmatpush.msra.mxu0 %v985
          %1030 = vmatpush.msra.mxu0 %v981
          %1031 = vmatpush.msra.mxu0 %v977
          %1032 = vmatpush.msra.mxu0 %v973
          %1033 = vmatpush.msra.mxu0 %v969
          %1034 = vmatpush.msra.mxu0 %v965
          %1035 = vmatpush.msra.mxu0 %v961
          %1036 = vmatpush.msra.mxu0 %v957
          %1037 = vmatmul.f32.gmra.mxu0 %v956
          %v1038 = vpop.f32.mrf.mxu0
          %v1039 = vadd.f32 0.0, %v1038
          %1040 = vdwg.mxu0
          %1041 = vmatpush.msra.mxu0 %v1018
          %1042 = vmatpush.msra.mxu0 %v1014
          %1043 = vmatpush.msra.mxu0 %v1010
          %1044 = vmatpush.msra.mxu0 %v1006
          %1045 = vmatpush.msra.mxu0 %v1002
          %1046 = vmatpush.msra.mxu0 %v998
          %1047 = vmatpush.msra.mxu0 %v994
          %1048 = vmatpush.msra.mxu0 %v990
          %1049 = vmatpush.msra.mxu0 %v986
          %1050 = vmatpush.msra.mxu0 %v982
          %1051 = vmatpush.msra.mxu0 %v978
          %1052 = vmatpush.msra.mxu0 %v974
          %1053 = vmatpush.msra.mxu0 %v970
          %1054 = vmatpush.msra.mxu0 %v966
          %1055 = vmatpush.msra.mxu0 %v962
          %1056 = vmatpush.msra.mxu0 %v958
          %1057 = vmatmul.f32.gmra.mxu0 %v956
          %v1058 = vpop.f32.mrf.mxu0
          %v1059 = vadd.f32 0.0, %v1058
          %1060 = vdwg.mxu0
          %1061 = vmatpush.msra.mxu0 %v1019
          %1062 = vmatpush.msra.mxu0 %v1015
          %1063 = vmatpush.msra.mxu0 %v1011
          %1064 = vmatpush.msra.mxu0 %v1007
          %1065 = vmatpush.msra.mxu0 %v1003
          %1066 = vmatpush.msra.mxu0 %v999
          %1067 = vmatpush.msra.mxu0 %v995
          %1068 = vmatpush.msra.mxu0 %v991
          %1069 = vmatpush.msra.mxu0 %v987
          %1070 = vmatpush.msra.mxu0 %v983
          %1071 = vmatpush.msra.mxu0 %v979
          %1072 = vmatpush.msra.mxu0 %v975
          %1073 = vmatpush.msra.mxu0 %v971
          %1074 = vmatpush.msra.mxu0 %v967
          %1075 = vmatpush.msra.mxu0 %v963
          %1076 = vmatpush.msra.mxu0 %v959
          %1077 = vmatmul.f32.gmra.mxu0 %v956
          %v1078 = vpop.f32.mrf.mxu0
          %v1079 = vadd.f32 0.0, %v1078
          %1080 = vdwg.mxu0
          %1081 = vmatpush.msra.mxu0 %v1020
          %1082 = vmatpush.msra.mxu0 %v1016
          %1083 = vmatpush.msra.mxu0 %v1012
          %1084 = vmatpush.msra.mxu0 %v1008
          %1085 = vmatpush.msra.mxu0 %v1004
          %1086 = vmatpush.msra.mxu0 %v1000
          %1087 = vmatpush.msra.mxu0 %v996
          %1088 = vmatpush.msra.mxu0 %v992
          %1089 = vmatpush.msra.mxu0 %v988
          %1090 = vmatpush.msra.mxu0 %v984
          %1091 = vmatpush.msra.mxu0 %v980
          %1092 = vmatpush.msra.mxu0 %v976
          %1093 = vmatpush.msra.mxu0 %v972
          %1094 = vmatpush.msra.mxu0 %v968
          %1095 = vmatpush.msra.mxu0 %v964
          %1096 = vmatpush.msra.mxu0 %v960
          %1097 = vmatmul.f32.gmra.mxu0 %v956
          %v1098 = vpop.f32.mrf.mxu0
          %v1099 = vadd.f32 0.0, %v1098
          %1100 = vdwg.mxu0
          %v1101 = vxor.u32 %v1079, 2147483648
          %v1102 = vxor.u32 %v1099, 2147483648
          %v1103 = vmul.f32 %v1101, 1.442695
          %v1104 = vpow.pop %v1103
          %v1105 = vmul.f32 %v1102, 1.442695
          %v1106 = vpow.pop %v1105
          %v1107 = vadd.f32 %v1104, 1.0
          %v1108 = vadd.f32 %v1106, 1.0
          %v1109 = vrcp.pop %v1107
          %v1110 = vmul.f32 %v1107, %v1109
          %v1111 = vsub.f32 1.0, %v1110
          %v1112 = vmul.f32 %v1109, %v1111
          %v1113 = vadd.f32 %v1109, %v1112
          %vm1114 = vweird.f32 %v1107
          %vm1115 = vweird.f32 %v1109
          %vm1116 = vmor %vm1114, %vm1115
          %v1117 = vsel %vm1116, %v1109, %v1113
          %v1118 = vand.u32 2147483647, %v1107
          %vm1119 = vcmp.eq.f32.partialorder %v1118, 8.507059e+37
          %v1120 = vand.u32 %v1107, 2147483648
          %v1121 = vor.u32 1.1754944e-38, %v1120
          %v1122 = vsel %vm1119, %v1121, %v1117
          %v1123 = vmul.f32 1.0, %v1122
          %v1124 = vrcp.pop %v1108
          %v1125 = vmul.f32 %v1108, %v1124
          %v1126 = vsub.f32 1.0, %v1125
          %v1127 = vmul.f32 %v1124, %v1126
          %v1128 = vadd.f32 %v1124, %v1127
          %vm1129 = vweird.f32 %v1108
          %vm1130 = vweird.f32 %v1124
          %vm1131 = vmor %vm1129, %vm1130
          %v1132 = vsel %vm1131, %v1124, %v1128
          %v1133 = vand.u32 2147483647, %v1108
          %vm1134 = vcmp.eq.f32.partialorder %v1133, 8.507059e+37
          %v1135 = vand.u32 %v1108, 2147483648
          %v1136 = vor.u32 1.1754944e-38, %v1135
          %v1137 = vsel %vm1134, %v1136, %v1132
          %v1138 = vmul.f32 1.0, %v1137
          %v1139 = vmul.f32 %v1079, %v1123
          %v1140 = vmul.f32 %v1099, %v1138
          %v1141 = vmul.f32 %v1039, %v1139
          %v1142 = vmul.f32 %v1059, %v1140
          %v1143 = vld [vmem:[#allocation14] sm:$0xff]
          %v1144 = vld [vmem:[#allocation14 + $0x8] sm:$0xff]
          %v1145 = vld [vmem:[#allocation14 + $0x10] sm:$0xff]
          %v1146 = vld [vmem:[#allocation14 + $0x18] sm:$0xff]
          %v1147 = vld [vmem:[#allocation14 + $0x20] sm:$0xff]
          %v1148 = vld [vmem:[#allocation14 + $0x28] sm:$0xff]
          %v1149 = vld [vmem:[#allocation14 + $0x30] sm:$0xff]
          %v1150 = vld [vmem:[#allocation14 + $0x38] sm:$0xff]
          %v1151 = vld [vmem:[#allocation14 + $0x40] sm:$0xff]
          %v1152 = vld [vmem:[#allocation14 + $0x48] sm:$0xff]
          %v1153 = vld [vmem:[#allocation14 + $0x50] sm:$0xff]
          %v1154 = vld [vmem:[#allocation14 + $0x58] sm:$0xff]
          %v1155 = vld [vmem:[#allocation14 + $0x60] sm:$0xff]
          %v1156 = vld [vmem:[#allocation14 + $0x68] sm:$0xff]
          %v1157 = vld [vmem:[#allocation14 + $0x70] sm:$0xff]
          %v1158 = vld [vmem:[#allocation14 + $0x78] sm:$0xff]
          %v1159 = vld [vmem:[#allocation14 + $0x80] sm:$0xff]
          %v1160 = vld [vmem:[#allocation14 + $0x88] sm:$0xff]
          %v1161 = vld [vmem:[#allocation14 + $0x90] sm:$0xff]
          %v1162 = vld [vmem:[#allocation14 + $0x98] sm:$0xff]
          %v1163 = vld [vmem:[#allocation14 + $0xa0] sm:$0xff]
          %v1164 = vld [vmem:[#allocation14 + $0xa8] sm:$0xff]
          %v1165 = vld [vmem:[#allocation14 + $0xb0] sm:$0xff]
          %v1166 = vld [vmem:[#allocation14 + $0xb8] sm:$0xff]
          %v1167 = vld [vmem:[#allocation14 + $0xc0] sm:$0xff]
          %v1168 = vld [vmem:[#allocation14 + $0xc8] sm:$0xff]
          %v1169 = vld [vmem:[#allocation14 + $0xd0] sm:$0xff]
          %v1170 = vld [vmem:[#allocation14 + $0xd8] sm:$0xff]
          %v1171 = vld [vmem:[#allocation14 + $0xe0] sm:$0xff]
          %v1172 = vld [vmem:[#allocation14 + $0xe8] sm:$0xff]
          %v1173 = vld [vmem:[#allocation14 + $0xf0] sm:$0xff]
          %v1174 = vld [vmem:[#allocation14 + $0xf8] sm:$0xff]
          %1175 = vmatpush.msra.mxu0 %v1158
          %1176 = vmatpush.msra.mxu0 %v1157
          %1177 = vmatpush.msra.mxu0 %v1156
          %1178 = vmatpush.msra.mxu0 %v1155
          %1179 = vmatpush.msra.mxu0 %v1154
          %1180 = vmatpush.msra.mxu0 %v1153
          %1181 = vmatpush.msra.mxu0 %v1152
          %1182 = vmatpush.msra.mxu0 %v1151
          %1183 = vmatpush.msra.mxu0 %v1150
          %1184 = vmatpush.msra.mxu0 %v1149
          %1185 = vmatpush.msra.mxu0 %v1148
          %1186 = vmatpush.msra.mxu0 %v1147
          %1187 = vmatpush.msra.mxu0 %v1146
          %1188 = vmatpush.msra.mxu0 %v1145
          %1189 = vmatpush.msra.mxu0 %v1144
          %1190 = vmatpush.msra.mxu0 %v1143
          %1191 = vmatmul.f32.gmra.mxu0 %v1141
          %v1192 = vpop.f32.mrf.mxu0
          %v1193 = vadd.f32 0.0, %v1192
          %1194 = vdwg.mxu0
          %1195 = vmatpush.msra.mxu0 %v1174
          %1196 = vmatpush.msra.mxu0 %v1173
          %1197 = vmatpush.msra.mxu0 %v1172
          %1198 = vmatpush.msra.mxu0 %v1171
          %1199 = vmatpush.msra.mxu0 %v1170
          %1200 = vmatpush.msra.mxu0 %v1169
          %1201 = vmatpush.msra.mxu0 %v1168
          %1202 = vmatpush.msra.mxu0 %v1167
          %1203 = vmatpush.msra.mxu0 %v1166
          %1204 = vmatpush.msra.mxu0 %v1165
          %1205 = vmatpush.msra.mxu0 %v1164
          %1206 = vmatpush.msra.mxu0 %v1163
          %1207 = vmatpush.msra.mxu0 %v1162
          %1208 = vmatpush.msra.mxu0 %v1161
          %1209 = vmatpush.msra.mxu0 %v1160
          %1210 = vmatpush.msra.mxu0 %v1159
          %1211 = vmatmul.f32.gmra.mxu0 %v1142
          %v1212 = vpop.f32.mrf.mxu0
          %v1213 = vadd.f32 %v1193, %v1212
          %1214 = vdwg.mxu0
          %v1215 = vadd.f32 %v935, %v1213
          %1216 = vst [vmem:[%s526] sm:$0xff] %v1215
        $region100: #{tpu_custom_call.1} parent=59 // pred_fallthru
          _
        %s1217 = sand.u32 %s285, 1
        %s1218 = scalar_lea.sflag [#allocation5], %s1217
        %s1219 = sand.u32 %s285, 1
        %s1220 = smul.addr %s1219, 8
        %s1221 = scalar_lea.vmem [#allocation15], %s1220
        // Predicated region
        $region101: #{tpu_custom_call.1} parent=59 // pred_check
          %p1222 = pneg %p295
        $region102: #{tpu_custom_call.1} parent=59 // pred_check_branch
          %1224 = sbr.rel (%p1222) target = $region104
        $region103: #{tpu_custom_call.1} parent=59 // pred_region
          %1226 = vsyncadd %s1218, 0
          %s1227 = smul.addr %s37, 2
          %s1228 = sadd.s32 %s38, %s1227
          %s1229 = smul.addr %s1228, 8
          %s1230 = scalar_lea.hbm %s10, %s1229
          %s1232 = sshll.u32 %s1221, 4
          %s1233 = int_to_ptr.vmem [resolvable:$true] %s1232
          %s1234 = sshll.u32 %s1230, 4
          %s1235 = int_to_ptr.hbm [resolvable:$true] %s1234
          %1237 = dma.vmem_to_hbm [thread:$0]  %s1233, 128, %s1235, %s1218
        $region104: #{tpu_custom_call.1} parent=59 // pred_fallthru
          _
      $region60: #{tpu_custom_call.1} parent=5 // pred_fallthru
        _
      %p1238 = scmp.le.s32.totalorder 2, %s27
      // Predicated region
      $region105: #{tpu_custom_call.1} parent=5 // pred_check
        %p1239 = pneg %p1238
      $region106: #{tpu_custom_call.1} parent=5 // pred_check_branch
        %1241 = sbr.rel (%p1239) target = $region108
      $region107: #{tpu_custom_call.1} parent=5 // pred_region
        %s1242 = ssub.s32 %s27, 2
        // Predicated region
        $region109: #{tpu_custom_call.1} parent=107 // pred_check
          %p1243 = pneg %p301
        $region110: #{tpu_custom_call.1} parent=107 // pred_check_branch
          %1245 = sbr.rel (%p1243) target = $region112
        $region111: #{tpu_custom_call.1} parent=107 // pred_region
          %s1246 = sand.u32 %s286, 1
          %s1247 = scalar_lea.sflag [#allocation5], %s1246
          %s1248 = sand.u32 %s286, 1
          %s1249 = smul.addr %s1248, 8
          %s1250 = scalar_lea.vmem [#allocation15], %s1249
          %1252 = dma.done %s1247, 128
        $region112: #{tpu_custom_call.1} parent=107 // pred_fallthru
          _
      $region108: #{tpu_custom_call.1} parent=5 // pred_fallthru
        _
    $region6: #{tpu_custom_call.1} parent=1 // loop_footer
      %s31 = sadd.s32 1, %s27
    $region7: #{tpu_custom_call.1} parent=1 // loop_footer_branch
      %26 = sbr.rel target = $region3
    $region8: #{tpu_custom_call.1} parent=1 // loop_exit
      _
    %1253 = vsyncpa [#allocation4], 1
    %s1254 = scalar_lea.sflag [#allocation4], 1
    %1255 = vsyncpa %s1254, 1
    %1256 = vsyncpa [#allocation7], 1
    %s1257 = scalar_lea.sflag [#allocation7], 1
    %1258 = vsyncpa %s1257, 1
    %1259 = vsyncpa [#allocation10], 1
    %1260 = vsyncpa [#allocation13], 1
    %1261 = vsyncpa [#allocation5], 1
    %s1262 = scalar_lea.sflag [#allocation5], 1
    %1263 = vsyncpa %s1262, 1

// kernel: tpu_custom_call.1
$region0: #{tpu_custom_call.1}
  #allocation0 [shape = 'u32[]', space=smem, size = 0x4, offset = 0x4, fixed_abs, tag = 'smem constant byte address 0x4 - core index']
  #allocation1 [shape = 'u32[72,128]{1,0:T(1,128)}', space=vmem, size = 0x9000, scoped, tag = 'internal scratch']
  #allocation2 [shape = 'f32[8,128]{1,0:T(8,128)}', space=vmem, size = 0x1000, scoped, tag = 'scratch operand']
  %s0 = inlined_call_operand.hbm [shape: f32[2,16,128], index: 0, kind: input, shape index: {}]
  %s1 = inlined_call_operand.hbm [shape: f32[2,16,128], index: 1, kind: input, shape index: {}]
  %s2 = inlined_call_operand.vmem [shape: f32[1,128], index: 2, kind: input, shape index: {}]
  %s3 = inlined_call_operand.vmem [shape: f32[1,128], index: 3, kind: input, shape index: {}]
  %s4 = inlined_call_operand.hbm [shape: f32[128,128], index: 4, kind: input, shape index: {}]
  %s5 = inlined_call_operand.hbm [shape: f32[128,128], index: 5, kind: input, shape index: {}]
  %s6 = inlined_call_operand.hbm [shape: f32[128,128], index: 6, kind: input, shape index: {}]
  %s7 = inlined_call_operand.vmem [shape: f32[1,128], index: 7, kind: input, shape index: {}]
  %s8 = inlined_call_operand.hbm [shape: f32[128,512], index: 8, kind: input, shape index: {}]
  %s9 = inlined_call_operand.hbm [shape: f32[256,128], index: 9, kind: input, shape index: {}]
  %s10 = inlined_call_operand.hbm [shape: f32[2,16,128], index: 10, kind: output, shape index: {}]
  %s11 = sld [smem:[#allocation0]]
  $region113: #{tpu_custom_call.1} parent=0
    _
  %s13 = ssub.s32 1, %s11
  %s14 = scalar_select 0, %s13, %s11
  $region1: #{tpu_custom_call.1} parent=0
    #allocation3 [shape = 'u8[8192]{0}', space=vmem, size = 0x2000, scoped, tag = 'input window, operand 0']
    #allocation4 [shape = 's32[2]{0}', space=sflag, size = 0x8, scoped, tag = 'scoped memory for tpu_custom_call.1']
    #allocation5 [shape = 's32[2]{0}', space=sflag, size = 0x8, scoped, tag = 'scoped memory for tpu_custom_call.1']
    #allocation6 [shape = 'u8[8192]{0}', space=vmem, size = 0x2000, scoped, tag = 'input window, operand 1']
    #allocation7 [shape = 's32[2]{0}', space=sflag, size = 0x8, scoped, tag = 'scoped memory for tpu_custom_call.1']
    #allocation8 [shape = 'u8[65536]{0}', space=vmem, size = 0x10000, scoped, tag = 'input window, operand 4, single buffered']
    #allocation9 [shape = 'u8[65536]{0}', space=vmem, size = 0x10000, scoped, tag = 'input window, operand 5, single buffered']
    #allocation10 [shape = 's32[1]{0}', space=sflag, size = 0x4, scoped, tag = 'scoped memory for tpu_custom_call.1']
    #allocation11 [shape = 'u8[65536]{0}', space=vmem, size = 0x10000, scoped, tag = 'input window, operand 6, single buffered']
    #allocation12 [shape = 'u8[262144]{0}', space=vmem, size = 0x40000, scoped, tag = 'input window, operand 8, single buffered']
    #allocation13 [shape = 's32[1]{0}', space=sflag, size = 0x4, scoped, tag = 'scoped memory for tpu_custom_call.1']
    #allocation14 [shape = 'u8[131072]{0}', space=vmem, size = 0x20000, scoped, tag = 'input window, operand 9, single buffered']
    #allocation15 [shape = 'u8[8192]{0}', space=vmem, size = 0x2000, scoped, tag = 'output window, operand 0']
    %15 = vsyncpa [#allocation4], 0
    %s16 = scalar_lea.sflag [#allocation4], 1
    %17 = vsyncpa %s16, 0
    %18 = vsyncpa [#allocation7], 0
    %s19 = scalar_lea.sflag [#allocation7], 1
    %20 = vsyncpa %s19, 0
    %21 = vsyncpa [#allocation10], 0
    %22 = vsyncpa [#allocation13], 0
    %23 = vsyncpa [#allocation5], 0
    %s24 = scalar_lea.sflag [#allocation5], 1
    %25 = vsyncpa %s24, 0
    loop: start=0, step=1, limit=10
    $region2: #{tpu_custom_call.1} parent=1 // loop_pre_header
      _
    $region3: #{tpu_custom_call.1} parent=1 // loop_header
      %s27 = sphi 0, %s31
      %p28 = scmp.ge.s32.totalorder %s27, 10
      %s34 = sphi 0, %s53
      %s35 = sphi 0, %s49
      %s36 = sphi 0, %s45
      %s37 = sphi 0, %s34
      %s38 = sphi 0, %s35
      %s39 = sphi 0, %s36
      %s40 = sphi 0, %s37
      %s41 = sphi 0, %s38
      %s42 = sphi 0, %s39
      %s58 = sphi 0, %s60
      %s61 = sphi 0, %s58
      %s62 = sphi 0, %s61
      %s78 = sphi 0, %s62
      %s86 = sphi 0, %s88
      %s89 = sphi 0, %s86
      %s90 = sphi 0, %s89
      %s106 = sphi 0, %s90
      %s110 = sphi 0, %s110
      %s112 = sphi 0, %s110
      %s113 = sphi 0, %s112
      %s127 = sphi 0, %s113
      %s131 = sphi 0, %s131
      %s133 = sphi 0, %s131
      %s134 = sphi 0, %s133
      %s148 = sphi 0, %s134
      %s152 = sphi 0, %s152
      %s154 = sphi 0, %s152
      %s155 = sphi 0, %s154
      %s169 = sphi 0, %s155
      %s173 = sphi 0, %s173
      %s175 = sphi 0, %s173
      %s176 = sphi 0, %s175
      %s190 = sphi 0, %s176
      %s194 = sphi 0, %s194
      %s196 = sphi 0, %s194
      %s197 = sphi 0, %s196
      %s211 = sphi 0, %s197
      %s215 = sphi 0, %s215
      %s217 = sphi 0, %s215
      %s218 = sphi 0, %s217
      %s232 = sphi 0, %s218
      %s236 = sphi 0, %s236
      %s238 = sphi 0, %s236
      %s239 = sphi 0, %s238
      %s253 = sphi 0, %s239
      %s257 = sphi 0, %s257
      %s259 = sphi 0, %s257
      %s260 = sphi 0, %s259
      %s274 = sphi 0, %s260
      %s282 = sphi 0, %s284
      %s285 = sphi 0, %s282
      %s286 = sphi 0, %s285
      %s302 = sphi 0, %s286
    $region4: #{tpu_custom_call.1} parent=1 // loop_header_branch
      %30 = sbr.rel (%p28) target = $region8
    $region5: #{tpu_custom_call.1} parent=1 // loop_body
      %s32 = ssub.s32 %s27, 1
      %s33 = ssub.s32 %s27, 2
      %s43 = sadd.s32 1, %s36
      %p44 = scmp.ge.s32.totalorder %s43, 2
      %s45 = scalar_select %p44, 0, %s43
      %s46 = sadd.s32 1, %s35
      %s47 = scalar_select %p44, %s46, %s35
      %p48 = scmp.ge.s32.totalorder %s47, 2
      %s49 = scalar_select %p48, 0, %s47
      %s50 = sadd.s32 1, %s34
      %s51 = scalar_select %p48, %s50, %s34
      %p52 = scmp.ge.s32.totalorder %s51, 2
      %s53 = scalar_select %p52, 0, %s51
      %s54 = ssub.s32 %s34, %s53
      %s55 = ssub.s32 %s35, %s49
      %s56 = sor.u32 %s54, %s55
      %p57 = scmp.eq.s32.totalorder %s56, 0
      %s59 = sadd.s32 %s58, 1
      %s60 = scalar_select %p57, %s58, %s59
      %p63 = pneg %p57
      %p64 = scmp.eq.s32.totalorder %s27, 7
      %p65 = por %p63, %p64
      %p66 = scmp.ne.s32.totalorder %s58, %s61
      %p67 = scmp.eq.s32.totalorder %s27, 0
      %p68 = por %p66, %p67
      %p69 = scmp.ne.s32.totalorder %s58, %s61
      %p70 = scmp.eq.s32.totalorder %s32, 7
      %p71 = por %p69, %p70
      %p72 = scmp.ne.s32.totalorder %s61, %s62
      %p73 = scmp.eq.s32.totalorder %s32, 0
      %p74 = por %p72, %p73
      %p75 = scmp.ne.s32.totalorder %s61, %s62
      %p76 = scmp.eq.s32.totalorder %s33, 7
      %p77 = por %p75, %p76
      %p79 = scmp.ne.s32.totalorder %s62, %s78
      %p80 = scmp.eq.s32.totalorder %s33, 0
      %p81 = por %p79, %p80
      %s82 = ssub.s32 %s34, %s53
      %s83 = ssub.s32 %s36, %s45
      %s84 = sor.u32 %s82, %s83
      %p85 = scmp.eq.s32.totalorder %s84, 0
      %s87 = sadd.s32 %s86, 1
      %s88 = scalar_select %p85, %s86, %s87
      %p91 = pneg %p85
      %p92 = scmp.eq.s32.totalorder %s27, 7
      %p93 = por %p91, %p92
      %p94 = scmp.ne.s32.totalorder %s86, %s89
      %p95 = scmp.eq.s32.totalorder %s27, 0
      %p96 = por %p94, %p95
      %p97 = scmp.ne.s32.totalorder %s86, %s89
      %p98 = scmp.eq.s32.totalorder %s32, 7
      %p99 = por %p97, %p98
      %p100 = scmp.ne.s32.totalorder %s89, %s90
      %p101 = scmp.eq.s32.totalorder %s32, 0
      %p102 = por %p100, %p101
      %p103 = scmp.ne.s32.totalorder %s89, %s90
      %p104 = scmp.eq.s32.totalorder %s33, 7
      %p105 = por %p103, %p104
      %p107 = scmp.ne.s32.totalorder %s90, %s106
      %p108 = scmp.eq.s32.totalorder %s33, 0
      %p109 = por %p107, %p108
      %s111 = sadd.s32 %s110, 1
      %p114 = scmp.eq.s32.totalorder %s27, 7
      %p115 = scmp.ne.s32.totalorder %s110, %s112
      %p116 = scmp.eq.s32.totalorder %s27, 0
      %p117 = por %p115, %p116
      %p118 = scmp.ne.s32.totalorder %s110, %s112
      %p119 = scmp.eq.s32.totalorder %s32, 7
      %p120 = por %p118, %p119
      %p121 = scmp.ne.s32.totalorder %s112, %s113
      %p122 = scmp.eq.s32.totalorder %s32, 0
      %p123 = por %p121, %p122
      %p124 = scmp.ne.s32.totalorder %s112, %s113
      %p125 = scmp.eq.s32.totalorder %s33, 7
      %p126 = por %p124, %p125
      %p128 = scmp.ne.s32.totalorder %s113, %s127
      %p129 = scmp.eq.s32.totalorder %s33, 0
      %p130 = por %p128, %p129
      %s132 = sadd.s32 %s131, 1
      %p135 = scmp.eq.s32.totalorder %s27, 7
      %p136 = scmp.ne.s32.totalorder %s131, %s133
      %p137 = scmp.eq.s32.totalorder %s27, 0
      %p138 = por %p136, %p137
      %p139 = scmp.ne.s32.totalorder %s131, %s133
      %p140 = scmp.eq.s32.totalorder %s32, 7
      %p141 = por %p139, %p140
      %p142 = scmp.ne.s32.totalorder %s133, %s134
      %p143 = scmp.eq.s32.totalorder %s32, 0
      %p144 = por %p142, %p143
      %p145 = scmp.ne.s32.totalorder %s133, %s134
      %p146 = scmp.eq.s32.totalorder %s33, 7
      %p147 = por %p145, %p146
      %p149 = scmp.ne.s32.totalorder %s134, %s148
      %p150 = scmp.eq.s32.totalorder %s33, 0
      %p151 = por %p149, %p150
      %s153 = sadd.s32 %s152, 1
      %p156 = scmp.eq.s32.totalorder %s27, 7
      %p157 = scmp.ne.s32.totalorder %s152, %s154
      %p158 = scmp.eq.s32.totalorder %s27, 0
      %p159 = por %p157, %p158
      %p160 = scmp.ne.s32.totalorder %s152, %s154
      %p161 = scmp.eq.s32.totalorder %s32, 7
      %p162 = por %p160, %p161
      %p163 = scmp.ne.s32.totalorder %s154, %s155
      %p164 = scmp.eq.s32.totalorder %s32, 0
      %p165 = por %p163, %p164
      %p166 = scmp.ne.s32.totalorder %s154, %s155
      %p167 = scmp.eq.s32.totalorder %s33, 7
      %p168 = por %p166, %p167
      %p170 = scmp.ne.s32.totalorder %s155, %s169
      %p171 = scmp.eq.s32.totalorder %s33, 0
      %p172 = por %p170, %p171
      %s174 = sadd.s32 %s173, 1
      %p177 = scmp.eq.s32.totalorder %s27, 7
      %p178 = scmp.ne.s32.totalorder %s173, %s175
      %p179 = scmp.eq.s32.totalorder %s27, 0
      %p180 = por %p178, %p179
      %p181 = scmp.ne.s32.totalorder %s173, %s175
      %p182 = scmp.eq.s32.totalorder %s32, 7
      %p183 = por %p181, %p182
      %p184 = scmp.ne.s32.totalorder %s175, %s176
      %p185 = scmp.eq.s32.totalorder %s32, 0
      %p186 = por %p184, %p185
      %p187 = scmp.ne.s32.totalorder %s175, %s176
      %p188 = scmp.eq.s32.totalorder %s33, 7
      %p189 = por %p187, %p188
      %p191 = scmp.ne.s32.totalorder %s176, %s190
      %p192 = scmp.eq.s32.totalorder %s33, 0
      %p193 = por %p191, %p192
      %s195 = sadd.s32 %s194, 1
      %p198 = scmp.eq.s32.totalorder %s27, 7
      %p199 = scmp.ne.s32.totalorder %s194, %s196
      %p200 = scmp.eq.s32.totalorder %s27, 0
      %p201 = por %p199, %p200
      %p202 = scmp.ne.s32.totalorder %s194, %s196
      %p203 = scmp.eq.s32.totalorder %s32, 7
      %p204 = por %p202, %p203
      %p205 = scmp.ne.s32.totalorder %s196, %s197
      %p206 = scmp.eq.s32.totalorder %s32, 0
      %p207 = por %p205, %p206
      %p208 = scmp.ne.s32.totalorder %s196, %s197
      %p209 = scmp.eq.s32.totalorder %s33, 7
      %p210 = por %p208, %p209
      %p212 = scmp.ne.s32.totalorder %s197, %s211
      %p213 = scmp.eq.s32.totalorder %s33, 0
      %p214 = por %p212, %p213
      %s216 = sadd.s32 %s215, 1
      %p219 = scmp.eq.s32.totalorder %s27, 7
      %p220 = scmp.ne.s32.totalorder %s215, %s217
      %p221 = scmp.eq.s32.totalorder %s27, 0
      %p222 = por %p220, %p221
      %p223 = scmp.ne.s32.totalorder %s215, %s217
      %p224 = scmp.eq.s32.totalorder %s32, 7
      %p225 = por %p223, %p224
      %p226 = scmp.ne.s32.totalorder %s217, %s218
      %p227 = scmp.eq.s32.totalorder %s32, 0
      %p228 = por %p226, %p227
      %p229 = scmp.ne.s32.totalorder %s217, %s218
      %p230 = scmp.eq.s32.totalorder %s33, 7
      %p231 = por %p229, %p230
      %p233 = scmp.ne.s32.totalorder %s218, %s232
      %p234 = scmp.eq.s32.totalorder %s33, 0
      %p235 = por %p233, %p234
      %s237 = sadd.s32 %s236, 1
      %p240 = scmp.eq.s32.totalorder %s27, 7
      %p241 = scmp.ne.s32.totalorder %s236, %s238
      %p242 = scmp.eq.s32.totalorder %s27, 0
      %p243 = por %p241, %p242
      %p244 = scmp.ne.s32.totalorder %s236, %s238
      %p245 = scmp.eq.s32.totalorder %s32, 7
      %p246 = por %p244, %p245
      %p247 = scmp.ne.s32.totalorder %s238, %s239
      %p248 = scmp.eq.s32.totalorder %s32, 0
      %p249 = por %p247, %p248
      %p250 = scmp.ne.s32.totalorder %s238, %s239
      %p251 = scmp.eq.s32.totalorder %s33, 7
      %p252 = por %p250, %p251
      %p254 = scmp.ne.s32.totalorder %s239, %s253
      %p255 = scmp.eq.s32.totalorder %s33, 0
      %p256 = por %p254, %p255
      %s258 = sadd.s32 %s257, 1
      %p261 = scmp.eq.s32.totalorder %s27, 7
      %p262 = scmp.ne.s32.totalorder %s257, %s259
      %p263 = scmp.eq.s32.totalorder %s27, 0
      %p264 = por %p262, %p263
      %p265 = scmp.ne.s32.totalorder %s257, %s259
      %p266 = scmp.eq.s32.totalorder %s32, 7
      %p267 = por %p265, %p266
      %p268 = scmp.ne.s32.totalorder %s259, %s260
      %p269 = scmp.eq.s32.totalorder %s32, 0
      %p270 = por %p268, %p269
      %p271 = scmp.ne.s32.totalorder %s259, %s260
      %p272 = scmp.eq.s32.totalorder %s33, 7
      %p273 = por %p271, %p272
      %p275 = scmp.ne.s32.totalorder %s260, %s274
      %p276 = scmp.eq.s32.totalorder %s33, 0
      %p277 = por %p275, %p276
      %s278 = ssub.s32 %s34, %s53
      %s279 = ssub.s32 %s35, %s49
      %s280 = sor.u32 %s278, %s279
      %p281 = scmp.eq.s32.totalorder %s280, 0
      %s283 = sadd.s32 %s282, 1
      %s284 = scalar_select %p281, %s282, %s283
      %p287 = pneg %p281
      %p288 = scmp.eq.s32.totalorder %s27, 7
      %p289 = por %p287, %p288
      %p290 = scmp.ne.s32.totalorder %s282, %s285
      %p291 = scmp.eq.s32.totalorder %s27, 0
      %p292 = por %p290, %p291
      %p293 = scmp.ne.s32.totalorder %s282, %s285
      %p294 = scmp.eq.s32.totalorder %s32, 7
      %p295 = por %p293, %p294
      %p296 = scmp.ne.s32.totalorder %s285, %s286
      %p297 = scmp.eq.s32.totalorder %s32, 0
      %p298 = por %p296, %p297
      %p299 = scmp.ne.s32.totalorder %s285, %s286
      %p300 = scmp.eq.s32.totalorder %s33, 7
      %p301 = por %p299, %p300
      %p303 = scmp.ne.s32.totalorder %s286, %s302
      %p304 = scmp.eq.s32.totalorder %s33, 0
      %p305 = por %p303, %p304
      %p306 = scmp.le.s32.totalorder 1, %s27
      %p307 = scmp.lt.s32.totalorder %s27, 9
      %p308 = pnand %p306, %p307
      %p309 = pneg %p308
      // Predicated region
      $region9: #{tpu_custom_call.1} parent=5 // pred_check
        _
      $region10: #{tpu_custom_call.1} parent=5 // pred_check_branch
        %311 = sbr.rel (%p308) target = $region12
      $region11: #{tpu_custom_call.1} parent=5 // pred_region
        %s312 = ssub.s32 %s27, 1
        // Predicated region
        $region13: #{tpu_custom_call.1} parent=11 // pred_check
          %p313 = pneg %p123
        $region14: #{tpu_custom_call.1} parent=11 // pred_check_branch
          %315 = sbr.rel (%p313) target = $region16
        $region15: #{tpu_custom_call.1} parent=11 // pred_region
          _
        $region16: #{tpu_custom_call.1} parent=11 // pred_fallthru
          _
        // Predicated region
        $region17: #{tpu_custom_call.1} parent=11 // pred_check
          %p316 = pneg %p144
        $region18: #{tpu_custom_call.1} parent=11 // pred_check_branch
          %318 = sbr.rel (%p316) target = $region20
        $region19: #{tpu_custom_call.1} parent=11 // pred_region
          _
        $region20: #{tpu_custom_call.1} parent=11 // pred_fallthru
          _
        // Predicated region
        $region21: #{tpu_custom_call.1} parent=11 // pred_check
          %p319 = pneg %p165
        $region22: #{tpu_custom_call.1} parent=11 // pred_check_branch
          %321 = sbr.rel (%p319) target = $region24
        $region23: #{tpu_custom_call.1} parent=11 // pred_region
          %323 = vsyncadd [#allocation7], 0
          %s324 = sshll.u32 %s4, 4
          %s325 = int_to_ptr.hbm [resolvable:$true] %s324
          %s326 = sshll.u32 [#allocation8], 4
          %s327 = int_to_ptr.vmem [resolvable:$true] %s326
          %332 = dma.hbm_to_vmem [thread:$0]  %s325, 2048, %s327, [#allocation7], 128, 128, 8
        $region24: #{tpu_custom_call.1} parent=11 // pred_fallthru
          _
        // Predicated region
        $region25: #{tpu_custom_call.1} parent=11 // pred_check
          %p333 = pneg %p186
        $region26: #{tpu_custom_call.1} parent=11 // pred_check_branch
          %335 = sbr.rel (%p333) target = $region28
        $region27: #{tpu_custom_call.1} parent=11 // pred_region
          %337 = vsyncadd [#allocation10], 0
          %s338 = sshll.u32 %s5, 4
          %s339 = int_to_ptr.hbm [resolvable:$true] %s338
          %s340 = sshll.u32 [#allocation9], 4
          %s341 = int_to_ptr.vmem [resolvable:$true] %s340
          %346 = dma.hbm_to_vmem [thread:$0]  %s339, 2048, %s341, [#allocation10], 128, 128, 8
        $region28: #{tpu_custom_call.1} parent=11 // pred_fallthru
          _
        // Predicated region
        $region29: #{tpu_custom_call.1} parent=11 // pred_check
          %p347 = pneg %p207
        $region30: #{tpu_custom_call.1} parent=11 // pred_check_branch
          %349 = sbr.rel (%p347) target = $region32
        $region31: #{tpu_custom_call.1} parent=11 // pred_region
          %351 = vsyncadd [#allocation10], 0
          %s352 = sshll.u32 %s6, 4
          %s353 = int_to_ptr.hbm [resolvable:$true] %s352
          %s354 = sshll.u32 [#allocation11], 4
          %s355 = int_to_ptr.vmem [resolvable:$true] %s354
          %360 = dma.hbm_to_vmem [thread:$0]  %s353, 2048, %s355, [#allocation10], 128, 128, 8
        $region32: #{tpu_custom_call.1} parent=11 // pred_fallthru
          _
        // Predicated region
        $region33: #{tpu_custom_call.1} parent=11 // pred_check
          %p361 = pneg %p228
        $region34: #{tpu_custom_call.1} parent=11 // pred_check_branch
          %363 = sbr.rel (%p361) target = $region36
        $region35: #{tpu_custom_call.1} parent=11 // pred_region
          _
        $region36: #{tpu_custom_call.1} parent=11 // pred_fallthru
          _
        // Predicated region
        $region37: #{tpu_custom_call.1} parent=11 // pred_check
          %p364 = pneg %p249
        $region38: #{tpu_custom_call.1} parent=11 // pred_check_branch
          %366 = sbr.rel (%p364) target = $region40
        $region39: #{tpu_custom_call.1} parent=11 // pred_region
          %368 = vsyncadd [#allocation13], 0
          %s369 = sshll.u32 %s8, 4
          %s370 = int_to_ptr.hbm [resolvable:$true] %s369
          %s371 = sshll.u32 [#allocation12], 4
          %s372 = int_to_ptr.vmem [resolvable:$true] %s371
          %377 = dma.hbm_to_vmem [thread:$0]  %s370, 8192, %s372, [#allocation13], 512, 512, 32
        $region40: #{tpu_custom_call.1} parent=11 // pred_fallthru
          _
        // Predicated region
        $region41: #{tpu_custom_call.1} parent=11 // pred_check
          %p378 = pneg %p270
        $region42: #{tpu_custom_call.1} parent=11 // pred_check_branch
          %380 = sbr.rel (%p378) target = $region44
        $region43: #{tpu_custom_call.1} parent=11 // pred_region
          %382 = vsyncadd [#allocation13], 0
          %s383 = sshll.u32 %s9, 4
          %s384 = int_to_ptr.hbm [resolvable:$true] %s383
          %s385 = sshll.u32 [#allocation14], 4
          %s386 = int_to_ptr.vmem [resolvable:$true] %s385
          %391 = dma.hbm_to_vmem [thread:$0]  %s384, 4096, %s386, [#allocation13], 128, 128, 8
        $region44: #{tpu_custom_call.1} parent=11 // pred_fallthru
          _
      $region12: #{tpu_custom_call.1} parent=5 // pred_fallthru
        _
      %p392 = scmp.lt.s32.totalorder %s27, 8
      // Predicated region
      $region45: #{tpu_custom_call.1} parent=5 // pred_check
        %p393 = pneg %p392
      $region46: #{tpu_custom_call.1} parent=5 // pred_check_branch
        %395 = sbr.rel (%p393) target = $region48
      $region47: #{tpu_custom_call.1} parent=5 // pred_region
        // Predicated region
        $region49: #{tpu_custom_call.1} parent=47 // pred_check
          %p396 = pneg %p68
        $region50: #{tpu_custom_call.1} parent=47 // pred_check_branch
          %398 = sbr.rel (%p396) target = $region52
        $region51: #{tpu_custom_call.1} parent=47 // pred_region
          %s399 = sand.u32 %s58, 1
          %s400 = scalar_lea.sflag [#allocation4], %s399
          %s401 = sand.u32 %s58, 1
          %s402 = smul.addr %s401, 8
          %s403 = scalar_lea.vmem [#allocation3], %s402
          %405 = vsyncadd %s400, 0
          %s406 = smul.addr %s34, 2
          %s407 = sadd.s32 %s35, %s406
          %s408 = smul.addr %s407, 8
          %s409 = scalar_lea.hbm %s0, %s408
          %s411 = sshll.u32 %s409, 4
          %s412 = int_to_ptr.hbm [resolvable:$true] %s411
          %s413 = sshll.u32 %s403, 4
          %s414 = int_to_ptr.vmem [resolvable:$true] %s413
          %416 = dma.hbm_to_vmem [thread:$0]  %s412, 128, %s414, %s400
        $region52: #{tpu_custom_call.1} parent=47 // pred_fallthru
          _
        // Predicated region
        $region53: #{tpu_custom_call.1} parent=47 // pred_check
          %p417 = pneg %p96
        $region54: #{tpu_custom_call.1} parent=47 // pred_check_branch
          %419 = sbr.rel (%p417) target = $region56
        $region55: #{tpu_custom_call.1} parent=47 // pred_region
          %s420 = sand.u32 %s27, 1
          %s421 = scalar_lea.sflag [#allocation7], %s420
          %s422 = sand.u32 %s86, 1
          %s423 = smul.addr %s422, 8
          %s424 = scalar_lea.vmem [#allocation6], %s423
          %426 = vsyncadd %s421, 0
          %s427 = smul.addr %s34, 2
          %s428 = sadd.s32 %s36, %s427
          %s429 = smul.addr %s428, 8
          %s430 = scalar_lea.hbm %s1, %s429
          %s432 = sshll.u32 %s430, 4
          %s433 = int_to_ptr.hbm [resolvable:$true] %s432
          %s434 = sshll.u32 %s424, 4
          %s435 = int_to_ptr.vmem [resolvable:$true] %s434
          %437 = dma.hbm_to_vmem [thread:$0]  %s433, 128, %s435, %s421
        $region56: #{tpu_custom_call.1} parent=47 // pred_fallthru
          _
      $region48: #{tpu_custom_call.1} parent=5 // pred_fallthru
        _
      %p438 = scmp.le.s32.totalorder 1, %s27
      %p439 = scmp.lt.s32.totalorder %s27, 9
      %p440 = pnand %p438, %p439
      %p441 = pneg %p440
      // Predicated region
      $region57: #{tpu_custom_call.1} parent=5 // pred_check
        _
      $region58: #{tpu_custom_call.1} parent=5 // pred_check_branch
        %443 = sbr.rel (%p440) target = $region60
      $region59: #{tpu_custom_call.1} parent=5 // pred_region
        %s444 = ssub.s32 %s27, 1
        %s445 = sand.u32 %s61, 1
        %s446 = scalar_lea.sflag [#allocation4], %s445
        %s447 = sand.u32 %s61, 1
        %s448 = smul.addr %s447, 8
        %s449 = scalar_lea.vmem [#allocation3], %s448
        // Predicated region
        $region61: #{tpu_custom_call.1} parent=59 // pred_check
          %p450 = pneg %p74
        $region62: #{tpu_custom_call.1} parent=59 // pred_check_branch
          %452 = sbr.rel (%p450) target = $region64
        $region63: #{tpu_custom_call.1} parent=59 // pred_region
          %454 = dma.done %s446, 128
        $region64: #{tpu_custom_call.1} parent=59 // pred_fallthru
          _
        %s455 = sand.u32 %s32, 1
        %s456 = scalar_lea.sflag [#allocation7], %s455
        %s457 = sand.u32 %s89, 1
        %s458 = smul.addr %s457, 8
        %s459 = scalar_lea.vmem [#allocation6], %s458
        // Predicated region
        $region65: #{tpu_custom_call.1} parent=59 // pred_check
          %p460 = pneg %p102
        $region66: #{tpu_custom_call.1} parent=59 // pred_check_branch
          %462 = sbr.rel (%p460) target = $region68
        $region67: #{tpu_custom_call.1} parent=59 // pred_region
          %464 = dma.done %s456, 128
        $region68: #{tpu_custom_call.1} parent=59 // pred_fallthru
          _
        // Predicated region
        $region69: #{tpu_custom_call.1} parent=59 // pred_check
          %p465 = pneg %p165
        $region70: #{tpu_custom_call.1} parent=59 // pred_check_branch
          %467 = sbr.rel (%p465) target = $region72
        $region71: #{tpu_custom_call.1} parent=59 // pred_region
          %469 = dma.done [#allocation7], 2048
        $region72: #{tpu_custom_call.1} parent=59 // pred_fallthru
          _
        // Predicated region
        $region73: #{tpu_custom_call.1} parent=59 // pred_check
          %p470 = pneg %p186
        $region74: #{tpu_custom_call.1} parent=59 // pred_check_branch
          %472 = sbr.rel (%p470) target = $region76
        $region75: #{tpu_custom_call.1} parent=59 // pred_region
          %474 = dma.done [#allocation10], 2048
        $region76: #{tpu_custom_call.1} parent=59 // pred_fallthru
          _
        // Predicated region
        $region77: #{tpu_custom_call.1} parent=59 // pred_check
          %p475 = pneg %p207
        $region78: #{tpu_custom_call.1} parent=59 // pred_check_branch
          %477 = sbr.rel (%p475) target = $region80
        $region79: #{tpu_custom_call.1} parent=59 // pred_region
          %479 = dma.done [#allocation10], 2048
        $region80: #{tpu_custom_call.1} parent=59 // pred_fallthru
          _
        // Predicated region
        $region81: #{tpu_custom_call.1} parent=59 // pred_check
          %p480 = pneg %p249
        $region82: #{tpu_custom_call.1} parent=59 // pred_check_branch
          %482 = sbr.rel (%p480) target = $region84
        $region83: #{tpu_custom_call.1} parent=59 // pred_region
          %484 = dma.done [#allocation13], 8192
        $region84: #{tpu_custom_call.1} parent=59 // pred_fallthru
          _
        // Predicated region
        $region85: #{tpu_custom_call.1} parent=59 // pred_check
          %p485 = pneg %p270
        $region86: #{tpu_custom_call.1} parent=59 // pred_check_branch
          %487 = sbr.rel (%p485) target = $region88
        $region87: #{tpu_custom_call.1} parent=59 // pred_region
          %489 = dma.done [#allocation13], 4096
        $region88: #{tpu_custom_call.1} parent=59 // pred_fallthru
          _
        %s490 = sand.u32 %s61, 1
        %s491 = scalar_lea.sflag [#allocation4], %s490
        %s492 = sand.u32 %s61, 1
        %s493 = smul.addr %s492, 8
        %s494 = scalar_lea.vmem [#allocation3], %s493
        %p495 = pneg %p74
        %p496 = pneg %p71
        %s497 = sand.u32 %s32, 1
        %s498 = scalar_lea.sflag [#allocation7], %s497
        %s499 = sand.u32 %s89, 1
        %s500 = smul.addr %s499, 8
        %s501 = scalar_lea.vmem [#allocation6], %s500
        %p502 = pneg %p102
        %p503 = pneg %p99
        %p504 = pneg %p123
        %p505 = pneg %p120
        %p506 = pneg %p144
        %p507 = pneg %p141
        %p508 = pneg %p165
        %p509 = pneg %p162
        %p510 = pneg %p186
        %p511 = pneg %p183
        %p512 = pneg %p207
        %p513 = pneg %p204
        %p514 = pneg %p228
        %p515 = pneg %p225
        %p516 = pneg %p249
        %p517 = pneg %p246
        %p518 = pneg %p270
        %p519 = pneg %p267
        %p520 = pneg %p298
        %p521 = pneg %p295
        %s522 = sand.u32 %s285, 1
        %s523 = scalar_lea.sflag [#allocation5], %s522
        %s524 = sand.u32 %s285, 1
        %s525 = smul.addr %s524, 8
        %s526 = scalar_lea.vmem [#allocation15], %s525
        %p527 = scmp.eq.s32.totalorder %s39, 0
        // Predicated region
        $region89: #{tpu_custom_call.1} parent=59 // pred_check
          %p528 = pneg %p527
        $region90: #{tpu_custom_call.1} parent=59 // pred_check_branch
          %530 = sbr.rel (%p528) target = $region92
        $region91: #{tpu_custom_call.1} parent=59 // pred_region
          %531 = vst [vmem:[#allocation2] sm:$0xff] 0.0
        $region92: #{tpu_custom_call.1} parent=59 // pred_fallthru
          _
        %p532 = scmp.le.s32.totalorder %s39, %s38
        // Predicated region
        $region93: #{tpu_custom_call.1} parent=59 // pred_check
          %p533 = pneg %p532
        $region94: #{tpu_custom_call.1} parent=59 // pred_check_branch
          %535 = sbr.rel (%p533) target = $region96
        $region95: #{tpu_custom_call.1} parent=59 // pred_region
          %v536 = vld [vmem:[%s459] sm:$0xff]
          %v537 = vld [vmem:[%s2] sm:$0x1]
          %v538 = vmul.f32 %v536, %v536
          %539 = vadd.xlane.f32.xlu0 %v538
          %v540 = vpop.xlane.xlu0 %539
          %v541 = vrcp.pop 128.0
          %v542 = vmul.f32 128.0, %v541
          %v543 = vsub.f32 1.0, %v542
          %v544 = vmul.f32 %v541, %v543
          %v545 = vadd.f32 %v541, %v544
          %vm546 = vweird.f32 %v541
          %v547 = vsel %vm546, %v541, %v545
          %v548 = vmul.f32 %v540, %v547
          %v549 = vadd.f32 %v548, 1e-06
          %v550 = vrsqrt.pop %v549
          %v551 = vmul.f32 %v550, %v549
          %v552 = vmul.f32 %v551, %v550
          %v553 = vmul.f32 0.5, %v552
          %v554 = vsub.f32 1.5, %v553
          %v555 = vmul.f32 %v550, %v554
          %vm556 = vweird.f32 %v549
          %vm557 = vweird.f32 %v550
          %vm558 = vmor %vm556, %vm557
          %v559 = vsel %vm558, %v550, %v555
          %v560 = vmul.f32 %v536, %v559
          %v562 = vperm.slane %v537, 0
          %v564 = vmul.f32 %v560, %v562
          %v565 = vld [vmem:[%s3] sm:$0x1]
          %v567 = vperm.slane %v565, 0
          %v569 = vmul.f32 %v564, %v567
          %570 = vadd.xlane.f32.xlu0 %v569
          %v571 = vpop.xlane.xlu0 %570
          %vm572 = vcmp.ge.f32.partialorder %v571, 0.0
          %v573 = vsub.f32 0.0, %v571
          %v574 = vmul.f32 %v573, 1.442695
          %v575 = vpow.pop %v574
          %v576 = vadd.f32 %v575, 1.0
          %v577 = vlog2.pop %v576
          %v578 = vmul.f32 %v577, 0.6931472
          %v579 = vsub.f32 0.0, %v578
          %v580 = vmul.f32 %v571, 1.442695
          %v581 = vpow.pop %v580
          %v582 = vadd.f32 %v581, 1.0
          %v583 = vlog2.pop %v582
          %v584 = vmul.f32 %v583, 0.6931472
          %v585 = vsub.f32 %v571, %v584
          %v586 = vsel %vm572, %v579, %v585
          %v587 = vlaneseq
          %v588 = vshrl.u32 %v587, 7
          %s589 = smul.u32 %s38, 8
          %v590 = vstv %s589
          %v591 = vadd.s32 %v588, %v590
          %v592 = vlaneseq
          %v593 = vand.u32 %v592, 127
          %v594 = vsub.s32 %v591, %v593
          %s595 = smul.u32 %s39, 8
          %v596 = vstv %s595
          %v597 = vsub.s32 %v594, %v596
          %vm598 = vcmp.ge.s32.totalorder %v597, 0
          %v599 = vcvt.s32.f32 %v597
          %v601 = vperm.slane %v599, 0
          %v602 = vlaneseq
          %v603 = vshrl.u32 %v602, 7
          %605 = vset.pattern.permute.xlu0 %v603
          %606 = vperm.xlu0 %605, %v601
          %v607 = vpop.permute.xlu0 %606
          %v608 = vperm.slane %v599, 1
          %v609 = vlaneseq
          %v610 = vshrl.u32 %v609, 7
          %612 = vset.pattern.permute.xlu0 %v610
          %613 = vperm.xlu0 %612, %v608
          %v614 = vpop.permute.xlu0 %613
          %v615 = vperm.slane %v599, 2
          %v616 = vlaneseq
          %v617 = vshrl.u32 %v616, 7
          %619 = vset.pattern.permute.xlu0 %v617
          %620 = vperm.xlu0 %619, %v615
          %v621 = vpop.permute.xlu0 %620
          %v622 = vperm.slane %v599, 3
          %v623 = vlaneseq
          %v624 = vshrl.u32 %v623, 7
          %626 = vset.pattern.permute.xlu0 %v624
          %627 = vperm.xlu0 %626, %v622
          %v628 = vpop.permute.xlu0 %627
          %v629 = vperm.slane %v599, 4
          %v630 = vlaneseq
          %v631 = vshrl.u32 %v630, 7
          %633 = vset.pattern.permute.xlu0 %v631
          %634 = vperm.xlu0 %633, %v629
          %v635 = vpop.permute.xlu0 %634
          %v636 = vperm.slane %v599, 5
          %v637 = vlaneseq
          %v638 = vshrl.u32 %v637, 7
          %640 = vset.pattern.permute.xlu0 %v638
          %641 = vperm.xlu0 %640, %v636
          %v642 = vpop.permute.xlu0 %641
          %v643 = vperm.slane %v599, 6
          %v644 = vlaneseq
          %v645 = vshrl.u32 %v644, 7
          %647 = vset.pattern.permute.xlu0 %v645
          %648 = vperm.xlu0 %647, %v643
          %v649 = vpop.permute.xlu0 %648
          %v650 = vperm.slane %v599, 7
          %v651 = vlaneseq
          %v652 = vshrl.u32 %v651, 7
          %654 = vset.pattern.permute.xlu0 %v652
          %655 = vperm.xlu0 %654, %v650
          %v656 = vpop.permute.xlu0 %655
          %v665 = vmul.f32 %v586, %v607
          %v666 = vmul.f32 %v586, %v614
          %v667 = vmul.f32 %v586, %v621
          %v668 = vmul.f32 %v586, %v628
          %v669 = vmul.f32 %v586, %v635
          %v670 = vmul.f32 %v586, %v642
          %v671 = vmul.f32 %v586, %v649
          %v672 = vmul.f32 %v586, %v656
          %v673 = vmul.f32 %v665, 1.442695
          %v674 = vpow.pop %v673
          %v675 = vmul.f32 %v666, 1.442695
          %v676 = vpow.pop %v675
          %v677 = vmul.f32 %v667, 1.442695
          %v678 = vpow.pop %v677
          %v679 = vmul.f32 %v668, 1.442695
          %v680 = vpow.pop %v679
          %v681 = vmul.f32 %v669, 1.442695
          %v682 = vpow.pop %v681
          %v683 = vmul.f32 %v670, 1.442695
          %v684 = vpow.pop %v683
          %v685 = vmul.f32 %v671, 1.442695
          %v686 = vpow.pop %v685
          %v687 = vmul.f32 %v672, 1.442695
          %v688 = vpow.pop %v687
          %697 = vset.pattern.permute.xlu0 0
          %698 = vperm.xlu0 %697, %v674
          %v699 = vpop.permute.xlu0 %698
          %700 = vset.pattern.permute.xlu0 0
          %701 = vperm.xlu0 %700, %v676
          %v702 = vpop.permute.xlu0 %701
          %703 = vset.pattern.permute.xlu0 0
          %704 = vperm.xlu0 %703, %v678
          %v705 = vpop.permute.xlu0 %704
          %706 = vset.pattern.permute.xlu0 0
          %707 = vperm.xlu0 %706, %v680
          %v708 = vpop.permute.xlu0 %707
          %709 = vset.pattern.permute.xlu0 0
          %710 = vperm.xlu0 %709, %v682
          %v711 = vpop.permute.xlu0 %710
          %712 = vset.pattern.permute.xlu0 0
          %713 = vperm.xlu0 %712, %v684
          %v714 = vpop.permute.xlu0 %713
          %715 = vset.pattern.permute.xlu0 0
          %716 = vperm.xlu0 %715, %v686
          %v717 = vpop.permute.xlu0 %716
          %718 = vset.pattern.permute.xlu0 0
          %719 = vperm.xlu0 %718, %v688
          %v720 = vpop.permute.xlu0 %719
          %v721 = vperm.slane %v699, %v593
          %v722 = vperm.slane %v702, %v593
          %v723 = vperm.slane %v705, %v593
          %v724 = vperm.slane %v708, %v593
          %v725 = vperm.slane %v711, %v593
          %v726 = vperm.slane %v714, %v593
          %v727 = vperm.slane %v717, %v593
          %v728 = vperm.slane %v720, %v593
          %vm729 = vcmask 1041409
          %v730 = vsel %vm729, %v722, %v721
          %vm731 = vcmask 1042434
          %v732 = vsel %vm731, %v723, %v730
          %vm733 = vcmask 1043459
          %v734 = vsel %vm733, %v724, %v732
          %vm735 = vcmask 1044484
          %v736 = vsel %vm735, %v725, %v734
          %vm737 = vcmask 1045509
          %v738 = vsel %vm737, %v726, %v736
          %vm739 = vcmask 1046534
          %v740 = vsel %vm739, %v727, %v738
          %vm741 = vcmask 1047559
          %v742 = vsel %vm741, %v728, %v740
          %v744 = vsel %vm598, %v742, 0.0
          %v745 = vld [vmem:[#allocation2] sm:$0xff]
          %vm746 = vcmask 64512
          %v748 = vsel %vm746, %v744, 0
          %750 = vmatpush.msra.mxu0 0.0
          %751 = vmatpush.msra.mxu0 0.0
          %752 = vmatpush.msra.mxu0 0.0
          %753 = vmatpush.msra.mxu0 0.0
          %754 = vmatpush.msra.mxu0 0.0
          %755 = vmatpush.msra.mxu0 0.0
          %756 = vmatpush.msra.mxu0 0.0
          %757 = vmatpush.msra.mxu0 0.0
          %758 = vmatpush.msra.mxu0 0.0
          %759 = vmatpush.msra.mxu0 0.0
          %760 = vmatpush.msra.mxu0 0.0
          %761 = vmatpush.msra.mxu0 0.0
          %762 = vmatpush.msra.mxu0 0.0
          %763 = vmatpush.msra.mxu0 0.0
          %764 = vmatpush.msra.mxu0 0.0
          %765 = vmatpush.msra.mxu0 %v564
          %766 = vmatmul.f32.gmra.mxu0 %v748
          %v767 = vpop.f32.mrf.mxu0
          %v768 = vadd.f32 0.0, %v767
          %769 = vdwg.mxu0
          %v770 = vadd.f32 %v745, %v768
          %771 = vst [vmem:[#allocation2] sm:$0xff] %v770
        $region96: #{tpu_custom_call.1} parent=59 // pred_fallthru
          _
        %p772 = scmp.eq.s32.totalorder %s39, 1
        // Predicated region
        $region97: #{tpu_custom_call.1} parent=59 // pred_check
          %p773 = pneg %p772
        $region98: #{tpu_custom_call.1} parent=59 // pred_check_branch
          %775 = sbr.rel (%p773) target = $region100
        $region99: #{tpu_custom_call.1} parent=59 // pred_region
          %v776 = vld [vmem:[%s449] sm:$0xff]
          %v777 = vld [vmem:[%s2] sm:$0x1]
          %v778 = vmul.f32 %v776, %v776
          %779 = vadd.xlane.f32.xlu0 %v778
          %v780 = vpop.xlane.xlu0 %779
          %v781 = vrcp.pop 128.0
          %v782 = vmul.f32 128.0, %v781
          %v783 = vsub.f32 1.0, %v782
          %v784 = vmul.f32 %v781, %v783
          %v785 = vadd.f32 %v781, %v784
          %vm786 = vweird.f32 %v781
          %v787 = vsel %vm786, %v781, %v785
          %v788 = vmul.f32 %v780, %v787
          %v789 = vadd.f32 %v788, 1e-06
          %v790 = vrsqrt.pop %v789
          %v791 = vmul.f32 %v790, %v789
          %v792 = vmul.f32 %v791, %v790
          %v793 = vmul.f32 0.5, %v792
          %v794 = vsub.f32 1.5, %v793
          %v795 = vmul.f32 %v790, %v794
          %vm796 = vweird.f32 %v789
          %vm797 = vweird.f32 %v790
          %vm798 = vmor %vm796, %vm797
          %v799 = vsel %vm798, %v790, %v795
          %v800 = vmul.f32 %v776, %v799
          %v802 = vperm.slane %v777, 0
          %v804 = vmul.f32 %v800, %v802
          %v805 = vld [vmem:[#allocation2] sm:$0xff]
          %v806 = vld [vmem:[#allocation8] sm:$0xff]
          %v807 = vld [vmem:[#allocation8 + $0x8] sm:$0xff]
          %v808 = vld [vmem:[#allocation8 + $0x10] sm:$0xff]
          %v809 = vld [vmem:[#allocation8 + $0x18] sm:$0xff]
          %v810 = vld [vmem:[#allocation8 + $0x20] sm:$0xff]
          %v811 = vld [vmem:[#allocation8 + $0x28] sm:$0xff]
          %v812 = vld [vmem:[#allocation8 + $0x30] sm:$0xff]
          %v813 = vld [vmem:[#allocation8 + $0x38] sm:$0xff]
          %v814 = vld [vmem:[#allocation8 + $0x40] sm:$0xff]
          %v815 = vld [vmem:[#allocation8 + $0x48] sm:$0xff]
          %v816 = vld [vmem:[#allocation8 + $0x50] sm:$0xff]
          %v817 = vld [vmem:[#allocation8 + $0x58] sm:$0xff]
          %v818 = vld [vmem:[#allocation8 + $0x60] sm:$0xff]
          %v819 = vld [vmem:[#allocation8 + $0x68] sm:$0xff]
          %v820 = vld [vmem:[#allocation8 + $0x70] sm:$0xff]
          %v821 = vld [vmem:[#allocation8 + $0x78] sm:$0xff]
          %822 = vmatpush.msra.mxu0 %v821
          %823 = vmatpush.msra.mxu0 %v820
          %824 = vmatpush.msra.mxu0 %v819
          %825 = vmatpush.msra.mxu0 %v818
          %826 = vmatpush.msra.mxu0 %v817
          %827 = vmatpush.msra.mxu0 %v816
          %828 = vmatpush.msra.mxu0 %v815
          %829 = vmatpush.msra.mxu0 %v814
          %830 = vmatpush.msra.mxu0 %v813
          %831 = vmatpush.msra.mxu0 %v812
          %832 = vmatpush.msra.mxu0 %v811
          %833 = vmatpush.msra.mxu0 %v810
          %834 = vmatpush.msra.mxu0 %v809
          %835 = vmatpush.msra.mxu0 %v808
          %836 = vmatpush.msra.mxu0 %v807
          %837 = vmatpush.msra.mxu0 %v806
          %838 = vmatmul.f32.gmra.mxu0 %v805
          %v839 = vpop.f32.mrf.mxu0
          %v840 = vadd.f32 0.0, %v839
          %841 = vdwg.mxu0
          %v842 = vld [vmem:[#allocation9] sm:$0xff]
          %v843 = vld [vmem:[#allocation9 + $0x8] sm:$0xff]
          %v844 = vld [vmem:[#allocation9 + $0x10] sm:$0xff]
          %v845 = vld [vmem:[#allocation9 + $0x18] sm:$0xff]
          %v846 = vld [vmem:[#allocation9 + $0x20] sm:$0xff]
          %v847 = vld [vmem:[#allocation9 + $0x28] sm:$0xff]
          %v848 = vld [vmem:[#allocation9 + $0x30] sm:$0xff]
          %v849 = vld [vmem:[#allocation9 + $0x38] sm:$0xff]
          %v850 = vld [vmem:[#allocation9 + $0x40] sm:$0xff]
          %v851 = vld [vmem:[#allocation9 + $0x48] sm:$0xff]
          %v852 = vld [vmem:[#allocation9 + $0x50] sm:$0xff]
          %v853 = vld [vmem:[#allocation9 + $0x58] sm:$0xff]
          %v854 = vld [vmem:[#allocation9 + $0x60] sm:$0xff]
          %v855 = vld [vmem:[#allocation9 + $0x68] sm:$0xff]
          %v856 = vld [vmem:[#allocation9 + $0x70] sm:$0xff]
          %v857 = vld [vmem:[#allocation9 + $0x78] sm:$0xff]
          %858 = vmatpush.msra.mxu0 %v857
          %859 = vmatpush.msra.mxu0 %v856
          %860 = vmatpush.msra.mxu0 %v855
          %861 = vmatpush.msra.mxu0 %v854
          %862 = vmatpush.msra.mxu0 %v853
          %863 = vmatpush.msra.mxu0 %v852
          %864 = vmatpush.msra.mxu0 %v851
          %865 = vmatpush.msra.mxu0 %v850
          %866 = vmatpush.msra.mxu0 %v849
          %867 = vmatpush.msra.mxu0 %v848
          %868 = vmatpush.msra.mxu0 %v847
          %869 = vmatpush.msra.mxu0 %v846
          %870 = vmatpush.msra.mxu0 %v845
          %871 = vmatpush.msra.mxu0 %v844
          %872 = vmatpush.msra.mxu0 %v843
          %873 = vmatpush.msra.mxu0 %v842
          %874 = vmatmul.f32.gmra.mxu0 %v804
          %v875 = vpop.f32.mrf.mxu0
          %v876 = vadd.f32 0.0, %v875
          %877 = vdwg.mxu0
          %v878 = vxor.u32 %v840, 2147483648
          %v879 = vmul.f32 %v878, 1.442695
          %v880 = vpow.pop %v879
          %v881 = vadd.f32 %v880, 1.0
          %v882 = vrcp.pop %v881
          %v883 = vmul.f32 %v881, %v882
          %v884 = vsub.f32 1.0, %v883
          %v885 = vmul.f32 %v882, %v884
          %v886 = vadd.f32 %v882, %v885
          %vm887 = vweird.f32 %v881
          %vm888 = vweird.f32 %v882
          %vm889 = vmor %vm887, %vm888
          %v890 = vsel %vm889, %v882, %v886
          %v891 = vand.u32 2147483647, %v881
          %vm892 = vcmp.eq.f32.partialorder %v891, 8.507059e+37
          %v893 = vand.u32 %v881, 2147483648
          %v894 = vor.u32 1.1754944e-38, %v893
          %v895 = vsel %vm892, %v894, %v890
          %v896 = vmul.f32 1.0, %v895
          %v897 = vmul.f32 %v840, %v896
          %v898 = vld [vmem:[#allocation11] sm:$0xff]
          %v899 = vld [vmem:[#allocation11 + $0x8] sm:$0xff]
          %v900 = vld [vmem:[#allocation11 + $0x10] sm:$0xff]
          %v901 = vld [vmem:[#allocation11 + $0x18] sm:$0xff]
          %v902 = vld [vmem:[#allocation11 + $0x20] sm:$0xff]
          %v903 = vld [vmem:[#allocation11 + $0x28] sm:$0xff]
          %v904 = vld [vmem:[#allocation11 + $0x30] sm:$0xff]
          %v905 = vld [vmem:[#allocation11 + $0x38] sm:$0xff]
          %v906 = vld [vmem:[#allocation11 + $0x40] sm:$0xff]
          %v907 = vld [vmem:[#allocation11 + $0x48] sm:$0xff]
          %v908 = vld [vmem:[#allocation11 + $0x50] sm:$0xff]
          %v909 = vld [vmem:[#allocation11 + $0x58] sm:$0xff]
          %v910 = vld [vmem:[#allocation11 + $0x60] sm:$0xff]
          %v911 = vld [vmem:[#allocation11 + $0x68] sm:$0xff]
          %v912 = vld [vmem:[#allocation11 + $0x70] sm:$0xff]
          %v913 = vld [vmem:[#allocation11 + $0x78] sm:$0xff]
          %914 = vmatpush.msra.mxu0 %v913
          %915 = vmatpush.msra.mxu0 %v912
          %916 = vmatpush.msra.mxu0 %v911
          %917 = vmatpush.msra.mxu0 %v910
          %918 = vmatpush.msra.mxu0 %v909
          %919 = vmatpush.msra.mxu0 %v908
          %920 = vmatpush.msra.mxu0 %v907
          %921 = vmatpush.msra.mxu0 %v906
          %922 = vmatpush.msra.mxu0 %v905
          %923 = vmatpush.msra.mxu0 %v904
          %924 = vmatpush.msra.mxu0 %v903
          %925 = vmatpush.msra.mxu0 %v902
          %926 = vmatpush.msra.mxu0 %v901
          %927 = vmatpush.msra.mxu0 %v900
          %928 = vmatpush.msra.mxu0 %v899
          %929 = vmatpush.msra.mxu0 %v898
          %930 = vmatmul.f32.gmra.mxu0 %v897
          %v931 = vpop.f32.mrf.mxu0
          %v932 = vadd.f32 0.0, %v931
          %933 = vdwg.mxu0
          %v934 = vmul.f32 %v932, %v876
          %v935 = vadd.f32 %v776, %v934
          %v936 = vld [vmem:[%s7] sm:$0x1]
          %v937 = vmul.f32 %v935, %v935
          %938 = vadd.xlane.f32.xlu0 %v937
          %v939 = vpop.xlane.xlu0 %938
          %v940 = vmul.f32 %v939, %v787
          %v941 = vadd.f32 %v940, 1e-06
          %v942 = vrsqrt.pop %v941
          %v943 = vmul.f32 %v942, %v941
          %v944 = vmul.f32 %v943, %v942
          %v945 = vmul.f32 0.5, %v944
          %v946 = vsub.f32 1.5, %v945
          %v947 = vmul.f32 %v942, %v946
          %vm948 = vweird.f32 %v941
          %vm949 = vweird.f32 %v942
          %vm950 = vmor %vm948, %vm949
          %v951 = vsel %vm950, %v942, %v947
          %v952 = vmul.f32 %v935, %v951
          %v954 = vperm.slane %v936, 0
          %v956 = vmul.f32 %v952, %v954
          %v957 = vld [vmem:[#allocation12] sm:$0xff]
          %v958 = vld [vmem:[#allocation12 + $0x8] sm:$0xff]
          %v959 = vld [vmem:[#allocation12 + $0x10] sm:$0xff]
          %v960 = vld [vmem:[#allocation12 + $0x18] sm:$0xff]
          %v961 = vld [vmem:[#allocation12 + $0x20] sm:$0xff]
          %v962 = vld [vmem:[#allocation12 + $0x28] sm:$0xff]
          %v963 = vld [vmem:[#allocation12 + $0x30] sm:$0xff]
          %v964 = vld [vmem:[#allocation12 + $0x38] sm:$0xff]
          %v965 = vld [vmem:[#allocation12 + $0x40] sm:$0xff]
          %v966 = vld [vmem:[#allocation12 + $0x48] sm:$0xff]
          %v967 = vld [vmem:[#allocation12 + $0x50] sm:$0xff]
          %v968 = vld [vmem:[#allocation12 + $0x58] sm:$0xff]
          %v969 = vld [vmem:[#allocation12 + $0x60] sm:$0xff]
          %v970 = vld [vmem:[#allocation12 + $0x68] sm:$0xff]
          %v971 = vld [vmem:[#allocation12 + $0x70] sm:$0xff]
          %v972 = vld [vmem:[#allocation12 + $0x78] sm:$0xff]
          %v973 = vld [vmem:[#allocation12 + $0x80] sm:$0xff]
          %v974 = vld [vmem:[#allocation12 + $0x88] sm:$0xff]
          %v975 = vld [vmem:[#allocation12 + $0x90] sm:$0xff]
          %v976 = vld [vmem:[#allocation12 + $0x98] sm:$0xff]
          %v977 = vld [vmem:[#allocation12 + $0xa0] sm:$0xff]
          %v978 = vld [vmem:[#allocation12 + $0xa8] sm:$0xff]
          %v979 = vld [vmem:[#allocation12 + $0xb0] sm:$0xff]
          %v980 = vld [vmem:[#allocation12 + $0xb8] sm:$0xff]
          %v981 = vld [vmem:[#allocation12 + $0xc0] sm:$0xff]
          %v982 = vld [vmem:[#allocation12 + $0xc8] sm:$0xff]
          %v983 = vld [vmem:[#allocation12 + $0xd0] sm:$0xff]
          %v984 = vld [vmem:[#allocation12 + $0xd8] sm:$0xff]
          %v985 = vld [vmem:[#allocation12 + $0xe0] sm:$0xff]
          %v986 = vld [vmem:[#allocation12 + $0xe8] sm:$0xff]
          %v987 = vld [vmem:[#allocation12 + $0xf0] sm:$0xff]
          %v988 = vld [vmem:[#allocation12 + $0xf8] sm:$0xff]
          %v989 = vld [vmem:[#allocation12 + $0x100] sm:$0xff]
          %v990 = vld [vmem:[#allocation12 + $0x108] sm:$0xff]
          %v991 = vld [vmem:[#allocation12 + $0x110] sm:$0xff]
          %v992 = vld [vmem:[#allocation12 + $0x118] sm:$0xff]
          %v993 = vld [vmem:[#allocation12 + $0x120] sm:$0xff]
          %v994 = vld [vmem:[#allocation12 + $0x128] sm:$0xff]
          %v995 = vld [vmem:[#allocation12 + $0x130] sm:$0xff]
          %v996 = vld [vmem:[#allocation12 + $0x138] sm:$0xff]
          %v997 = vld [vmem:[#allocation12 + $0x140] sm:$0xff]
          %v998 = vld [vmem:[#allocation12 + $0x148] sm:$0xff]
          %v999 = vld [vmem:[#allocation12 + $0x150] sm:$0xff]
          %v1000 = vld [vmem:[#allocation12 + $0x158] sm:$0xff]
          %v1001 = vld [vmem:[#allocation12 + $0x160] sm:$0xff]
          %v1002 = vld [vmem:[#allocation12 + $0x168] sm:$0xff]
          %v1003 = vld [vmem:[#allocation12 + $0x170] sm:$0xff]
          %v1004 = vld [vmem:[#allocation12 + $0x178] sm:$0xff]
          %v1005 = vld [vmem:[#allocation12 + $0x180] sm:$0xff]
          %v1006 = vld [vmem:[#allocation12 + $0x188] sm:$0xff]
          %v1007 = vld [vmem:[#allocation12 + $0x190] sm:$0xff]
          %v1008 = vld [vmem:[#allocation12 + $0x198] sm:$0xff]
          %v1009 = vld [vmem:[#allocation12 + $0x1a0] sm:$0xff]
          %v1010 = vld [vmem:[#allocation12 + $0x1a8] sm:$0xff]
          %v1011 = vld [vmem:[#allocation12 + $0x1b0] sm:$0xff]
          %v1012 = vld [vmem:[#allocation12 + $0x1b8] sm:$0xff]
          %v1013 = vld [vmem:[#allocation12 + $0x1c0] sm:$0xff]
          %v1014 = vld [vmem:[#allocation12 + $0x1c8] sm:$0xff]
          %v1015 = vld [vmem:[#allocation12 + $0x1d0] sm:$0xff]
          %v1016 = vld [vmem:[#allocation12 + $0x1d8] sm:$0xff]
          %v1017 = vld [vmem:[#allocation12 + $0x1e0] sm:$0xff]
          %v1018 = vld [vmem:[#allocation12 + $0x1e8] sm:$0xff]
          %v1019 = vld [vmem:[#allocation12 + $0x1f0] sm:$0xff]
          %v1020 = vld [vmem:[#allocation12 + $0x1f8] sm:$0xff]
          %1021 = vmatpush.msra.mxu0 %v1017
          %1022 = vmatpush.msra.mxu0 %v1013
          %1023 = vmatpush.msra.mxu0 %v1009
          %1024 = vmatpush.msra.mxu0 %v1005
          %1025 = vmatpush.msra.mxu0 %v1001
          %1026 = vmatpush.msra.mxu0 %v997
          %1027 = vmatpush.msra.mxu0 %v993
          %1028 = vmatpush.msra.mxu0 %v989
          %1029 = vmatpush.msra.mxu0 %v985
          %1030 = vmatpush.msra.mxu0 %v981
          %1031 = vmatpush.msra.mxu0 %v977
          %1032 = vmatpush.msra.mxu0 %v973
          %1033 = vmatpush.msra.mxu0 %v969
          %1034 = vmatpush.msra.mxu0 %v965
          %1035 = vmatpush.msra.mxu0 %v961
          %1036 = vmatpush.msra.mxu0 %v957
          %1037 = vmatmul.f32.gmra.mxu0 %v956
          %v1038 = vpop.f32.mrf.mxu0
          %v1039 = vadd.f32 0.0, %v1038
          %1040 = vdwg.mxu0
          %1041 = vmatpush.msra.mxu0 %v1018
          %1042 = vmatpush.msra.mxu0 %v1014
          %1043 = vmatpush.msra.mxu0 %v1010
          %1044 = vmatpush.msra.mxu0 %v1006
          %1045 = vmatpush.msra.mxu0 %v1002
          %1046 = vmatpush.msra.mxu0 %v998
          %1047 = vmatpush.msra.mxu0 %v994
          %1048 = vmatpush.msra.mxu0 %v990
          %1049 = vmatpush.msra.mxu0 %v986
          %1050 = vmatpush.msra.mxu0 %v982
          %1051 = vmatpush.msra.mxu0 %v978
          %1052 = vmatpush.msra.mxu0 %v974
          %1053 = vmatpush.msra.mxu0 %v970
          %1054 = vmatpush.msra.mxu0 %v966
          %1055 = vmatpush.msra.mxu0 %v962
          %1056 = vmatpush.msra.mxu0 %v958
          %1057 = vmatmul.f32.gmra.mxu0 %v956
          %v1058 = vpop.f32.mrf.mxu0
          %v1059 = vadd.f32 0.0, %v1058
          %1060 = vdwg.mxu0
          %1061 = vmatpush.msra.mxu0 %v1019
          %1062 = vmatpush.msra.mxu0 %v1015
          %1063 = vmatpush.msra.mxu0 %v1011
          %1064 = vmatpush.msra.mxu0 %v1007
          %1065 = vmatpush.msra.mxu0 %v1003
          %1066 = vmatpush.msra.mxu0 %v999
          %1067 = vmatpush.msra.mxu0 %v995
          %1068 = vmatpush.msra.mxu0 %v991
          %1069 = vmatpush.msra.mxu0 %v987
          %1070 = vmatpush.msra.mxu0 %v983
          %1071 = vmatpush.msra.mxu0 %v979
          %1072 = vmatpush.msra.mxu0 %v975
          %1073 = vmatpush.msra.mxu0 %v971
          %1074 = vmatpush.msra.mxu0 %v967
          %1075 = vmatpush.msra.mxu0 %v963
          %1076 = vmatpush.msra.mxu0 %v959
          %1077 = vmatmul.f32.gmra.mxu0 %v956
          %v1078 = vpop.f32.mrf.mxu0
          %v1079 = vadd.f32 0.0, %v1078
          %1080 = vdwg.mxu0
          %1081 = vmatpush.msra.mxu0 %v1020
          %1082 = vmatpush.msra.mxu0 %v1016
          %1083 = vmatpush.msra.mxu0 %v1012
          %1084 = vmatpush.msra.mxu0 %v1008
          %1085 = vmatpush.msra.mxu0 %v1004
          %1086 = vmatpush.msra.mxu0 %v1000
          %1087 = vmatpush.msra.mxu0 %v996
          %1088 = vmatpush.msra.mxu0 %v992
          %1089 = vmatpush.msra.mxu0 %v988
          %1090 = vmatpush.msra.mxu0 %v984
          %1091 = vmatpush.msra.mxu0 %v980
          %1092 = vmatpush.msra.mxu0 %v976
          %1093 = vmatpush.msra.mxu0 %v972
          %1094 = vmatpush.msra.mxu0 %v968
          %1095 = vmatpush.msra.mxu0 %v964
          %1096 = vmatpush.msra.mxu0 %v960
          %1097 = vmatmul.f32.gmra.mxu0 %v956
          %v1098 = vpop.f32.mrf.mxu0
          %v1099 = vadd.f32 0.0, %v1098
          %1100 = vdwg.mxu0
          %v1101 = vxor.u32 %v1079, 2147483648
          %v1102 = vxor.u32 %v1099, 2147483648
          %v1103 = vmul.f32 %v1101, 1.442695
          %v1104 = vpow.pop %v1103
          %v1105 = vmul.f32 %v1102, 1.442695
          %v1106 = vpow.pop %v1105
          %v1107 = vadd.f32 %v1104, 1.0
          %v1108 = vadd.f32 %v1106, 1.0
          %v1109 = vrcp.pop %v1107
          %v1110 = vmul.f32 %v1107, %v1109
          %v1111 = vsub.f32 1.0, %v1110
          %v1112 = vmul.f32 %v1109, %v1111
          %v1113 = vadd.f32 %v1109, %v1112
          %vm1114 = vweird.f32 %v1107
          %vm1115 = vweird.f32 %v1109
          %vm1116 = vmor %vm1114, %vm1115
          %v1117 = vsel %vm1116, %v1109, %v1113
          %v1118 = vand.u32 2147483647, %v1107
          %vm1119 = vcmp.eq.f32.partialorder %v1118, 8.507059e+37
          %v1120 = vand.u32 %v1107, 2147483648
          %v1121 = vor.u32 1.1754944e-38, %v1120
          %v1122 = vsel %vm1119, %v1121, %v1117
          %v1123 = vmul.f32 1.0, %v1122
          %v1124 = vrcp.pop %v1108
          %v1125 = vmul.f32 %v1108, %v1124
          %v1126 = vsub.f32 1.0, %v1125
          %v1127 = vmul.f32 %v1124, %v1126
          %v1128 = vadd.f32 %v1124, %v1127
          %vm1129 = vweird.f32 %v1108
          %vm1130 = vweird.f32 %v1124
          %vm1131 = vmor %vm1129, %vm1130
          %v1132 = vsel %vm1131, %v1124, %v1128
          %v1133 = vand.u32 2147483647, %v1108
          %vm1134 = vcmp.eq.f32.partialorder %v1133, 8.507059e+37
          %v1135 = vand.u32 %v1108, 2147483648
          %v1136 = vor.u32 1.1754944e-38, %v1135
          %v1137 = vsel %vm1134, %v1136, %v1132
          %v1138 = vmul.f32 1.0, %v1137
          %v1139 = vmul.f32 %v1079, %v1123
          %v1140 = vmul.f32 %v1099, %v1138
          %v1141 = vmul.f32 %v1039, %v1139
          %v1142 = vmul.f32 %v1059, %v1140
          %v1143 = vld [vmem:[#allocation14] sm:$0xff]
          %v1144 = vld [vmem:[#allocation14 + $0x8] sm:$0xff]
          %v1145 = vld [vmem:[#allocation14 + $0x10] sm:$0xff]
          %v1146 = vld [vmem:[#allocation14 + $0x18] sm:$0xff]
          %v1147 = vld [vmem:[#allocation14 + $0x20] sm:$0xff]
          %v1148 = vld [vmem:[#allocation14 + $0x28] sm:$0xff]
          %v1149 = vld [vmem:[#allocation14 + $0x30] sm:$0xff]
          %v1150 = vld [vmem:[#allocation14 + $0x38] sm:$0xff]
          %v1151 = vld [vmem:[#allocation14 + $0x40] sm:$0xff]
          %v1152 = vld [vmem:[#allocation14 + $0x48] sm:$0xff]
          %v1153 = vld [vmem:[#allocation14 + $0x50] sm:$0xff]
          %v1154 = vld [vmem:[#allocation14 + $0x58] sm:$0xff]
          %v1155 = vld [vmem:[#allocation14 + $0x60] sm:$0xff]
          %v1156 = vld [vmem:[#allocation14 + $0x68] sm:$0xff]
          %v1157 = vld [vmem:[#allocation14 + $0x70] sm:$0xff]
          %v1158 = vld [vmem:[#allocation14 + $0x78] sm:$0xff]
          %v1159 = vld [vmem:[#allocation14 + $0x80] sm:$0xff]
          %v1160 = vld [vmem:[#allocation14 + $0x88] sm:$0xff]
          %v1161 = vld [vmem:[#allocation14 + $0x90] sm:$0xff]
          %v1162 = vld [vmem:[#allocation14 + $0x98] sm:$0xff]
          %v1163 = vld [vmem:[#allocation14 + $0xa0] sm:$0xff]
          %v1164 = vld [vmem:[#allocation14 + $0xa8] sm:$0xff]
          %v1165 = vld [vmem:[#allocation14 + $0xb0] sm:$0xff]
          %v1166 = vld [vmem:[#allocation14 + $0xb8] sm:$0xff]
          %v1167 = vld [vmem:[#allocation14 + $0xc0] sm:$0xff]
          %v1168 = vld [vmem:[#allocation14 + $0xc8] sm:$0xff]
          %v1169 = vld [vmem:[#allocation14 + $0xd0] sm:$0xff]
          %v1170 = vld [vmem:[#allocation14 + $0xd8] sm:$0xff]
          %v1171 = vld [vmem:[#allocation14 + $0xe0] sm:$0xff]
          %v1172 = vld [vmem:[#allocation14 + $0xe8] sm:$0xff]
          %v1173 = vld [vmem:[#allocation14 + $0xf0] sm:$0xff]
          %v1174 = vld [vmem:[#allocation14 + $0xf8] sm:$0xff]
          %1175 = vmatpush.msra.mxu0 %v1158
          %1176 = vmatpush.msra.mxu0 %v1157
          %1177 = vmatpush.msra.mxu0 %v1156
          %1178 = vmatpush.msra.mxu0 %v1155
          %1179 = vmatpush.msra.mxu0 %v1154
          %1180 = vmatpush.msra.mxu0 %v1153
          %1181 = vmatpush.msra.mxu0 %v1152
          %1182 = vmatpush.msra.mxu0 %v1151
          %1183 = vmatpush.msra.mxu0 %v1150
          %1184 = vmatpush.msra.mxu0 %v1149
          %1185 = vmatpush.msra.mxu0 %v1148
          %1186 = vmatpush.msra.mxu0 %v1147
          %1187 = vmatpush.msra.mxu0 %v1146
          %1188 = vmatpush.msra.mxu0 %v1145
          %1189 = vmatpush.msra.mxu0 %v1144
          %1190 = vmatpush.msra.mxu0 %v1143
          %1191 = vmatmul.f32.gmra.mxu0 %v1141
          %v1192 = vpop.f32.mrf.mxu0
          %v1193 = vadd.f32 0.0, %v1192
          %1194 = vdwg.mxu0
          %1195 = vmatpush.msra.mxu0 %v1174
          %1196 = vmatpush.msra.mxu0 %v1173
          %1197 = vmatpush.msra.mxu0 %v1172
          %1198 = vmatpush.msra.mxu0 %v1171
          %1199 = vmatpush.msra.mxu0 %v1170
          %1200 = vmatpush.msra.mxu0 %v1169
          %1201 = vmatpush.msra.mxu0 %v1168
          %1202 = vmatpush.msra.mxu0 %v1167
          %1203 = vmatpush.msra.mxu0 %v1166
          %1204 = vmatpush.msra.mxu0 %v1165
          %1205 = vmatpush.msra.mxu0 %v1164
          %1206 = vmatpush.msra.mxu0 %v1163
          %1207 = vmatpush.msra.mxu0 %v1162
          %1208 = vmatpush.msra.mxu0 %v1161
          %1209 = vmatpush.msra.mxu0 %v1160
          %1210 = vmatpush.msra.mxu0 %v1159
          %1211 = vmatmul.f32.gmra.mxu0 %v1142
          %v1212 = vpop.f32.mrf.mxu0
          %v1213 = vadd.f32 %v1193, %v1212
          %1214 = vdwg.mxu0
          %v1215 = vadd.f32 %v935, %v1213
          %1216 = vst [vmem:[%s526] sm:$0xff] %v1215
        $region100: #{tpu_custom_call.1} parent=59 // pred_fallthru
          _
        %s1217 = sand.u32 %s285, 1
        %s1218 = scalar_lea.sflag [#allocation5], %s1217
        %s1219 = sand.u32 %s285, 1
        %s1220 = smul.addr %s1219, 8
        %s1221 = scalar_lea.vmem [#allocation15], %s1220
        // Predicated region
        $region101: #{tpu_custom_call.1} parent=59 // pred_check
          %p1222 = pneg %p295
        $region102: #{tpu_custom_call.1} parent=59 // pred_check_branch
          %1224 = sbr.rel (%p1222) target = $region104
        $region103: #{tpu_custom_call.1} parent=59 // pred_region
          %1226 = vsyncadd %s1218, 0
          %s1227 = smul.addr %s37, 2
          %s1228 = sadd.s32 %s38, %s1227
          %s1229 = smul.addr %s1228, 8
          %s1230 = scalar_lea.hbm %s10, %s1229
          %s1232 = sshll.u32 %s1221, 4
          %s1233 = int_to_ptr.vmem [resolvable:$true] %s1232
          %s1234 = sshll.u32 %s1230, 4
          %s1235 = int_to_ptr.hbm [resolvable:$true] %s1234
          %1237 = dma.vmem_to_hbm [thread:$0]  %s1233, 128, %s1235, %s1218
        $region104: #{tpu_custom_call.1} parent=59 // pred_fallthru
          _
      $region60: #{tpu_custom_call.1} parent=5 // pred_fallthru
        _
      %p1238 = scmp.le.s32.totalorder 2, %s27
      // Predicated region
      $region105: #{tpu_custom_call.1} parent=5 // pred_check
        %p1239 = pneg %p1238
      $region106: #{tpu_custom_call.1} parent=5 // pred_check_branch
        %1241 = sbr.rel (%p1239) target = $region108
      $region107: #{tpu_custom_call.1} parent=5 // pred_region
        %s1242 = ssub.s32 %s27, 2
        // Predicated region
        $region109: #{tpu_custom_call.1} parent=107 // pred_check
          %p1243 = pneg %p301
        $region110: #{tpu_custom_call.1} parent=107 // pred_check_branch
          %1245 = sbr.rel (%p1243) target = $region112
        $region111: #{tpu_custom_call.1} parent=107 // pred_region
          %s1246 = sand.u32 %s286, 1
          %s1247 = scalar_lea.sflag [#allocation5], %s1246
          %s1248 = sand.u32 %s286, 1
          %s1249 = smul.addr %s1248, 8
          %s1250 = scalar_lea.vmem [#allocation15], %s1249
          %1252 = dma.done %s1247, 128
        $region112: #{tpu_custom_call.1} parent=107 // pred_fallthru
          _
      $region108: #{tpu_custom_call.1} parent=5 // pred_fallthru
        _
    $region6: #{tpu_custom_call.1} parent=1 // loop_footer
      %s31 = sadd.s32 1, %s27
    $region7: #{tpu_custom_call.1} parent=1 // loop_footer_branch
      %26 = sbr.rel target = $region3
    $region8: #{tpu_custom_call.1} parent=1 // loop_exit
      _
    %1253 = vsyncpa [#allocation4], 1
    %s1254 = scalar_lea.sflag [#allocation4], 1
    %1255 = vsyncpa %s1254, 1
    %1256 = vsyncpa [#allocation7], 1
    %s1257 = scalar_lea.sflag [#allocation7], 1
    %1258 = vsyncpa %s1257, 1
    %1259 = vsyncpa [#allocation10], 1
    %1260 = vsyncpa [#allocation13], 1
    %1261 = vsyncpa [#allocation5], 1
    %s1262 = scalar_lea.sflag [#allocation5], 1
    %1263 = vsyncpa %s1262, 1

</llo_original>
